<compile_context>
chip_gen: v7x
topology: tpu7x:2x2x1
jax: 0.10.0
libtpu: 0.0.40
codegen_flags: <defaults>
</compile_context>

<pallas_src>
import functools

import jax
import jax.numpy as jnp
from jax import lax
from jax.experimental import pallas as pl
from jax.experimental.pallas import tpu as pltpu


def _rel_attn_kernel(x_ref, wqkv_ref, wo_ref, gamma_ref, beta_ref,
                     rwb_ref, remb_ref, rbias_ref, out_ref,
                     *, n_head, d_head):
    L = x_ref.shape[1]
    hd = n_head * d_head
    x = x_ref[0].astype(jnp.float32)                      # (L, D); also the residual

    # LayerNorm over d_model (eps=1e-5, biased variance, affine), f32.
    mu = jnp.mean(x, axis=-1, keepdims=True)
    var = jnp.mean((x - mu) ** 2, axis=-1, keepdims=True)
    xn = (x - mu) * lax.rsqrt(var + 1e-5)
    xn = xn * gamma_ref[0] + beta_ref[0]
    xnb = xn.astype(jnp.bfloat16)

    # Fused Q/K/V projection: one (L, D) x (D, 3*H*dh) matmul, f32 accumulation.
    # Wq columns already carry the 1/sqrt(d_head) attention temperature.
    qkv = jnp.dot(xnb, wqkv_ref[...], preferred_element_type=jnp.float32)   # (L, 3*hd)
    qkv_b = qkv.astype(jnp.bfloat16)                      # single bf16 cast (hoisted)

    # One-time head split to head-major (H, L, dh); static slices + stack, outside the
    # compute path.  TODO(synk): replace with pltpu.einshape("l(hd)->hld", ...) once
    # grouped-equation support is guaranteed.
    def head_major(off):
        return jnp.stack(
            [qkv_b[:, off + h * d_head: off + (h + 1) * d_head]
             for h in range(n_head)], axis=0)
    q_hm = head_major(0)                                  # (H, L, dh) bf16
    k_hm = head_major(hd)
    v_hm = head_major(2 * hd)

    # Fused score matmul: LHS = [Q ; r_w_bias] (H, L+1, dh), RHS = [K ; R_emb]
    # (H, 2L, dh).  One batched MXU op yields q.K^T, q.R^T and rwb.K^T.
    lhs = jnp.concatenate([q_hm, rwb_ref[...]], axis=1)                     # (H, L+1, dh)
    rhs = jnp.concatenate([k_hm, remb_ref[...]], axis=1)                    # (H, 2L,  dh)
    s_all = jnp.einsum('hqd,hkd->hqk', lhs, rhs,
                       preferred_element_type=jnp.float32)                  # (H, L+1, 2L)

    ac = s_all[:, :L, :L] + s_all[:, L:L + 1, :L]         # (q + r_w_bias) . K^T
    b_ = s_all[:, :L, L:]                                 # q . R_emb^T
    m = b_ + rbias_ref[...]                               # + D_ (r_bias, pre-scaled)

    # Exact Transformer-XL rel-shift, vectorized over heads:
    #   out[i, j] = m[i, j + L-1-i]          for j <= i
    #             = 0                         for j == i+1
    #             = m[i+1, j - i - 2]         for j >  i+1   (wrap into next query row)
    # Built from per-row XLU rotations (amounts kept in [0, L-1]) + a select.
    t = pltpu.roll(m, 1, 2)                               # uniform right-rotate by 1
    rolled = pltpu.roll(t, 0, 2, stride=1, stride_axis=1)  # extra right-rotate by i/row
    rolled_up = jnp.concatenate(
        [rolled[:, 1:, :], jnp.zeros_like(rolled[:, :1, :])], axis=1)       # rolled[i+1]
    row = lax.broadcasted_iota(jnp.int32, (n_head, L, L), 1)
    col = lax.broadcasted_iota(jnp.int32, (n_head, L, L), 2)
    bd = jnp.where(col <= row, rolled,
                   jnp.where(col == row + 1, 0.0, rolled_up))

    s = ac + bd                                           # attn_score (already * scale)

    # Softmax over klen (PyTorch dim=1 -> last axis here); dropatt = identity.
    s_max = jnp.max(s, axis=-1, keepdims=True)
    e = jnp.exp(s - s_max)
    p = e * pl.reciprocal(jnp.sum(e, axis=-1, keepdims=True), approx=True)

    # PV and output projection, batched over heads; Wo already carries fwd `scale`.
    av = jnp.einsum('hqk,hkd->hqd', p.astype(jnp.bfloat16), v_hm,
                    preferred_element_type=jnp.float32)                     # (H, L, dh)
    o = jnp.einsum('hqd,hdm->hqm', av.astype(jnp.bfloat16), wo_ref[...],
                   preferred_element_type=jnp.float32)                      # (H, L, D)
    o = jnp.sum(o, axis=0)                                                  # (L, D)

    # output dropout: identity in eval mode; residual add (res=True).
    out_ref[0] = (o + x).astype(out_ref.dtype)


def rel_learnable_multi_head_attn(q, r_emb, r_w_bias, r_bias,
                                  w_qs, w_ks, w_vs, w_o, ln_gamma, ln_beta,
                                  *, n_head, d_head, scale=1.0):
    """q: (qlen, bsz, d_model) time-major, like the PyTorch module.
    Weights in nn.Linear layout (out_features, in_features).
    Returns output: (qlen, bsz, d_model).  Self-attention, no mask, eval mode."""
    qlen, bsz, d_model = q.shape
    klen = qlen
    hd = n_head * d_head
    attn_scale = 1.0 / (d_head ** 0.5)                    # self.scale in the module

    # klen adjustment of the learnable relative tables (host-side, static shapes).
    r = r_emb.shape[0]
    if klen > r:
        r_emb = jnp.concatenate(
            [jnp.broadcast_to(r_emb[0:1], (klen - r, n_head, d_head)), r_emb], axis=0)
        r_bias = jnp.concatenate(
            [jnp.broadcast_to(r_bias[0:1], (klen - r, n_head)), r_bias], axis=0)
    else:
        r_emb = r_emb[-klen:]
        r_bias = r_bias[-klen:]

    # Host-side prep (zero kernel cost): transpose once, fold scales, bf16 operands,
    # head-major relative tables, fused QKV weight.
    wqkv_p = jnp.concatenate([w_qs.T * attn_scale, w_ks.T, w_vs.T],
                             axis=1).astype(jnp.bfloat16)                   # (D, 3*hd)
    wo_hm = (w_o.T * scale).reshape(n_head, d_head, d_model).astype(jnp.bfloat16)
    rwb_p = (r_w_bias * attn_scale).reshape(n_head, 1, d_head).astype(jnp.bfloat16)
    remb_p = jnp.transpose(r_emb, (1, 0, 2)).astype(jnp.bfloat16)           # (H, L, dh)
    rbias_p = (r_bias.T * attn_scale).reshape(n_head, 1, klen).astype(jnp.float32)
    gamma2 = ln_gamma.reshape(1, d_model).astype(jnp.float32)
    beta2 = ln_beta.reshape(1, d_model).astype(jnp.float32)

    # TODO(synk): callers that already hold batch-major activations can skip this
    # round trip; kept here to preserve the module's time-major interface.
    x_bmaj = jnp.transpose(q, (1, 0, 2))                  # (B, L, D)

    kernel = functools.partial(_rel_attn_kernel, n_head=n_head, d_head=d_head)

    out_bmaj = pl.pallas_call(
        kernel,
        out_shape=jax.ShapeDtypeStruct((bsz, qlen, d_model), q.dtype),
        grid_spec=pltpu.PrefetchScalarGridSpec(
            num_scalar_prefetch=0,
            grid=(bsz,),
            in_specs=[
                pl.BlockSpec((1, qlen, d_model), lambda b: (b, 0, 0)),       # x
                pl.BlockSpec((d_model, 3 * hd), lambda b: (0, 0)),           # [Wq|Wk|Wv]
                pl.BlockSpec((n_head, d_head, d_model), lambda b: (0, 0, 0)),  # Wo head-major
                pl.BlockSpec((1, d_model), lambda b: (0, 0)),                # LN gamma
                pl.BlockSpec((1, d_model), lambda b: (0, 0)),                # LN beta
                pl.BlockSpec((n_head, 1, d_head), lambda b: (0, 0, 0)),      # r_w_bias (scaled)
                pl.BlockSpec((n_head, klen, d_head), lambda b: (0, 0, 0)),   # r_emb head-major
                pl.BlockSpec((n_head, 1, klen), lambda b: (0, 0, 0)),        # r_bias (scaled)
            ],
            out_specs=pl.BlockSpec((1, qlen, d_model), lambda b: (b, 0, 0)),
        ),
        compiler_params=pltpu.CompilerParams(
            dimension_semantics=("parallel",),
            vmem_limit_bytes=64 * 1024 * 1024,            # raise v5e/v6e scoped default
        ),
    )(x_bmaj, wqkv_p, wo_hm, gamma2, beta2, rwb_p, remb_p, rbias_p)

    return jnp.transpose(out_bmaj, (1, 0, 2))             # back to (qlen, bsz, d_model)


# ----------------------------- pure-JAX reference -----------------------------

def _rel_shift_ref(x):
    qlen, klen = x.shape[0], x.shape[1]
    zero_pad = jnp.zeros((qlen, 1) + x.shape[2:], x.dtype)
    x_padded = jnp.concatenate([zero_pad, x], axis=1)
    x_padded = x_padded.reshape((klen + 1, qlen) + x.shape[2:])
    return x_padded[1:].reshape(x.shape)


def _reference(q, r_emb, r_w_bias, r_bias, w_qs, w_ks, w_vs, w_o, gamma, beta,
               n_head, d_head, scale=1.0):
    qlen, bsz, d_model = q.shape
    residual = q
    mu = jnp.mean(q, -1, keepdims=True)
    var = jnp.mean((q - mu) ** 2, -1, keepdims=True)
    xn = (q - mu) / jnp.sqrt(var + 1e-5) * gamma + beta
    hq = (xn @ w_qs.T).reshape(qlen, bsz, n_head, d_head)
    hk = (xn @ w_ks.T).reshape(qlen, bsz, n_head, d_head)
    hv = (xn @ w_vs.T).reshape(qlen, bsz, n_head, d_head)
    klen = qlen
    r = r_emb.shape[0]
    if klen > r:
        r_emb = jnp.concatenate(
            [jnp.broadcast_to(r_emb[0:1], (klen - r, n_head, d_head)), r_emb], 0)
        r_bias = jnp.concatenate(
            [jnp.broadcast_to(r_bias[0:1], (klen - r, n_head)), r_bias], 0)
    else:
        r_emb = r_emb[-klen:]
        r_bias = r_bias[-klen:]
    rw_head_q = hq + r_w_bias[None]
    AC = jnp.einsum('ibnd,jbnd->ijbn', rw_head_q, hk)
    B_ = jnp.einsum('ibnd,jnd->ijbn', hq, r_emb)
    D_ = r_bias[None, :, None]
    BD = _rel_shift_ref(B_ + D_)
    attn_score = (AC + BD) * (1.0 / d_head ** 0.5)
    attn_prob = jax.nn.softmax(attn_score, axis=1)
    attn_vec = jnp.einsum('ijbn,jbnd->ibnd', attn_prob, hv)
    attn_vec = attn_vec.reshape(qlen, bsz, n_head * d_head)
    out = attn_vec @ w_o.T
    return out * scale + residual


if __name__ == "__main__":
    qlen, bsz = 128, 2
    n_head, d_head = 4, 8
    d_model = 32

    key = jax.random.PRNGKey(0)
    ks = jax.random.split(key, 10)

    q = jax.random.normal(ks[0], (qlen, bsz, d_model), jnp.float32)
    bound = 1.0 / (d_model ** 0.5)
    w_qs = jax.random.uniform(ks[1], (n_head * d_head, d_model), jnp.float32, -bound, bound)
    w_ks = jax.random.uniform(ks[2], (n_head * d_head, d_model), jnp.float32, -bound, bound)
    w_vs = jax.random.uniform(ks[3], (n_head * d_head, d_model), jnp.float32, -bound, bound)
    bound_o = 1.0 / ((n_head * d_head) ** 0.5)
    w_o = jax.random.uniform(ks[4], (d_model, n_head * d_head), jnp.float32, -bound_o, bound_o)
    r_emb = 0.1 * jax.random.normal(ks[5], (qlen, n_head, d_head), jnp.float32)
    r_w_bias = 0.1 * jax.random.normal(ks[6], (n_head, d_head), jnp.float32)
    r_bias = 0.1 * jax.random.normal(ks[7], (qlen, n_head), jnp.float32)
    gamma = 1.0 + 0.1 * jax.random.normal(ks[8], (d_model,), jnp.float32)
    beta = 0.1 * jax.random.normal(ks[9], (d_model,), jnp.float32)

    out = rel_learnable_multi_head_attn(
        q, r_emb, r_w_bias, r_bias, w_qs, w_ks, w_vs, w_o, gamma, beta,
        n_head=n_head, d_head=d_head, scale=1.0)
    out = jax.block_until_ready(out)

    ref = _reference(q, r_emb, r_w_bias, r_bias, w_qs, w_ks, w_vs, w_o, gamma, beta,
                     n_head, d_head, 1.0)
    assert out.shape == (qlen, bsz, d_model)
    # bf16 matmul operands + approx reciprocal vs. an f32 reference -> loosened tolerance.
    assert jnp.allclose(out, ref, atol=5e-2, rtol=5e-2), float(jnp.max(jnp.abs(out - ref)))

    print("KERNEL_OK")
</pallas_src>

<mosaic_0001>
module attributes {stable_mosaic.version = 11 : i64} {
  func.func @_rel_attn_kernel(%arg0: i32, %arg1: memref<1x128x32xf32, #tpu.memory_space<vmem>>, %arg2: memref<32x96xbf16, #tpu.memory_space<vmem>>, %arg3: memref<4x8x32xbf16, #tpu.memory_space<vmem>>, %arg4: memref<1x32xf32, #tpu.memory_space<vmem>>, %arg5: memref<1x32xf32, #tpu.memory_space<vmem>>, %arg6: memref<4x1x8xbf16, #tpu.memory_space<vmem>>, %arg7: memref<4x128x8xbf16, #tpu.memory_space<vmem>>, %arg8: memref<4x1x128xf32, #tpu.memory_space<vmem>>, %arg9: memref<1x128x32xf32, #tpu.memory_space<vmem>>) attributes {dimension_semantics = [#tpu.dimension_semantics<parallel>], iteration_bounds = array<i64: 2>, scalar_prefetch = 0 : i64, scratch_operands = 0 : i64, tpu.core_type = #tpu.core_type<tc>, window_params = [{transform_indices = @transform_0, window_bounds = array<i64: 1, 128, 32>}, {pipeline_mode = #tpu.pipeline_mode<synchronous>, transform_indices = @transform_1, window_bounds = array<i64: 32, 96>}, {pipeline_mode = #tpu.pipeline_mode<synchronous>, transform_indices = @transform_2, window_bounds = array<i64: 4, 8, 32>}, {pipeline_mode = #tpu.pipeline_mode<synchronous>, transform_indices = @transform_3, window_bounds = array<i64: 1, 32>}, {pipeline_mode = #tpu.pipeline_mode<synchronous>, transform_indices = @transform_4, window_bounds = array<i64: 1, 32>}, {pipeline_mode = #tpu.pipeline_mode<synchronous>, transform_indices = @transform_5, window_bounds = array<i64: 4, 1, 8>}, {pipeline_mode = #tpu.pipeline_mode<synchronous>, transform_indices = @transform_6, window_bounds = array<i64: 4, 128, 8>}, {pipeline_mode = #tpu.pipeline_mode<synchronous>, transform_indices = @transform_7, window_bounds = array<i64: 4, 1, 128>}, {transform_indices = @transform_8, window_bounds = array<i64: 1, 128, 32>}]} {
    %c0 = arith.constant 0 : index
    %c0_0 = arith.constant 0 : index
    %c0_1 = arith.constant 0 : index
    %0 = vector.load %arg1[%c0, %c0_0, %c0_1] : memref<1x128x32xf32, #tpu.memory_space<vmem>>, vector<1x128x32xf32>
    %1 = vector.shape_cast %0 : vector<1x128x32xf32> to vector<128x32xf32>
    %cst = arith.constant dense<0.000000e+00> : vector<128xf32>
    %2 = vector.multi_reduction <add>, %1, %cst [1] : vector<128x32xf32> to vector<128xf32>
    %3 = vector.shape_cast %2 : vector<128xf32> to vector<128x1xf32>
    %cst_2 = arith.constant 3.200000e+01 : f32
    %4 = vector.broadcast %cst_2 : f32 to vector<128x1xf32>
    %5 = arith.divf %3, %4 : vector<128x1xf32>
    %6 = vector.broadcast %5 : vector<128x1xf32> to vector<128x32xf32>
    %7 = arith.subf %1, %6 : vector<128x32xf32>
    %8 = arith.mulf %7, %7 : vector<128x32xf32>
    %cst_3 = arith.constant dense<0.000000e+00> : vector<128xf32>
    %9 = vector.multi_reduction <add>, %8, %cst_3 [1] : vector<128x32xf32> to vector<128xf32>
    %10 = vector.shape_cast %9 : vector<128xf32> to vector<128x1xf32>
    %cst_4 = arith.constant 3.200000e+01 : f32
    %11 = vector.broadcast %cst_4 : f32 to vector<128x1xf32>
    %12 = arith.divf %10, %11 : vector<128x1xf32>
    %13 = vector.broadcast %5 : vector<128x1xf32> to vector<128x32xf32>
    %14 = arith.subf %1, %13 : vector<128x32xf32>
    %cst_5 = arith.constant 9.99999974E-6 : f32
    %15 = vector.broadcast %cst_5 : f32 to vector<128x1xf32>
    %16 = arith.addf %12, %15 : vector<128x1xf32>
    %17 = math.rsqrt %16 : vector<128x1xf32>
    %18 = vector.broadcast %17 : vector<128x1xf32> to vector<128x32xf32>
    %19 = arith.mulf %14, %18 : vector<128x32xf32>
    %c0_6 = arith.constant 0 : index
    %c0_7 = arith.constant 0 : index
    %20 = vector.load %arg4[%c0_6, %c0_7] : memref<1x32xf32, #tpu.memory_space<vmem>>, vector<1x32xf32>
    %21 = vector.shape_cast %20 : vector<1x32xf32> to vector<32xf32>
    %22 = vector.shape_cast %21 : vector<32xf32> to vector<1x32xf32>
    %23 = vector.broadcast %22 : vector<1x32xf32> to vector<128x32xf32>
    %24 = arith.mulf %19, %23 : vector<128x32xf32>
    %c0_8 = arith.constant 0 : index
    %c0_9 = arith.constant 0 : index
    %25 = vector.load %arg5[%c0_8, %c0_9] : memref<1x32xf32, #tpu.memory_space<vmem>>, vector<1x32xf32>
    %26 = vector.shape_cast %25 : vector<1x32xf32> to vector<32xf32>
    %27 = vector.shape_cast %26 : vector<32xf32> to vector<1x32xf32>
    %28 = vector.broadcast %27 : vector<1x32xf32> to vector<128x32xf32>
    %29 = arith.addf %24, %28 : vector<128x32xf32>
    %30 = arith.truncf %29 : vector<128x32xf32> to vector<128x32xbf16>
    %c0_10 = arith.constant 0 : index
    %c0_11 = arith.constant 0 : index
    %31 = vector.load %arg2[%c0_10, %c0_11] : memref<32x96xbf16, #tpu.memory_space<vmem>>, vector<32x96xbf16>
    %cst_12 = arith.constant dense<0.000000e+00> : vector<128x96xf32>
    %32 = tpu.matmul %30, %31, %cst_12 {dimension_numbers = #tpu.dot_dimension_numbers<[1], [0], [0], [1], [0, 0, 1, 1], [], []>} : vector<128x32xbf16>, vector<32x96xbf16>, vector<128x96xf32> -> vector<128x96xf32>
    %33 = arith.truncf %32 : vector<128x96xf32> to vector<128x96xbf16>
    %34 = vector.extract_strided_slice %33 {offsets = [0, 0], sizes = [128, 8], strides = [1, 1]} : vector<128x96xbf16> to vector<128x8xbf16>
    %35 = vector.extract_strided_slice %33 {offsets = [0, 8], sizes = [128, 8], strides = [1, 1]} : vector<128x96xbf16> to vector<128x8xbf16>
    %36 = vector.extract_strided_slice %33 {offsets = [0, 16], sizes = [128, 8], strides = [1, 1]} : vector<128x96xbf16> to vector<128x8xbf16>
    %37 = vector.extract_strided_slice %33 {offsets = [0, 24], sizes = [128, 8], strides = [1, 1]} : vector<128x96xbf16> to vector<128x8xbf16>
    %38 = vector.shape_cast %34 : vector<128x8xbf16> to vector<1x128x8xbf16>
    %39 = vector.shape_cast %35 : vector<128x8xbf16> to vector<1x128x8xbf16>
    %40 = vector.shape_cast %36 : vector<128x8xbf16> to vector<1x128x8xbf16>
    %41 = vector.shape_cast %37 : vector<128x8xbf16> to vector<1x128x8xbf16>
    %42 = tpu.concatenate %38, %39, %40, %41 in 0 : vector<1x128x8xbf16>, vector<1x128x8xbf16>, vector<1x128x8xbf16>, vector<1x128x8xbf16> -> vector<4x128x8xbf16>
    %43 = vector.extract_strided_slice %33 {offsets = [0, 32], sizes = [128, 8], strides = [1, 1]} : vector<128x96xbf16> to vector<128x8xbf16>
    %44 = vector.extract_strided_slice %33 {offsets = [0, 40], sizes = [128, 8], strides = [1, 1]} : vector<128x96xbf16> to vector<128x8xbf16>
    %45 = vector.extract_strided_slice %33 {offsets = [0, 48], sizes = [128, 8], strides = [1, 1]} : vector<128x96xbf16> to vector<128x8xbf16>
    %46 = vector.extract_strided_slice %33 {offsets = [0, 56], sizes = [128, 8], strides = [1, 1]} : vector<128x96xbf16> to vector<128x8xbf16>
    %47 = vector.shape_cast %43 : vector<128x8xbf16> to vector<1x128x8xbf16>
    %48 = vector.shape_cast %44 : vector<128x8xbf16> to vector<1x128x8xbf16>
    %49 = vector.shape_cast %45 : vector<128x8xbf16> to vector<1x128x8xbf16>
    %50 = vector.shape_cast %46 : vector<128x8xbf16> to vector<1x128x8xbf16>
    %51 = tpu.concatenate %47, %48, %49, %50 in 0 : vector<1x128x8xbf16>, vector<1x128x8xbf16>, vector<1x128x8xbf16>, vector<1x128x8xbf16> -> vector<4x128x8xbf16>
    %52 = vector.extract_strided_slice %33 {offsets = [0, 64], sizes = [128, 8], strides = [1, 1]} : vector<128x96xbf16> to vector<128x8xbf16>
    %53 = vector.extract_strided_slice %33 {offsets = [0, 72], sizes = [128, 8], strides = [1, 1]} : vector<128x96xbf16> to vector<128x8xbf16>
    %54 = vector.extract_strided_slice %33 {offsets = [0, 80], sizes = [128, 8], strides = [1, 1]} : vector<128x96xbf16> to vector<128x8xbf16>
    %55 = vector.extract_strided_slice %33 {offsets = [0, 88], sizes = [128, 8], strides = [1, 1]} : vector<128x96xbf16> to vector<128x8xbf16>
    %56 = vector.shape_cast %52 : vector<128x8xbf16> to vector<1x128x8xbf16>
    %57 = vector.shape_cast %53 : vector<128x8xbf16> to vector<1x128x8xbf16>
    %58 = vector.shape_cast %54 : vector<128x8xbf16> to vector<1x128x8xbf16>
    %59 = vector.shape_cast %55 : vector<128x8xbf16> to vector<1x128x8xbf16>
    %60 = tpu.concatenate %56, %57, %58, %59 in 0 : vector<1x128x8xbf16>, vector<1x128x8xbf16>, vector<1x128x8xbf16>, vector<1x128x8xbf16> -> vector<4x128x8xbf16>
    %c0_13 = arith.constant 0 : index
    %c0_14 = arith.constant 0 : index
    %c0_15 = arith.constant 0 : index
    %61 = vector.load %arg6[%c0_13, %c0_14, %c0_15] : memref<4x1x8xbf16, #tpu.memory_space<vmem>>, vector<4x1x8xbf16>
    %62 = tpu.concatenate %42, %61 in 1 : vector<4x128x8xbf16>, vector<4x1x8xbf16> -> vector<4x129x8xbf16>
    %c0_16 = arith.constant 0 : index
    %c0_17 = arith.constant 0 : index
    %c0_18 = arith.constant 0 : index
    %63 = vector.load %arg7[%c0_16, %c0_17, %c0_18] : memref<4x128x8xbf16, #tpu.memory_space<vmem>>, vector<4x128x8xbf16>
    %64 = tpu.concatenate %51, %63 in 1 : vector<4x128x8xbf16>, vector<4x128x8xbf16> -> vector<4x256x8xbf16>
    "tpu.trace_start"() <{level = 10 : i32, message = "hqd,hkd->hqk"}> : () -> ()
    %cst_19 = arith.constant dense<0.000000e+00> : vector<4x129x256xf32>
    %65 = tpu.matmul %62, %64, %cst_19 {dimension_numbers = #tpu.dot_dimension_numbers<[2], [2], [1], [1], [0, 0, 0, 1, 1, 1], [0], [0]>} : vector<4x129x8xbf16>, vector<4x256x8xbf16>, vector<4x129x256xf32> -> vector<4x129x256xf32>
    "tpu.trace_stop"() : () -> ()
    %66 = vector.extract_strided_slice %65 {offsets = [0, 0, 0], sizes = [4, 128, 128], strides = [1, 1, 1]} : vector<4x129x256xf32> to vector<4x128x128xf32>
    %67 = vector.extract_strided_slice %65 {offsets = [0, 128, 0], sizes = [4, 1, 128], strides = [1, 1, 1]} : vector<4x129x256xf32> to vector<4x1x128xf32>
    %68 = vector.broadcast %67 : vector<4x1x128xf32> to vector<4x128x128xf32>
    %69 = arith.addf %66, %68 : vector<4x128x128xf32>
    %70 = vector.extract_strided_slice %65 {offsets = [0, 0, 128], sizes = [4, 128, 128], strides = [1, 1, 1]} : vector<4x129x256xf32> to vector<4x128x128xf32>
    %c0_20 = arith.constant 0 : index
    %c0_21 = arith.constant 0 : index
    %c0_22 = arith.constant 0 : index
    %71 = vector.load %arg8[%c0_20, %c0_21, %c0_22] : memref<4x1x128xf32, #tpu.memory_space<vmem>>, vector<4x1x128xf32>
    %72 = vector.broadcast %71 : vector<4x1x128xf32> to vector<4x128x128xf32>
    %73 = arith.addf %70, %72 : vector<4x128x128xf32>
    %c1_i32 = arith.constant 1 : i32
    %74 = tpu.dynamic_rotate %73 by %c1_i32 dim 2 : vector<4x128x128xf32>, i32 -> vector<4x128x128xf32>
    %c0_i32 = arith.constant 0 : i32
    %75 = tpu.dynamic_rotate %74 by %c0_i32 dim 2 {stride = 1 : si32, stride_dimension = 1 : si32} : vector<4x128x128xf32>, i32 -> vector<4x128x128xf32>
    %76 = vector.extract_strided_slice %75 {offsets = [0, 1, 0], sizes = [4, 127, 128], strides = [1, 1, 1]} : vector<4x128x128xf32> to vector<4x127x128xf32>
    %cst_23 = arith.constant 0.000000e+00 : f32
    %77 = vector.broadcast %cst_23 : f32 to vector<4x1x128xf32>
    %78 = tpu.concatenate %76, %77 in 1 : vector<4x127x128xf32>, vector<4x1x128xf32> -> vector<4x128x128xf32>
    %79 = tpu.iota {dimensions = array<i32: 1>} : vector<4x128x128xi32>
    %80 = tpu.iota {dimensions = array<i32: 2>} : vector<4x128x128xi32>
    %81 = arith.cmpi sle, %80, %79 : vector<4x128x128xi32>
    %c1_i32_24 = arith.constant 1 : i32
    %82 = vector.broadcast %c1_i32_24 : i32 to vector<4x128x128xi32>
    %83 = arith.addi %79, %82 : vector<4x128x128xi32>
    %84 = arith.cmpi eq, %80, %83 : vector<4x128x128xi32>
    %cst_25 = arith.constant 0.000000e+00 : f32
    %85 = vector.broadcast %cst_25 : f32 to vector<4x128x128xf32>
    %86 = arith.select %84, %85, %78 : vector<4x128x128xi1>, vector<4x128x128xf32>
    %87 = arith.select %81, %75, %86 : vector<4x128x128xi1>, vector<4x128x128xf32>
    %88 = arith.addf %69, %87 : vector<4x128x128xf32>
    %cst_26 = arith.constant dense<0xFF800000> : vector<4x128xf32>
    %89 = vector.multi_reduction <maximumf>, %88, %cst_26 [2] : vector<4x128x128xf32> to vector<4x128xf32>
    %90 = vector.shape_cast %89 : vector<4x128xf32> to vector<4x128x1xf32>
    %91 = vector.broadcast %90 : vector<4x128x1xf32> to vector<4x128x128xf32>
    %92 = arith.subf %88, %91 : vector<4x128x128xf32>
    %93 = math.exp %92 : vector<4x128x128xf32>
    %cst_27 = arith.constant dense<0.000000e+00> : vector<4x128xf32>
    %94 = vector.multi_reduction <add>, %93, %cst_27 [2] : vector<4x128x128xf32> to vector<4x128xf32>
    %95 = vector.shape_cast %94 : vector<4x128xf32> to vector<4x128x1xf32>
    %96 = tpu.reciprocal %95 {approx = true} : vector<4x128x1xf32> -> vector<4x128x1xf32>
    %97 = vector.broadcast %96 : vector<4x128x1xf32> to vector<4x128x128xf32>
    %98 = arith.mulf %93, %97 : vector<4x128x128xf32>
    %99 = arith.truncf %98 : vector<4x128x128xf32> to vector<4x128x128xbf16>
    "tpu.trace_start"() <{level = 10 : i32, message = "hqk,hkd->hqd"}> : () -> ()
    %cst_28 = arith.constant dense<0.000000e+00> : vector<4x128x8xf32>
    %100 = tpu.matmul %99, %60, %cst_28 {dimension_numbers = #tpu.dot_dimension_numbers<[2], [1], [1], [2], [0, 0, 0, 1, 1, 2], [0], [0]>} : vector<4x128x128xbf16>, vector<4x128x8xbf16>, vector<4x128x8xf32> -> vector<4x128x8xf32>
    "tpu.trace_stop"() : () -> ()
    %101 = arith.truncf %100 : vector<4x128x8xf32> to vector<4x128x8xbf16>
    %c0_29 = arith.constant 0 : index
    %c0_30 = arith.constant 0 : index
    %c0_31 = arith.constant 0 : index
    %102 = vector.load %arg3[%c0_29, %c0_30, %c0_31] : memref<4x8x32xbf16, #tpu.memory_space<vmem>>, vector<4x8x32xbf16>
    "tpu.trace_start"() <{level = 10 : i32, message = "hqd,hdm->hqm"}> : () -> ()
    %cst_32 = arith.constant dense<0.000000e+00> : vector<4x128x32xf32>
    %103 = tpu.matmul %101, %102, %cst_32 {dimension_numbers = #tpu.dot_dimension_numbers<[2], [1], [1], [2], [0, 0, 0, 1, 1, 2], [0], [0]>} : vector<4x128x8xbf16>, vector<4x8x32xbf16>, vector<4x128x32xf32> -> vector<4x128x32xf32>
    "tpu.trace_stop"() : () -> ()
    %cst_33 = arith.constant dense<0.000000e+00> : vector<128x32xf32>
    %104 = vector.multi_reduction <add>, %103, %cst_33 [0] : vector<4x128x32xf32> to vector<128x32xf32>
    %105 = arith.addf %104, %1 : vector<128x32xf32>
    %c0_34 = arith.constant 0 : index
    %c0_35 = arith.constant 0 : index
    %c0_36 = arith.constant 0 : index
    %106 = vector.load %arg9[%c0_34, %c0_35, %c0_36] : memref<1x128x32xf32, #tpu.memory_space<vmem>>, vector<1x128x32xf32>
    %107 = vector.shape_cast %106 : vector<1x128x32xf32> to vector<128x32xf32>
    %108 = vector.shape_cast %105 : vector<128x32xf32> to vector<1x128x32xf32>
    tpu.vector_store %arg9[%c0_34, %c0_35, %c0_36], %108 {strides = array<i32>} : memref<1x128x32xf32, #tpu.memory_space<vmem>>, vector<1x128x32xf32>,
    return
  }
  func.func @transform_0(%arg0: i32) -> (i32, i32, i32) {
    %c0_i32 = arith.constant 0 : i32
    %c0_i32_0 = arith.constant 0 : i32
    %c0_i32_1 = arith.constant 0 : i32
    return %arg0, %c0_i32, %c0_i32_0 : i32, i32, i32
  }
  func.func @transform_1(%arg0: i32) -> (i32, i32) {
    %c0_i32 = arith.constant 0 : i32
    %c0_i32_0 = arith.constant 0 : i32
    %c0_i32_1 = arith.constant 0 : i32
    return %c0_i32, %c0_i32_0 : i32, i32
  }
  func.func @transform_2(%arg0: i32) -> (i32, i32, i32) {
    %c0_i32 = arith.constant 0 : i32
    %c0_i32_0 = arith.constant 0 : i32
    %c0_i32_1 = arith.constant 0 : i32
    %c0_i32_2 = arith.constant 0 : i32
    return %c0_i32, %c0_i32_0, %c0_i32_1 : i32, i32, i32
  }
  func.func @transform_3(%arg0: i32) -> (i32, i32) {
    %c0_i32 = arith.constant 0 : i32
    %c0_i32_0 = arith.constant 0 : i32
    %c0_i32_1 = arith.constant 0 : i32
    return %c0_i32, %c0_i32_0 : i32, i32
  }
  func.func @transform_4(%arg0: i32) -> (i32, i32) {
    %c0_i32 = arith.constant 0 : i32
    %c0_i32_0 = arith.constant 0 : i32
    %c0_i32_1 = arith.constant 0 : i32
    return %c0_i32, %c0_i32_0 : i32, i32
  }
  func.func @transform_5(%arg0: i32) -> (i32, i32, i32) {
    %c0_i32 = arith.constant 0 : i32
    %c0_i32_0 = arith.constant 0 : i32
    %c0_i32_1 = arith.constant 0 : i32
    %c0_i32_2 = arith.constant 0 : i32
    return %c0_i32, %c0_i32_0, %c0_i32_1 : i32, i32, i32
  }
  func.func @transform_6(%arg0: i32) -> (i32, i32, i32) {
    %c0_i32 = arith.constant 0 : i32
    %c0_i32_0 = arith.constant 0 : i32
    %c0_i32_1 = arith.constant 0 : i32
    %c0_i32_2 = arith.constant 0 : i32
    return %c0_i32, %c0_i32_0, %c0_i32_1 : i32, i32, i32
  }
  func.func @transform_7(%arg0: i32) -> (i32, i32, i32) {
    %c0_i32 = arith.constant 0 : i32
    %c0_i32_0 = arith.constant 0 : i32
    %c0_i32_1 = arith.constant 0 : i32
    %c0_i32_2 = arith.constant 0 : i32
    return %c0_i32, %c0_i32_0, %c0_i32_1 : i32, i32, i32
  }
  func.func @transform_8(%arg0: i32) -> (i32, i32, i32) {
    %c0_i32 = arith.constant 0 : i32
    %c0_i32_0 = arith.constant 0 : i32
    %c0_i32_1 = arith.constant 0 : i32
    return %arg0, %c0_i32, %c0_i32_0 : i32, i32, i32
  }
}

</mosaic_0001>

<llo_original>
// kernel: tpu_custom_call.1
$region0: #{tpu_custom_call.1}
  #allocation0 [shape = 'u32[]', space=smem, size = 0x4, offset = 0x4, fixed_abs, tag = 'smem constant byte address 0x4 - core index']
  #allocation1 [shape = 'u32[144,128]{1,0:T(1,128)}', space=vmem, size = 0x12000, scoped, tag = 'internal scratch']
  %s0 = inlined_call_operand.hbm [shape: f32[2,128,32], index: 0, kind: input, shape index: {}]
  %s1 = inlined_call_operand.hbm [shape: bf16[32,96], index: 1, kind: input, shape index: {}]
  %s2 = inlined_call_operand.hbm [shape: bf16[4,8,32], index: 2, kind: input, shape index: {}]
  %s3 = inlined_call_operand.hbm [shape: f32[1,32], index: 3, kind: input, shape index: {}]
  %s4 = inlined_call_operand.hbm [shape: f32[1,32], index: 4, kind: input, shape index: {}]
  %s5 = inlined_call_operand.hbm [shape: bf16[4,1,8], index: 5, kind: input, shape index: {}]
  %s6 = inlined_call_operand.hbm [shape: bf16[4,128,8], index: 6, kind: input, shape index: {}]
  %s7 = inlined_call_operand.hbm [shape: f32[4,1,128], index: 7, kind: input, shape index: {}]
  %s8 = inlined_call_operand.hbm [shape: f32[2,128,32], index: 8, kind: output, shape index: {}]
  %s9 = sld [smem:[#allocation0]]
  $region97: #{tpu_custom_call.1} parent=0
    _
  %s11 = ssub.s32 1, %s9
  %s12 = scalar_select 0, %s11, %s9
  $region1: #{tpu_custom_call.1} parent=0
    #allocation2 [shape = 'u8[131072]{0}', space=vmem, size = 0x20000, scoped, tag = 'input window, operand 0']
    #allocation3 [shape = 's32[2]{0}', space=sflag, size = 0x8, scoped, tag = 'scoped memory for tpu_custom_call.1']
    #allocation4 [shape = 's32[2]{0}', space=sflag, size = 0x8, scoped, tag = 'scoped memory for tpu_custom_call.1']
    #allocation5 [shape = 'u8[8192]{0}', space=vmem, size = 0x2000, scoped, tag = 'input window, operand 1, single buffered']
    #allocation6 [shape = 's32[1]{0}', space=sflag, size = 0x4, scoped, tag = 'scoped memory for tpu_custom_call.1']
    #allocation7 [shape = 'u8[8192]{0}', space=vmem, size = 0x2000, scoped, tag = 'input window, operand 2, single buffered']
    #allocation8 [shape = 'u8[512]{0}', space=vmem, size = 0x400, scoped, tag = 'input window, operand 3, single buffered']
    #allocation9 [shape = 's32[1]{0}', space=sflag, size = 0x4, scoped, tag = 'scoped memory for tpu_custom_call.1']
    #allocation10 [shape = 'u8[512]{0}', space=vmem, size = 0x400, scoped, tag = 'input window, operand 4, single buffered']
    #allocation11 [shape = 'u8[2048]{0}', space=vmem, size = 0x800, scoped, tag = 'input window, operand 5, single buffered']
    #allocation12 [shape = 's32[1]{0}', space=sflag, size = 0x4, scoped, tag = 'scoped memory for tpu_custom_call.1']
    #allocation13 [shape = 'u8[131072]{0}', space=vmem, size = 0x20000, scoped, tag = 'input window, operand 6, single buffered']
    #allocation14 [shape = 'u8[2048]{0}', space=vmem, size = 0x800, scoped, tag = 'input window, operand 7, single buffered']
    #allocation15 [shape = 's32[1]{0}', space=sflag, size = 0x4, scoped, tag = 'scoped memory for tpu_custom_call.1']
    #allocation16 [shape = 'u8[131072]{0}', space=vmem, size = 0x20000, scoped, tag = 'output window, operand 0']
    %13 = vsyncpa [#allocation3], 0
    %s14 = scalar_lea.sflag [#allocation3], 1
    %15 = vsyncpa %s14, 0
    %16 = vsyncpa [#allocation6], 0
    %17 = vsyncpa [#allocation9], 0
    %18 = vsyncpa [#allocation12], 0
    %19 = vsyncpa [#allocation15], 0
    %20 = vsyncpa [#allocation4], 0
    %s21 = scalar_lea.sflag [#allocation4], 1
    %22 = vsyncpa %s21, 0
    loop: start=0, step=1, limit=4
    $region2: #{tpu_custom_call.1} parent=1 // loop_pre_header
      _
    $region3: #{tpu_custom_call.1} parent=1 // loop_header
      %s24 = sphi 0, %s28
      %p25 = scmp.ge.s32.totalorder %s24, 4
      %s34 = sphi 0, %s36
      %s37 = sphi 0, %s34
      %s38 = sphi 0, %s37
      %s54 = sphi 0, %s38
      %s58 = sphi 0, %s58
      %s60 = sphi 0, %s58
      %s61 = sphi 0, %s60
      %s75 = sphi 0, %s61
      %s79 = sphi 0, %s79
      %s81 = sphi 0, %s79
      %s82 = sphi 0, %s81
      %s96 = sphi 0, %s82
      %s100 = sphi 0, %s100
      %s102 = sphi 0, %s100
      %s103 = sphi 0, %s102
      %s117 = sphi 0, %s103
      %s121 = sphi 0, %s121
      %s123 = sphi 0, %s121
      %s124 = sphi 0, %s123
      %s138 = sphi 0, %s124
      %s142 = sphi 0, %s142
      %s144 = sphi 0, %s142
      %s145 = sphi 0, %s144
      %s159 = sphi 0, %s145
      %s163 = sphi 0, %s163
      %s165 = sphi 0, %s163
      %s166 = sphi 0, %s165
      %s180 = sphi 0, %s166
      %s184 = sphi 0, %s184
      %s186 = sphi 0, %s184
      %s187 = sphi 0, %s186
      %s201 = sphi 0, %s187
      %s207 = sphi 0, %s209
      %s210 = sphi 0, %s207
      %s211 = sphi 0, %s210
      %s227 = sphi 0, %s211
    $region4: #{tpu_custom_call.1} parent=1 // loop_header_branch
      %27 = sbr.rel (%p25) target = $region8
    $region5: #{tpu_custom_call.1} parent=1 // loop_body
      %s29 = ssub.s32 %s24, 1
      %s30 = ssub.s32 %s24, 2
      %s31 = sadd.s32 %s24, 1
      %s32 = ssub.s32 %s24, %s31
      %p33 = scmp.eq.s32.totalorder %s32, 0
      %s35 = sadd.s32 %s34, 1
      %s36 = scalar_select %p33, %s34, %s35
      %p39 = pneg %p33
      %p40 = scmp.eq.s32.totalorder %s24, 1
      %p41 = por %p39, %p40
      %p42 = scmp.ne.s32.totalorder %s34, %s37
      %p43 = scmp.eq.s32.totalorder %s24, 0
      %p44 = por %p42, %p43
      %p45 = scmp.ne.s32.totalorder %s34, %s37
      %p46 = scmp.eq.s32.totalorder %s29, 1
      %p47 = por %p45, %p46
      %p48 = scmp.ne.s32.totalorder %s37, %s38
      %p49 = scmp.eq.s32.totalorder %s29, 0
      %p50 = por %p48, %p49
      %p51 = scmp.ne.s32.totalorder %s37, %s38
      %p52 = scmp.eq.s32.totalorder %s30, 1
      %p53 = por %p51, %p52
      %p55 = scmp.ne.s32.totalorder %s38, %s54
      %p56 = scmp.eq.s32.totalorder %s30, 0
      %p57 = por %p55, %p56
      %s59 = sadd.s32 %s58, 1
      %p62 = scmp.eq.s32.totalorder %s24, 1
      %p63 = scmp.ne.s32.totalorder %s58, %s60
      %p64 = scmp.eq.s32.totalorder %s24, 0
      %p65 = por %p63, %p64
      %p66 = scmp.ne.s32.totalorder %s58, %s60
      %p67 = scmp.eq.s32.totalorder %s29, 1
      %p68 = por %p66, %p67
      %p69 = scmp.ne.s32.totalorder %s60, %s61
      %p70 = scmp.eq.s32.totalorder %s29, 0
      %p71 = por %p69, %p70
      %p72 = scmp.ne.s32.totalorder %s60, %s61
      %p73 = scmp.eq.s32.totalorder %s30, 1
      %p74 = por %p72, %p73
      %p76 = scmp.ne.s32.totalorder %s61, %s75
      %p77 = scmp.eq.s32.totalorder %s30, 0
      %p78 = por %p76, %p77
      %s80 = sadd.s32 %s79, 1
      %p83 = scmp.eq.s32.totalorder %s24, 1
      %p84 = scmp.ne.s32.totalorder %s79, %s81
      %p85 = scmp.eq.s32.totalorder %s24, 0
      %p86 = por %p84, %p85
      %p87 = scmp.ne.s32.totalorder %s79, %s81
      %p88 = scmp.eq.s32.totalorder %s29, 1
      %p89 = por %p87, %p88
      %p90 = scmp.ne.s32.totalorder %s81, %s82
      %p91 = scmp.eq.s32.totalorder %s29, 0
      %p92 = por %p90, %p91
      %p93 = scmp.ne.s32.totalorder %s81, %s82
      %p94 = scmp.eq.s32.totalorder %s30, 1
      %p95 = por %p93, %p94
      %p97 = scmp.ne.s32.totalorder %s82, %s96
      %p98 = scmp.eq.s32.totalorder %s30, 0
      %p99 = por %p97, %p98
      %s101 = sadd.s32 %s100, 1
      %p104 = scmp.eq.s32.totalorder %s24, 1
      %p105 = scmp.ne.s32.totalorder %s100, %s102
      %p106 = scmp.eq.s32.totalorder %s24, 0
      %p107 = por %p105, %p106
      %p108 = scmp.ne.s32.totalorder %s100, %s102
      %p109 = scmp.eq.s32.totalorder %s29, 1
      %p110 = por %p108, %p109
      %p111 = scmp.ne.s32.totalorder %s102, %s103
      %p112 = scmp.eq.s32.totalorder %s29, 0
      %p113 = por %p111, %p112
      %p114 = scmp.ne.s32.totalorder %s102, %s103
      %p115 = scmp.eq.s32.totalorder %s30, 1
      %p116 = por %p114, %p115
      %p118 = scmp.ne.s32.totalorder %s103, %s117
      %p119 = scmp.eq.s32.totalorder %s30, 0
      %p120 = por %p118, %p119
      %s122 = sadd.s32 %s121, 1
      %p125 = scmp.eq.s32.totalorder %s24, 1
      %p126 = scmp.ne.s32.totalorder %s121, %s123
      %p127 = scmp.eq.s32.totalorder %s24, 0
      %p128 = por %p126, %p127
      %p129 = scmp.ne.s32.totalorder %s121, %s123
      %p130 = scmp.eq.s32.totalorder %s29, 1
      %p131 = por %p129, %p130
      %p132 = scmp.ne.s32.totalorder %s123, %s124
      %p133 = scmp.eq.s32.totalorder %s29, 0
      %p134 = por %p132, %p133
      %p135 = scmp.ne.s32.totalorder %s123, %s124
      %p136 = scmp.eq.s32.totalorder %s30, 1
      %p137 = por %p135, %p136
      %p139 = scmp.ne.s32.totalorder %s124, %s138
      %p140 = scmp.eq.s32.totalorder %s30, 0
      %p141 = por %p139, %p140
      %s143 = sadd.s32 %s142, 1
      %p146 = scmp.eq.s32.totalorder %s24, 1
      %p147 = scmp.ne.s32.totalorder %s142, %s144
      %p148 = scmp.eq.s32.totalorder %s24, 0
      %p149 = por %p147, %p148
      %p150 = scmp.ne.s32.totalorder %s142, %s144
      %p151 = scmp.eq.s32.totalorder %s29, 1
      %p152 = por %p150, %p151
      %p153 = scmp.ne.s32.totalorder %s144, %s145
      %p154 = scmp.eq.s32.totalorder %s29, 0
      %p155 = por %p153, %p154
      %p156 = scmp.ne.s32.totalorder %s144, %s145
      %p157 = scmp.eq.s32.totalorder %s30, 1
      %p158 = por %p156, %p157
      %p160 = scmp.ne.s32.totalorder %s145, %s159
      %p161 = scmp.eq.s32.totalorder %s30, 0
      %p162 = por %p160, %p161
      %s164 = sadd.s32 %s163, 1
      %p167 = scmp.eq.s32.totalorder %s24, 1
      %p168 = scmp.ne.s32.totalorder %s163, %s165
      %p169 = scmp.eq.s32.totalorder %s24, 0
      %p170 = por %p168, %p169
      %p171 = scmp.ne.s32.totalorder %s163, %s165
      %p172 = scmp.eq.s32.totalorder %s29, 1
      %p173 = por %p171, %p172
      %p174 = scmp.ne.s32.totalorder %s165, %s166
      %p175 = scmp.eq.s32.totalorder %s29, 0
      %p176 = por %p174, %p175
      %p177 = scmp.ne.s32.totalorder %s165, %s166
      %p178 = scmp.eq.s32.totalorder %s30, 1
      %p179 = por %p177, %p178
      %p181 = scmp.ne.s32.totalorder %s166, %s180
      %p182 = scmp.eq.s32.totalorder %s30, 0
      %p183 = por %p181, %p182
      %s185 = sadd.s32 %s184, 1
      %p188 = scmp.eq.s32.totalorder %s24, 1
      %p189 = scmp.ne.s32.totalorder %s184, %s186
      %p190 = scmp.eq.s32.totalorder %s24, 0
      %p191 = por %p189, %p190
      %p192 = scmp.ne.s32.totalorder %s184, %s186
      %p193 = scmp.eq.s32.totalorder %s29, 1
      %p194 = por %p192, %p193
      %p195 = scmp.ne.s32.totalorder %s186, %s187
      %p196 = scmp.eq.s32.totalorder %s29, 0
      %p197 = por %p195, %p196
      %p198 = scmp.ne.s32.totalorder %s186, %s187
      %p199 = scmp.eq.s32.totalorder %s30, 1
      %p200 = por %p198, %p199
      %p202 = scmp.ne.s32.totalorder %s187, %s201
      %p203 = scmp.eq.s32.totalorder %s30, 0
      %p204 = por %p202, %p203
      %s205 = ssub.s32 %s24, %s31
      %p206 = scmp.eq.s32.totalorder %s205, 0
      %s208 = sadd.s32 %s207, 1
      %s209 = scalar_select %p206, %s207, %s208
      %p212 = pneg %p206
      %p213 = scmp.eq.s32.totalorder %s24, 1
      %p214 = por %p212, %p213
      %p215 = scmp.ne.s32.totalorder %s207, %s210
      %p216 = scmp.eq.s32.totalorder %s24, 0
      %p217 = por %p215, %p216
      %p218 = scmp.ne.s32.totalorder %s207, %s210
      %p219 = scmp.eq.s32.totalorder %s29, 1
      %p220 = por %p218, %p219
      %p221 = scmp.ne.s32.totalorder %s210, %s211
      %p222 = scmp.eq.s32.totalorder %s29, 0
      %p223 = por %p221, %p222
      %p224 = scmp.ne.s32.totalorder %s210, %s211
      %p225 = scmp.eq.s32.totalorder %s30, 1
      %p226 = por %p224, %p225
      %p228 = scmp.ne.s32.totalorder %s211, %s227
      %p229 = scmp.eq.s32.totalorder %s30, 0
      %p230 = por %p228, %p229
      %p231 = scmp.le.s32.totalorder 1, %s24
      %p232 = scmp.lt.s32.totalorder %s24, 3
      %p233 = pnand %p231, %p232
      %p234 = pneg %p233
      // Predicated region
      $region9: #{tpu_custom_call.1} parent=5 // pred_check
        _
      $region10: #{tpu_custom_call.1} parent=5 // pred_check_branch
        %236 = sbr.rel (%p233) target = $region12
      $region11: #{tpu_custom_call.1} parent=5 // pred_region
        %s237 = ssub.s32 %s24, 1
        // Predicated region
        $region13: #{tpu_custom_call.1} parent=11 // pred_check
          %p238 = pneg %p71
        $region14: #{tpu_custom_call.1} parent=11 // pred_check_branch
          %240 = sbr.rel (%p238) target = $region16
        $region15: #{tpu_custom_call.1} parent=11 // pred_region
          %s242 = ssub.s32 256, 256
          %243 = vsyncadd [#allocation6], %s242
          %s244 = sshll.u32 [#allocation5], 4
          %s245 = int_to_ptr.vmem [resolvable:$true] %s244
          %250 = dma.hbm_to_vmem [thread:$0]  %s1, 256, %s245, [#allocation6], 64, 64, 4
        $region16: #{tpu_custom_call.1} parent=11 // pred_fallthru
          _
        // Predicated region
        $region17: #{tpu_custom_call.1} parent=11 // pred_check
          %p251 = pneg %p92
        $region18: #{tpu_custom_call.1} parent=11 // pred_check_branch
          %253 = sbr.rel (%p251) target = $region20
        $region19: #{tpu_custom_call.1} parent=11 // pred_region
          %s255 = ssub.s32 256, 256
          %256 = vsyncadd [#allocation6], %s255
          %s257 = sshll.u32 [#allocation7], 4
          %s258 = int_to_ptr.vmem [resolvable:$true] %s257
          %263 = dma.hbm_to_vmem [thread:$0]  %s2, 256, %s258, [#allocation6], 64, 64, 4
        $region20: #{tpu_custom_call.1} parent=11 // pred_fallthru
          _
        // Predicated region
        $region21: #{tpu_custom_call.1} parent=11 // pred_check
          %p264 = pneg %p113
        $region22: #{tpu_custom_call.1} parent=11 // pred_check_branch
          %266 = sbr.rel (%p264) target = $region24
        $region23: #{tpu_custom_call.1} parent=11 // pred_region
          %s268 = ssub.s32 16, 16
          %269 = vsyncadd [#allocation9], %s268
          %s271 = sshll.u32 [#allocation8], 4
          %s272 = int_to_ptr.vmem [resolvable:$true] %s271
          %274 = dma.hbm_to_vmem [thread:$0]  %s3, 16, %s272, [#allocation9]
        $region24: #{tpu_custom_call.1} parent=11 // pred_fallthru
          _
        // Predicated region
        $region25: #{tpu_custom_call.1} parent=11 // pred_check
          %p275 = pneg %p134
        $region26: #{tpu_custom_call.1} parent=11 // pred_check_branch
          %277 = sbr.rel (%p275) target = $region28
        $region27: #{tpu_custom_call.1} parent=11 // pred_region
          %s279 = ssub.s32 16, 16
          %280 = vsyncadd [#allocation9], %s279
          %s282 = sshll.u32 [#allocation10], 4
          %s283 = int_to_ptr.vmem [resolvable:$true] %s282
          %285 = dma.hbm_to_vmem [thread:$0]  %s4, 16, %s283, [#allocation9]
        $region28: #{tpu_custom_call.1} parent=11 // pred_fallthru
          _
        // Predicated region
        $region29: #{tpu_custom_call.1} parent=11 // pred_check
          %p286 = pneg %p155
        $region30: #{tpu_custom_call.1} parent=11 // pred_check_branch
          %288 = sbr.rel (%p286) target = $region32
        $region31: #{tpu_custom_call.1} parent=11 // pred_region
          %s290 = ssub.s32 64, 64
          %291 = vsyncadd [#allocation12], %s290
          %s292 = sshll.u32 [#allocation11], 4
          %s293 = int_to_ptr.vmem [resolvable:$true] %s292
          %298 = dma.hbm_to_vmem [thread:$0]  %s5, 64, %s293, [#allocation12], 16, 16, 1
        $region32: #{tpu_custom_call.1} parent=11 // pred_fallthru
          _
        // Predicated region
        $region33: #{tpu_custom_call.1} parent=11 // pred_check
          %p299 = pneg %p176
        $region34: #{tpu_custom_call.1} parent=11 // pred_check_branch
          %301 = sbr.rel (%p299) target = $region36
        $region35: #{tpu_custom_call.1} parent=11 // pred_region
          %s303 = ssub.s32 4096, 4096
          %304 = vsyncadd [#allocation12], %s303
          %s305 = sshll.u32 [#allocation13], 4
          %s306 = int_to_ptr.vmem [resolvable:$true] %s305
          %311 = dma.hbm_to_vmem [thread:$0]  %s6, 4096, %s306, [#allocation12], 64, 64, 4
        $region36: #{tpu_custom_call.1} parent=11 // pred_fallthru
          _
        // Predicated region
        $region37: #{tpu_custom_call.1} parent=11 // pred_check
          %p312 = pneg %p197
        $region38: #{tpu_custom_call.1} parent=11 // pred_check_branch
          %314 = sbr.rel (%p312) target = $region40
        $region39: #{tpu_custom_call.1} parent=11 // pred_region
          %s316 = ssub.s32 64, 64
          %317 = vsyncadd [#allocation15], %s316
          %s318 = sshll.u32 [#allocation14], 4
          %s319 = int_to_ptr.vmem [resolvable:$true] %s318
          %324 = dma.hbm_to_vmem [thread:$0]  %s7, 64, %s319, [#allocation15], 16, 16, 1
        $region40: #{tpu_custom_call.1} parent=11 // pred_fallthru
          _
      $region12: #{tpu_custom_call.1} parent=5 // pred_fallthru
        _
      %p325 = scmp.lt.s32.totalorder %s24, 2
      // Predicated region
      $region41: #{tpu_custom_call.1} parent=5 // pred_check
        %p326 = pneg %p325
      $region42: #{tpu_custom_call.1} parent=5 // pred_check_branch
        %328 = sbr.rel (%p326) target = $region44
      $region43: #{tpu_custom_call.1} parent=5 // pred_region
        // Predicated region
        $region45: #{tpu_custom_call.1} parent=43 // pred_check
          %p329 = pneg %p44
        $region46: #{tpu_custom_call.1} parent=43 // pred_check_branch
          %331 = sbr.rel (%p329) target = $region48
        $region47: #{tpu_custom_call.1} parent=43 // pred_region
          %s332 = sand.u32 %s34, 1
          %s333 = scalar_lea.sflag [#allocation3], %s332
          %s334 = sand.u32 %s34, 1
          %s335 = smul.addr %s334, 128
          %s336 = scalar_lea.vmem [#allocation2], %s335
          %s338 = ssub.s32 2048, 2048
          %339 = vsyncadd %s333, %s338
          %s340 = smul.addr %s24, 16
          %s341 = smul.addr %s340, 128
          %s342 = scalar_lea.hbm %s0, %s341
          %s343 = sshll.u32 %s336, 4
          %s344 = int_to_ptr.vmem [resolvable:$true] %s343
          %349 = dma.hbm_to_vmem [thread:$0]  %s342, 2048, %s344, %s333, 128, 128, 8
        $region48: #{tpu_custom_call.1} parent=43 // pred_fallthru
          _
      $region44: #{tpu_custom_call.1} parent=5 // pred_fallthru
        _
      %p350 = scmp.le.s32.totalorder 1, %s24
      %p351 = scmp.lt.s32.totalorder %s24, 3
      %p352 = pnand %p350, %p351
      %p353 = pneg %p352
      // Predicated region
      $region49: #{tpu_custom_call.1} parent=5 // pred_check
        _
      $region50: #{tpu_custom_call.1} parent=5 // pred_check_branch
        %355 = sbr.rel (%p352) target = $region52
      $region51: #{tpu_custom_call.1} parent=5 // pred_region
        %s356 = ssub.s32 %s24, 1
        %s357 = sand.u32 %s37, 1
        %s358 = scalar_lea.sflag [#allocation3], %s357
        %s359 = sand.u32 %s37, 1
        %s360 = smul.addr %s359, 128
        %s361 = scalar_lea.vmem [#allocation2], %s360
        // Predicated region
        $region53: #{tpu_custom_call.1} parent=51 // pred_check
          %p362 = pneg %p50
        $region54: #{tpu_custom_call.1} parent=51 // pred_check_branch
          %364 = sbr.rel (%p362) target = $region56
        $region55: #{tpu_custom_call.1} parent=51 // pred_region
          %365 = dma.done %s358, 2048
        $region56: #{tpu_custom_call.1} parent=51 // pred_fallthru
          _
        // Predicated region
        $region57: #{tpu_custom_call.1} parent=51 // pred_check
          %p366 = pneg %p71
        $region58: #{tpu_custom_call.1} parent=51 // pred_check_branch
          %368 = sbr.rel (%p366) target = $region60
        $region59: #{tpu_custom_call.1} parent=51 // pred_region
          %369 = dma.done [#allocation6], 256
        $region60: #{tpu_custom_call.1} parent=51 // pred_fallthru
          _
        // Predicated region
        $region61: #{tpu_custom_call.1} parent=51 // pred_check
          %p370 = pneg %p92
        $region62: #{tpu_custom_call.1} parent=51 // pred_check_branch
          %372 = sbr.rel (%p370) target = $region64
        $region63: #{tpu_custom_call.1} parent=51 // pred_region
          %373 = dma.done [#allocation6], 256
        $region64: #{tpu_custom_call.1} parent=51 // pred_fallthru
          _
        // Predicated region
        $region65: #{tpu_custom_call.1} parent=51 // pred_check
          %p374 = pneg %p113
        $region66: #{tpu_custom_call.1} parent=51 // pred_check_branch
          %376 = sbr.rel (%p374) target = $region68
        $region67: #{tpu_custom_call.1} parent=51 // pred_region
          %377 = dma.done [#allocation9], 16
        $region68: #{tpu_custom_call.1} parent=51 // pred_fallthru
          _
        // Predicated region
        $region69: #{tpu_custom_call.1} parent=51 // pred_check
          %p378 = pneg %p134
        $region70: #{tpu_custom_call.1} parent=51 // pred_check_branch
          %380 = sbr.rel (%p378) target = $region72
        $region71: #{tpu_custom_call.1} parent=51 // pred_region
          %381 = dma.done [#allocation9], 16
        $region72: #{tpu_custom_call.1} parent=51 // pred_fallthru
          _
        // Predicated region
        $region73: #{tpu_custom_call.1} parent=51 // pred_check
          %p382 = pneg %p155
        $region74: #{tpu_custom_call.1} parent=51 // pred_check_branch
          %384 = sbr.rel (%p382) target = $region76
        $region75: #{tpu_custom_call.1} parent=51 // pred_region
          %385 = dma.done [#allocation12], 64
        $region76: #{tpu_custom_call.1} parent=51 // pred_fallthru
          _
        // Predicated region
        $region77: #{tpu_custom_call.1} parent=51 // pred_check
          %p386 = pneg %p176
        $region78: #{tpu_custom_call.1} parent=51 // pred_check_branch
          %388 = sbr.rel (%p386) target = $region80
        $region79: #{tpu_custom_call.1} parent=51 // pred_region
          %389 = dma.done [#allocation12], 4096
        $region80: #{tpu_custom_call.1} parent=51 // pred_fallthru
          _
        // Predicated region
        $region81: #{tpu_custom_call.1} parent=51 // pred_check
          %p390 = pneg %p197
        $region82: #{tpu_custom_call.1} parent=51 // pred_check_branch
          %392 = sbr.rel (%p390) target = $region84
        $region83: #{tpu_custom_call.1} parent=51 // pred_region
          %393 = dma.done [#allocation15], 64
        $region84: #{tpu_custom_call.1} parent=51 // pred_fallthru
          _
        %s394 = sand.u32 %s37, 1
        %s395 = scalar_lea.sflag [#allocation3], %s394
        %s396 = sand.u32 %s37, 1
        %s397 = smul.addr %s396, 128
        %s398 = scalar_lea.vmem [#allocation2], %s397
        %p399 = pneg %p50
        %p400 = pneg %p47
        %p401 = pneg %p71
        %p402 = pneg %p68
        %p403 = pneg %p92
        %p404 = pneg %p89
        %p405 = pneg %p113
        %p406 = pneg %p110
        %p407 = pneg %p134
        %p408 = pneg %p131
        %p409 = pneg %p155
        %p410 = pneg %p152
        %p411 = pneg %p176
        %p412 = pneg %p173
        %p413 = pneg %p197
        %p414 = pneg %p194
        %p415 = pneg %p223
        %p416 = pneg %p220
        %s417 = sand.u32 %s210, 1
        %s418 = scalar_lea.sflag [#allocation4], %s417
        %s419 = sand.u32 %s210, 1
        %s420 = smul.addr %s419, 128
        %s421 = scalar_lea.vmem [#allocation16], %s420
        %v423 = vld [vmem:[%s361] sm:$0xff]
        %v424 = vld [vmem:[%s361 + $0x8] sm:$0xff]
        %v425 = vld [vmem:[%s361 + $0x10] sm:$0xff]
        %v426 = vld [vmem:[%s361 + $0x18] sm:$0xff]
        %v427 = vld [vmem:[%s361 + $0x20] sm:$0xff]
        %v428 = vld [vmem:[%s361 + $0x28] sm:$0xff]
        %v429 = vld [vmem:[%s361 + $0x30] sm:$0xff]
        %v430 = vld [vmem:[%s361 + $0x38] sm:$0xff]
        %v431 = vld [vmem:[%s361 + $0x40] sm:$0xff]
        %v432 = vld [vmem:[%s361 + $0x48] sm:$0xff]
        %v433 = vld [vmem:[%s361 + $0x50] sm:$0xff]
        %v434 = vld [vmem:[%s361 + $0x58] sm:$0xff]
        %v435 = vld [vmem:[%s361 + $0x60] sm:$0xff]
        %v436 = vld [vmem:[%s361 + $0x68] sm:$0xff]
        %v437 = vld [vmem:[%s361 + $0x70] sm:$0xff]
        %v438 = vld [vmem:[%s361 + $0x78] sm:$0xff]
        %vm439 = vcmask 261120
        %v440 = vsel %vm439, %v423, 0.0
        %441 = vadd.xlane.f32.xlu0 %v440
        %v442 = vpop.xlane.xlu0 %441
        %v443 = vsel %vm439, %v424, 0.0
        %444 = vadd.xlane.f32.xlu0 %v443
        %v445 = vpop.xlane.xlu0 %444
        %v446 = vsel %vm439, %v425, 0.0
        %447 = vadd.xlane.f32.xlu0 %v446
        %v448 = vpop.xlane.xlu0 %447
        %v449 = vsel %vm439, %v426, 0.0
        %450 = vadd.xlane.f32.xlu0 %v449
        %v451 = vpop.xlane.xlu0 %450
        %v452 = vsel %vm439, %v427, 0.0
        %453 = vadd.xlane.f32.xlu0 %v452
        %v454 = vpop.xlane.xlu0 %453
        %v455 = vsel %vm439, %v428, 0.0
        %456 = vadd.xlane.f32.xlu0 %v455
        %v457 = vpop.xlane.xlu0 %456
        %v458 = vsel %vm439, %v429, 0.0
        %459 = vadd.xlane.f32.xlu0 %v458
        %v460 = vpop.xlane.xlu0 %459
        %v461 = vsel %vm439, %v430, 0.0
        %462 = vadd.xlane.f32.xlu0 %v461
        %v463 = vpop.xlane.xlu0 %462
        %v464 = vsel %vm439, %v431, 0.0
        %465 = vadd.xlane.f32.xlu0 %v464
        %v466 = vpop.xlane.xlu0 %465
        %v467 = vsel %vm439, %v432, 0.0
        %468 = vadd.xlane.f32.xlu0 %v467
        %v469 = vpop.xlane.xlu0 %468
        %v470 = vsel %vm439, %v433, 0.0
        %471 = vadd.xlane.f32.xlu0 %v470
        %v472 = vpop.xlane.xlu0 %471
        %v473 = vsel %vm439, %v434, 0.0
        %474 = vadd.xlane.f32.xlu0 %v473
        %v475 = vpop.xlane.xlu0 %474
        %v476 = vsel %vm439, %v435, 0.0
        %477 = vadd.xlane.f32.xlu0 %v476
        %v478 = vpop.xlane.xlu0 %477
        %v479 = vsel %vm439, %v436, 0.0
        %480 = vadd.xlane.f32.xlu0 %v479
        %v481 = vpop.xlane.xlu0 %480
        %v482 = vsel %vm439, %v437, 0.0
        %483 = vadd.xlane.f32.xlu0 %v482
        %v484 = vpop.xlane.xlu0 %483
        %v485 = vsel %vm439, %v438, 0.0
        %486 = vadd.xlane.f32.xlu0 %v485
        %v487 = vpop.xlane.xlu0 %486
        %v488 = vrcp.pop 32.0
        %v489 = vmul.f32 %v442, %v488
        %v490 = vmul.f32 %v445, %v488
        %v491 = vmul.f32 %v448, %v488
        %v492 = vmul.f32 %v451, %v488
        %v493 = vmul.f32 %v454, %v488
        %v494 = vmul.f32 %v457, %v488
        %v495 = vmul.f32 %v460, %v488
        %v496 = vmul.f32 %v463, %v488
        %v497 = vmul.f32 %v466, %v488
        %v498 = vmul.f32 %v469, %v488
        %v499 = vmul.f32 %v472, %v488
        %v500 = vmul.f32 %v475, %v488
        %v501 = vmul.f32 %v478, %v488
        %v502 = vmul.f32 %v481, %v488
        %v503 = vmul.f32 %v484, %v488
        %v504 = vmul.f32 %v487, %v488
        %v505 = vsub.f32 %v423, %v489
        %v506 = vsub.f32 %v424, %v490
        %v507 = vsub.f32 %v425, %v491
        %v508 = vsub.f32 %v426, %v492
        %v509 = vsub.f32 %v427, %v493
        %v510 = vsub.f32 %v428, %v494
        %v511 = vsub.f32 %v429, %v495
        %v512 = vsub.f32 %v430, %v496
        %v513 = vsub.f32 %v431, %v497
        %v514 = vsub.f32 %v432, %v498
        %v515 = vsub.f32 %v433, %v499
        %v516 = vsub.f32 %v434, %v500
        %v517 = vsub.f32 %v435, %v501
        %v518 = vsub.f32 %v436, %v502
        %v519 = vsub.f32 %v437, %v503
        %v520 = vsub.f32 %v438, %v504
        %v521 = vmul.f32 %v505, %v505
        %v522 = vmul.f32 %v506, %v506
        %v523 = vmul.f32 %v507, %v507
        %v524 = vmul.f32 %v508, %v508
        %v525 = vmul.f32 %v509, %v509
        %v526 = vmul.f32 %v510, %v510
        %v527 = vmul.f32 %v511, %v511
        %v528 = vmul.f32 %v512, %v512
        %v529 = vmul.f32 %v513, %v513
        %v530 = vmul.f32 %v514, %v514
        %v531 = vmul.f32 %v515, %v515
        %v532 = vmul.f32 %v516, %v516
        %v533 = vmul.f32 %v517, %v517
        %v534 = vmul.f32 %v518, %v518
        %v535 = vmul.f32 %v519, %v519
        %v536 = vmul.f32 %v520, %v520
        %v537 = vsel %vm439, %v521, 0.0
        %538 = vadd.xlane.f32.xlu0 %v537
        %v539 = vpop.xlane.xlu0 %538
        %v540 = vsel %vm439, %v522, 0.0
        %541 = vadd.xlane.f32.xlu0 %v540
        %v542 = vpop.xlane.xlu0 %541
        %v543 = vsel %vm439, %v523, 0.0
        %544 = vadd.xlane.f32.xlu0 %v543
        %v545 = vpop.xlane.xlu0 %544
        %v546 = vsel %vm439, %v524, 0.0
        %547 = vadd.xlane.f32.xlu0 %v546
        %v548 = vpop.xlane.xlu0 %547
        %v549 = vsel %vm439, %v525, 0.0
        %550 = vadd.xlane.f32.xlu0 %v549
        %v551 = vpop.xlane.xlu0 %550
        %v552 = vsel %vm439, %v526, 0.0
        %553 = vadd.xlane.f32.xlu0 %v552
        %v554 = vpop.xlane.xlu0 %553
        %v555 = vsel %vm439, %v527, 0.0
        %556 = vadd.xlane.f32.xlu0 %v555
        %v557 = vpop.xlane.xlu0 %556
        %v558 = vsel %vm439, %v528, 0.0
        %559 = vadd.xlane.f32.xlu0 %v558
        %v560 = vpop.xlane.xlu0 %559
        %v561 = vsel %vm439, %v529, 0.0
        %562 = vadd.xlane.f32.xlu0 %v561
        %v563 = vpop.xlane.xlu0 %562
        %v564 = vsel %vm439, %v530, 0.0
        %565 = vadd.xlane.f32.xlu0 %v564
        %v566 = vpop.xlane.xlu0 %565
        %v567 = vsel %vm439, %v531, 0.0
        %568 = vadd.xlane.f32.xlu0 %v567
        %v569 = vpop.xlane.xlu0 %568
        %v570 = vsel %vm439, %v532, 0.0
        %571 = vadd.xlane.f32.xlu0 %v570
        %v572 = vpop.xlane.xlu0 %571
        %v573 = vsel %vm439, %v533, 0.0
        %574 = vadd.xlane.f32.xlu0 %v573
        %v575 = vpop.xlane.xlu0 %574
        %v576 = vsel %vm439, %v534, 0.0
        %577 = vadd.xlane.f32.xlu0 %v576
        %v578 = vpop.xlane.xlu0 %577
        %v579 = vsel %vm439, %v535, 0.0
        %580 = vadd.xlane.f32.xlu0 %v579
        %v581 = vpop.xlane.xlu0 %580
        %v582 = vsel %vm439, %v536, 0.0
        %583 = vadd.xlane.f32.xlu0 %v582
        %v584 = vpop.xlane.xlu0 %583
        %v585 = vmul.f32 %v539, %v488
        %v586 = vmul.f32 %v542, %v488
        %v587 = vmul.f32 %v545, %v488
        %v588 = vmul.f32 %v548, %v488
        %v589 = vmul.f32 %v551, %v488
        %v590 = vmul.f32 %v554, %v488
        %v591 = vmul.f32 %v557, %v488
        %v592 = vmul.f32 %v560, %v488
        %v593 = vmul.f32 %v563, %v488
        %v594 = vmul.f32 %v566, %v488
        %v595 = vmul.f32 %v569, %v488
        %v596 = vmul.f32 %v572, %v488
        %v597 = vmul.f32 %v575, %v488
        %v598 = vmul.f32 %v578, %v488
        %v599 = vmul.f32 %v581, %v488
        %v600 = vmul.f32 %v584, %v488
        %v601 = vadd.f32 %v585, 1e-05
        %v602 = vadd.f32 %v586, 1e-05
        %v603 = vadd.f32 %v587, 1e-05
        %v604 = vadd.f32 %v588, 1e-05
        %v605 = vadd.f32 %v589, 1e-05
        %v606 = vadd.f32 %v590, 1e-05
        %v607 = vadd.f32 %v591, 1e-05
        %v608 = vadd.f32 %v592, 1e-05
        %v609 = vadd.f32 %v593, 1e-05
        %v610 = vadd.f32 %v594, 1e-05
        %v611 = vadd.f32 %v595, 1e-05
        %v612 = vadd.f32 %v596, 1e-05
        %v613 = vadd.f32 %v597, 1e-05
        %v614 = vadd.f32 %v598, 1e-05
        %v615 = vadd.f32 %v599, 1e-05
        %v616 = vadd.f32 %v600, 1e-05
        %v617 = vrsqrt.pop %v601
        %v618 = vrsqrt.pop %v602
        %v619 = vrsqrt.pop %v603
        %v620 = vrsqrt.pop %v604
        %v621 = vrsqrt.pop %v605
        %v622 = vrsqrt.pop %v606
        %v623 = vrsqrt.pop %v607
        %v624 = vrsqrt.pop %v608
        %v625 = vrsqrt.pop %v609
        %v626 = vrsqrt.pop %v610
        %v627 = vrsqrt.pop %v611
        %v628 = vrsqrt.pop %v612
        %v629 = vrsqrt.pop %v613
        %v630 = vrsqrt.pop %v614
        %v631 = vrsqrt.pop %v615
        %v632 = vrsqrt.pop %v616
        %v633 = vmul.f32 %v505, %v617
        %v634 = vmul.f32 %v506, %v618
        %v635 = vmul.f32 %v507, %v619
        %v636 = vmul.f32 %v508, %v620
        %v637 = vmul.f32 %v509, %v621
        %v638 = vmul.f32 %v510, %v622
        %v639 = vmul.f32 %v511, %v623
        %v640 = vmul.f32 %v512, %v624
        %v641 = vmul.f32 %v513, %v625
        %v642 = vmul.f32 %v514, %v626
        %v643 = vmul.f32 %v515, %v627
        %v644 = vmul.f32 %v516, %v628
        %v645 = vmul.f32 %v517, %v629
        %v646 = vmul.f32 %v518, %v630
        %v647 = vmul.f32 %v519, %v631
        %v648 = vmul.f32 %v520, %v632
        %v649 = vld [vmem:[#allocation8] sm:$0x1]
        %v651 = vlaneseq
        %v652 = vshrl.u32 %v651, 7
        %v653 = vsub.s32 0, %v652
        %v654 = vrot.slane %v649, %v653
        %v656 = vmul.f32 %v633, %v654
        %v657 = vmul.f32 %v634, %v654
        %v658 = vmul.f32 %v635, %v654
        %v659 = vmul.f32 %v636, %v654
        %v660 = vmul.f32 %v637, %v654
        %v661 = vmul.f32 %v638, %v654
        %v662 = vmul.f32 %v639, %v654
        %v663 = vmul.f32 %v640, %v654
        %v664 = vmul.f32 %v641, %v654
        %v665 = vmul.f32 %v642, %v654
        %v666 = vmul.f32 %v643, %v654
        %v667 = vmul.f32 %v644, %v654
        %v668 = vmul.f32 %v645, %v654
        %v669 = vmul.f32 %v646, %v654
        %v670 = vmul.f32 %v647, %v654
        %v671 = vmul.f32 %v648, %v654
        %v672 = vld [vmem:[#allocation10] sm:$0x1]
        %v674 = vlaneseq
        %v675 = vshrl.u32 %v674, 7
        %v676 = vsub.s32 0, %v675
        %v677 = vrot.slane %v672, %v676
        %v679 = vadd.f32 %v656, %v677
        %v680 = vadd.f32 %v657, %v677
        %v681 = vadd.f32 %v658, %v677
        %v682 = vadd.f32 %v659, %v677
        %v683 = vadd.f32 %v660, %v677
        %v684 = vadd.f32 %v661, %v677
        %v685 = vadd.f32 %v662, %v677
        %v686 = vadd.f32 %v663, %v677
        %v687 = vadd.f32 %v664, %v677
        %v688 = vadd.f32 %v665, %v677
        %v689 = vadd.f32 %v666, %v677
        %v690 = vadd.f32 %v667, %v677
        %v691 = vadd.f32 %v668, %v677
        %v692 = vadd.f32 %v669, %v677
        %v693 = vadd.f32 %v670, %v677
        %v694 = vadd.f32 %v671, %v677
        %v695 = vpack.c.bf16 %v680, %v679
        %v696 = vpack.c.bf16 %v682, %v681
        %v697 = vpack.c.bf16 %v684, %v683
        %v698 = vpack.c.bf16 %v686, %v685
        %v699 = vpack.c.bf16 %v688, %v687
        %v700 = vpack.c.bf16 %v690, %v689
        %v701 = vpack.c.bf16 %v692, %v691
        %v702 = vpack.c.bf16 %v694, %v693
        %v703 = vld [vmem:[#allocation5] sm:$0xf]
        %v704 = vld [vmem:[#allocation5 + $0x4] sm:$0xf]
        %v705 = vld [vmem:[#allocation5 + $0x8] sm:$0xf]
        %v706 = vld [vmem:[#allocation5 + $0xc] sm:$0xf]
        %v711 = vunpack.c.l.b16 %v703
        %v712 = vunpack.c.l.b16 %v704
        %v713 = vunpack.c.l.b16 %v705
        %v714 = vunpack.c.l.b16 %v706
        %v715 = vpack.c.b16 %v712, %v711
        %v716 = vpack.c.b16 %v714, %v713
        %v720 = vsel %vm439, %v695, 0
        %v723 = vsel %vm439, %v696, 0
        %v726 = vsel %vm439, %v697, 0
        %v729 = vsel %vm439, %v698, 0
        %v732 = vsel %vm439, %v699, 0
        %v735 = vsel %vm439, %v700, 0
        %v738 = vsel %vm439, %v701, 0
        %v741 = vsel %vm439, %v702, 0
        %743 = vmatprep.subr.bf16.mxu0 0
        %744 = vmatpush1.bf16.msra.mxu0 %v715
        %745 = vmatprep.subr.bf16.mxu0 0
        %746 = vmatpush1.bf16.msra.mxu0 %v716
        %747 = vmatprep.subr.bf16.mxu0 0
        %748 = vmatpush1.bf16.msra.mxu0 0
        %749 = vmatprep.subr.bf16.mxu0 0
        %750 = vmatpush1.bf16.msra.mxu0 0
        %751 = vmatprep.subr.bf16.mxu0 0
        %752 = vmatpush1.bf16.msra.mxu0 0
        %753 = vmatprep.subr.bf16.mxu0 0
        %754 = vmatpush1.bf16.msra.mxu0 0
        %755 = vmatprep.subr.bf16.mxu0 0
        %756 = vmatpush1.bf16.msra.mxu0 0
        %757 = vmatprep.subr.bf16.mxu0 0
        %758 = vmatpush1.bf16.msra.mxu0 0
        %759 = vmatprep.subr.bf16.mxu0 0
        %760 = vmatpush1.bf16.msra.mxu0 0
        %761 = vmatprep.subr.bf16.mxu0 0
        %762 = vmatpush1.bf16.msra.mxu0 0
        %763 = vmatprep.subr.bf16.mxu0 0
        %764 = vmatpush1.bf16.msra.mxu0 0
        %765 = vmatprep.subr.bf16.mxu0 0
        %766 = vmatpush1.bf16.msra.mxu0 0
        %767 = vmatprep.subr.bf16.mxu0 0
        %768 = vmatpush1.bf16.msra.mxu0 0
        %769 = vmatprep.subr.bf16.mxu0 0
        %770 = vmatpush1.bf16.msra.mxu0 0
        %771 = vmatprep.subr.bf16.mxu0 0
        %772 = vmatpush1.bf16.msra.mxu0 0
        %773 = vmatprep.subr.bf16.mxu0 0
        %774 = vmatpush1.bf16.msra.mxu0 0
        %775 = vmatprep.mubr.bf16.mxu0 0
        %776 = vmatmul.mubr.bf16.gmra.mrb[0].mxu0 %v720
        %v777 = vpop.f32.mrb[0].mxu0
        %v778 = vadd.f32 0.0, %v777
        %v779 = vpop.f32.mrb[0].mxu0
        %v780 = vpop.f32.mrb[0].mxu0
        %v781 = vadd.f32 0.0, %v780
        %v782 = vpop.f32.mrb[0].mxu0
        %783 = vmatprep.mubr.bf16.mxu0 0
        %784 = vmatmul.mubr.bf16.gmra.mrb[0].mxu0 %v723
        %v785 = vpop.f32.mrb[0].mxu0
        %v786 = vadd.f32 0.0, %v785
        %v787 = vpop.f32.mrb[0].mxu0
        %v788 = vpop.f32.mrb[0].mxu0
        %v789 = vadd.f32 0.0, %v788
        %v790 = vpop.f32.mrb[0].mxu0
        %791 = vmatprep.mubr.bf16.mxu0 0
        %792 = vmatmul.mubr.bf16.gmra.mrb[0].mxu0 %v726
        %v793 = vpop.f32.mrb[0].mxu0
        %v794 = vadd.f32 0.0, %v793
        %v795 = vpop.f32.mrb[0].mxu0
        %v796 = vpop.f32.mrb[0].mxu0
        %v797 = vadd.f32 0.0, %v796
        %v798 = vpop.f32.mrb[0].mxu0
        %799 = vmatprep.mubr.bf16.mxu0 0
        %800 = vmatmul.mubr.bf16.gmra.mrb[0].mxu0 %v729
        %v801 = vpop.f32.mrb[0].mxu0
        %v802 = vadd.f32 0.0, %v801
        %v803 = vpop.f32.mrb[0].mxu0
        %v804 = vpop.f32.mrb[0].mxu0
        %v805 = vadd.f32 0.0, %v804
        %v806 = vpop.f32.mrb[0].mxu0
        %807 = vmatprep.mubr.bf16.mxu0 0
        %808 = vmatmul.mubr.bf16.gmra.mrb[0].mxu0 %v732
        %v809 = vpop.f32.mrb[0].mxu0
        %v810 = vadd.f32 0.0, %v809
        %v811 = vpop.f32.mrb[0].mxu0
        %v812 = vpop.f32.mrb[0].mxu0
        %v813 = vadd.f32 0.0, %v812
        %v814 = vpop.f32.mrb[0].mxu0
        %815 = vmatprep.mubr.bf16.mxu0 0
        %816 = vmatmul.mubr.bf16.gmra.mrb[0].mxu0 %v735
        %v817 = vpop.f32.mrb[0].mxu0
        %v818 = vadd.f32 0.0, %v817
        %v819 = vpop.f32.mrb[0].mxu0
        %v820 = vpop.f32.mrb[0].mxu0
        %v821 = vadd.f32 0.0, %v820
        %v822 = vpop.f32.mrb[0].mxu0
        %823 = vmatprep.mubr.bf16.mxu0 0
        %824 = vmatmul.mubr.bf16.gmra.mrb[0].mxu0 %v738
        %v825 = vpop.f32.mrb[0].mxu0
        %v826 = vadd.f32 0.0, %v825
        %v827 = vpop.f32.mrb[0].mxu0
        %v828 = vpop.f32.mrb[0].mxu0
        %v829 = vadd.f32 0.0, %v828
        %v830 = vpop.f32.mrb[0].mxu0
        %831 = vmatprep.mubr.bf16.mxu0 0
        %832 = vmatmul.mubr.bf16.gmra.mrb[0].mxu0 %v741
        %v833 = vpop.f32.mrb[0].mxu0
        %v834 = vadd.f32 0.0, %v833
        %v835 = vpop.f32.mrb[0].mxu0
        %v836 = vpop.f32.mrb[0].mxu0
        %v837 = vadd.f32 0.0, %v836
        %v838 = vpop.f32.mrb[0].mxu0
        %839 = vdwg.mxu0
        %v840 = vpack.c.bf16 %v781, %v778
        %v841 = vpack.c.bf16 %v789, %v786
        %v842 = vpack.c.bf16 %v797, %v794
        %v843 = vpack.c.bf16 %v805, %v802
        %v844 = vpack.c.bf16 %v813, %v810
        %v845 = vpack.c.bf16 %v821, %v818
        %v846 = vpack.c.bf16 %v829, %v826
        %v847 = vpack.c.bf16 %v837, %v834
        %856 = vrot.lane.b32.xlu0 %v840, 120
        %v857 = vpop.permute.xlu0 %856
        %858 = vrot.lane.b32.xlu0 %v841, 120
        %v859 = vpop.permute.xlu0 %858
        %860 = vrot.lane.b32.xlu0 %v842, 120
        %v861 = vpop.permute.xlu0 %860
        %862 = vrot.lane.b32.xlu0 %v843, 120
        %v863 = vpop.permute.xlu0 %862
        %864 = vrot.lane.b32.xlu0 %v844, 120
        %v865 = vpop.permute.xlu0 %864
        %866 = vrot.lane.b32.xlu0 %v845, 120
        %v867 = vpop.permute.xlu0 %866
        %868 = vrot.lane.b32.xlu0 %v846, 120
        %v869 = vpop.permute.xlu0 %868
        %870 = vrot.lane.b32.xlu0 %v847, 120
        %v871 = vpop.permute.xlu0 %870
        %872 = vrot.lane.b32.xlu0 %v840, 112
        %v873 = vpop.permute.xlu0 %872
        %874 = vrot.lane.b32.xlu0 %v841, 112
        %v875 = vpop.permute.xlu0 %874
        %876 = vrot.lane.b32.xlu0 %v842, 112
        %v877 = vpop.permute.xlu0 %876
        %878 = vrot.lane.b32.xlu0 %v843, 112
        %v879 = vpop.permute.xlu0 %878
        %880 = vrot.lane.b32.xlu0 %v844, 112
        %v881 = vpop.permute.xlu0 %880
        %882 = vrot.lane.b32.xlu0 %v845, 112
        %v883 = vpop.permute.xlu0 %882
        %884 = vrot.lane.b32.xlu0 %v846, 112
        %v885 = vpop.permute.xlu0 %884
        %886 = vrot.lane.b32.xlu0 %v847, 112
        %v887 = vpop.permute.xlu0 %886
        %888 = vrot.lane.b32.xlu0 %v840, 104
        %v889 = vpop.permute.xlu0 %888
        %890 = vrot.lane.b32.xlu0 %v841, 104
        %v891 = vpop.permute.xlu0 %890
        %892 = vrot.lane.b32.xlu0 %v842, 104
        %v893 = vpop.permute.xlu0 %892
        %894 = vrot.lane.b32.xlu0 %v843, 104
        %v895 = vpop.permute.xlu0 %894
        %896 = vrot.lane.b32.xlu0 %v844, 104
        %v897 = vpop.permute.xlu0 %896
        %898 = vrot.lane.b32.xlu0 %v845, 104
        %v899 = vpop.permute.xlu0 %898
        %900 = vrot.lane.b32.xlu0 %v846, 104
        %v901 = vpop.permute.xlu0 %900
        %902 = vrot.lane.b32.xlu0 %v847, 104
        %v903 = vpop.permute.xlu0 %902
        %v904 = vld [vmem:[#allocation11] sm:$0x1]
        %v905 = vld [vmem:[#allocation11 + $0x1] sm:$0x1]
        %v906 = vld [vmem:[#allocation11 + $0x2] sm:$0x1]
        %v907 = vld [vmem:[#allocation11 + $0x3] sm:$0x1]
        %v908 = vld [vmem:[#allocation13] sm:$0xf]
        %v909 = vld [vmem:[#allocation13 + $0x4] sm:$0xf]
        %v910 = vld [vmem:[#allocation13 + $0x8] sm:$0xf]
        %v911 = vld [vmem:[#allocation13 + $0xc] sm:$0xf]
        %v912 = vld [vmem:[#allocation13 + $0x10] sm:$0xf]
        %v913 = vld [vmem:[#allocation13 + $0x14] sm:$0xf]
        %v914 = vld [vmem:[#allocation13 + $0x18] sm:$0xf]
        %v915 = vld [vmem:[#allocation13 + $0x1c] sm:$0xf]
        %v916 = vld [vmem:[#allocation13 + $0x20] sm:$0xf]
        %v917 = vld [vmem:[#allocation13 + $0x24] sm:$0xf]
        %v918 = vld [vmem:[#allocation13 + $0x28] sm:$0xf]
        %v919 = vld [vmem:[#allocation13 + $0x2c] sm:$0xf]
        %v920 = vld [vmem:[#allocation13 + $0x30] sm:$0xf]
        %v921 = vld [vmem:[#allocation13 + $0x34] sm:$0xf]
        %v922 = vld [vmem:[#allocation13 + $0x38] sm:$0xf]
        %v923 = vld [vmem:[#allocation13 + $0x3c] sm:$0xf]
        %v924 = vld [vmem:[#allocation13 + $0x40] sm:$0xf]
        %v925 = vld [vmem:[#allocation13 + $0x44] sm:$0xf]
        %v926 = vld [vmem:[#allocation13 + $0x48] sm:$0xf]
        %v927 = vld [vmem:[#allocation13 + $0x4c] sm:$0xf]
        %v928 = vld [vmem:[#allocation13 + $0x50] sm:$0xf]
        %v929 = vld [vmem:[#allocation13 + $0x54] sm:$0xf]
        %v930 = vld [vmem:[#allocation13 + $0x58] sm:$0xf]
        %v931 = vld [vmem:[#allocation13 + $0x5c] sm:$0xf]
        %v932 = vld [vmem:[#allocation13 + $0x60] sm:$0xf]
        %v933 = vld [vmem:[#allocation13 + $0x64] sm:$0xf]
        %v934 = vld [vmem:[#allocation13 + $0x68] sm:$0xf]
        %v935 = vld [vmem:[#allocation13 + $0x6c] sm:$0xf]
        %v936 = vld [vmem:[#allocation13 + $0x70] sm:$0xf]
        %v937 = vld [vmem:[#allocation13 + $0x74] sm:$0xf]
        %v938 = vld [vmem:[#allocation13 + $0x78] sm:$0xf]
        %v939 = vld [vmem:[#allocation13 + $0x7c] sm:$0xf]
        %v940 = vld [vmem:[#allocation13 + $0x80] sm:$0xf]
        %v941 = vld [vmem:[#allocation13 + $0x84] sm:$0xf]
        %v942 = vld [vmem:[#allocation13 + $0x88] sm:$0xf]
        %v943 = vld [vmem:[#allocation13 + $0x8c] sm:$0xf]
        %v944 = vld [vmem:[#allocation13 + $0x90] sm:$0xf]
        %v945 = vld [vmem:[#allocation13 + $0x94] sm:$0xf]
        %v946 = vld [vmem:[#allocation13 + $0x98] sm:$0xf]
        %v947 = vld [vmem:[#allocation13 + $0x9c] sm:$0xf]
        %v948 = vld [vmem:[#allocation13 + $0xa0] sm:$0xf]
        %v949 = vld [vmem:[#allocation13 + $0xa4] sm:$0xf]
        %v950 = vld [vmem:[#allocation13 + $0xa8] sm:$0xf]
        %v951 = vld [vmem:[#allocation13 + $0xac] sm:$0xf]
        %v952 = vld [vmem:[#allocation13 + $0xb0] sm:$0xf]
        %v953 = vld [vmem:[#allocation13 + $0xb4] sm:$0xf]
        %v954 = vld [vmem:[#allocation13 + $0xb8] sm:$0xf]
        %v955 = vld [vmem:[#allocation13 + $0xbc] sm:$0xf]
        %v956 = vld [vmem:[#allocation13 + $0xc0] sm:$0xf]
        %v957 = vld [vmem:[#allocation13 + $0xc4] sm:$0xf]
        %v958 = vld [vmem:[#allocation13 + $0xc8] sm:$0xf]
        %v959 = vld [vmem:[#allocation13 + $0xcc] sm:$0xf]
        %v960 = vld [vmem:[#allocation13 + $0xd0] sm:$0xf]
        %v961 = vld [vmem:[#allocation13 + $0xd4] sm:$0xf]
        %v962 = vld [vmem:[#allocation13 + $0xd8] sm:$0xf]
        %v963 = vld [vmem:[#allocation13 + $0xdc] sm:$0xf]
        %v964 = vld [vmem:[#allocation13 + $0xe0] sm:$0xf]
        %v965 = vld [vmem:[#allocation13 + $0xe4] sm:$0xf]
        %v966 = vld [vmem:[#allocation13 + $0xe8] sm:$0xf]
        %v967 = vld [vmem:[#allocation13 + $0xec] sm:$0xf]
        %v968 = vld [vmem:[#allocation13 + $0xf0] sm:$0xf]
        %v969 = vld [vmem:[#allocation13 + $0xf4] sm:$0xf]
        %v970 = vld [vmem:[#allocation13 + $0xf8] sm:$0xf]
        %v971 = vld [vmem:[#allocation13 + $0xfc] sm:$0xf]
        %v1036 = vunpack.c.l.b16 %v908
        %v1037 = vunpack.c.l.b16 %v909
        %v1038 = vunpack.c.l.b16 %v910
        %v1039 = vunpack.c.l.b16 %v911
        %v1040 = vunpack.c.l.b16 %v912
        %v1041 = vunpack.c.l.b16 %v913
        %v1042 = vunpack.c.l.b16 %v914
        %v1043 = vunpack.c.l.b16 %v915
        %v1044 = vunpack.c.l.b16 %v916
        %v1045 = vunpack.c.l.b16 %v917
        %v1046 = vunpack.c.l.b16 %v918
        %v1047 = vunpack.c.l.b16 %v919
        %v1048 = vunpack.c.l.b16 %v920
        %v1049 = vunpack.c.l.b16 %v921
        %v1050 = vunpack.c.l.b16 %v922
        %v1051 = vunpack.c.l.b16 %v923
        %v1052 = vunpack.c.l.b16 %v924
        %v1053 = vunpack.c.l.b16 %v925
        %v1054 = vunpack.c.l.b16 %v926
        %v1055 = vunpack.c.l.b16 %v927
        %v1056 = vunpack.c.l.b16 %v928
        %v1057 = vunpack.c.l.b16 %v929
        %v1058 = vunpack.c.l.b16 %v930
        %v1059 = vunpack.c.l.b16 %v931
        %v1060 = vunpack.c.l.b16 %v932
        %v1061 = vunpack.c.l.b16 %v933
        %v1062 = vunpack.c.l.b16 %v934
        %v1063 = vunpack.c.l.b16 %v935
        %v1064 = vunpack.c.l.b16 %v936
        %v1065 = vunpack.c.l.b16 %v937
        %v1066 = vunpack.c.l.b16 %v938
        %v1067 = vunpack.c.l.b16 %v939
        %v1068 = vunpack.c.l.b16 %v940
        %v1069 = vunpack.c.l.b16 %v941
        %v1070 = vunpack.c.l.b16 %v942
        %v1071 = vunpack.c.l.b16 %v943
        %v1072 = vunpack.c.l.b16 %v944
        %v1073 = vunpack.c.l.b16 %v945
        %v1074 = vunpack.c.l.b16 %v946
        %v1075 = vunpack.c.l.b16 %v947
        %v1076 = vunpack.c.l.b16 %v948
        %v1077 = vunpack.c.l.b16 %v949
        %v1078 = vunpack.c.l.b16 %v950
        %v1079 = vunpack.c.l.b16 %v951
        %v1080 = vunpack.c.l.b16 %v952
        %v1081 = vunpack.c.l.b16 %v953
        %v1082 = vunpack.c.l.b16 %v954
        %v1083 = vunpack.c.l.b16 %v955
        %v1084 = vunpack.c.l.b16 %v956
        %v1085 = vunpack.c.l.b16 %v957
        %v1086 = vunpack.c.l.b16 %v958
        %v1087 = vunpack.c.l.b16 %v959
        %v1088 = vunpack.c.l.b16 %v960
        %v1089 = vunpack.c.l.b16 %v961
        %v1090 = vunpack.c.l.b16 %v962
        %v1091 = vunpack.c.l.b16 %v963
        %v1092 = vunpack.c.l.b16 %v964
        %v1093 = vunpack.c.l.b16 %v965
        %v1094 = vunpack.c.l.b16 %v966
        %v1095 = vunpack.c.l.b16 %v967
        %v1096 = vunpack.c.l.b16 %v968
        %v1097 = vunpack.c.l.b16 %v969
        %v1098 = vunpack.c.l.b16 %v970
        %v1099 = vunpack.c.l.b16 %v971
        %v1100 = vpack.c.b16 %v1037, %v1036
        %v1101 = vpack.c.b16 %v1039, %v1038
        %v1102 = vpack.c.b16 %v1041, %v1040
        %v1103 = vpack.c.b16 %v1043, %v1042
        %v1104 = vpack.c.b16 %v1045, %v1044
        %v1105 = vpack.c.b16 %v1047, %v1046
        %v1106 = vpack.c.b16 %v1049, %v1048
        %v1107 = vpack.c.b16 %v1051, %v1050
        %v1108 = vpack.c.b16 %v1053, %v1052
        %v1109 = vpack.c.b16 %v1055, %v1054
        %v1110 = vpack.c.b16 %v1057, %v1056
        %v1111 = vpack.c.b16 %v1059, %v1058
        %v1112 = vpack.c.b16 %v1061, %v1060
        %v1113 = vpack.c.b16 %v1063, %v1062
        %v1114 = vpack.c.b16 %v1065, %v1064
        %v1115 = vpack.c.b16 %v1067, %v1066
        %v1116 = vpack.c.b16 %v1069, %v1068
        %v1117 = vpack.c.b16 %v1071, %v1070
        %v1118 = vpack.c.b16 %v1073, %v1072
        %v1119 = vpack.c.b16 %v1075, %v1074
        %v1120 = vpack.c.b16 %v1077, %v1076
        %v1121 = vpack.c.b16 %v1079, %v1078
        %v1122 = vpack.c.b16 %v1081, %v1080
        %v1123 = vpack.c.b16 %v1083, %v1082
        %v1124 = vpack.c.b16 %v1085, %v1084
        %v1125 = vpack.c.b16 %v1087, %v1086
        %v1126 = vpack.c.b16 %v1089, %v1088
        %v1127 = vpack.c.b16 %v1091, %v1090
        %v1128 = vpack.c.b16 %v1093, %v1092
        %v1129 = vpack.c.b16 %v1095, %v1094
        %v1130 = vpack.c.b16 %v1097, %v1096
        %v1131 = vpack.c.b16 %v1099, %v1098
        %1132 = vrot.lane.b32.xlu0 %v1100, 32
        %v1133 = vpop.permute.xlu0 %1132
        %1134 = vrot.lane.b32.xlu0 %v1101, 32
        %v1135 = vpop.permute.xlu0 %1134
        %1136 = vrot.lane.b32.xlu0 %v1102, 32
        %v1137 = vpop.permute.xlu0 %1136
        %1138 = vrot.lane.b32.xlu0 %v1103, 32
        %v1139 = vpop.permute.xlu0 %1138
        %1140 = vrot.lane.b32.xlu0 %v1104, 32
        %v1141 = vpop.permute.xlu0 %1140
        %1142 = vrot.lane.b32.xlu0 %v1105, 32
        %v1143 = vpop.permute.xlu0 %1142
        %1144 = vrot.lane.b32.xlu0 %v1106, 32
        %v1145 = vpop.permute.xlu0 %1144
        %1146 = vrot.lane.b32.xlu0 %v1107, 32
        %v1147 = vpop.permute.xlu0 %1146
        %1148 = vrot.lane.b32.xlu0 %v1108, 32
        %v1149 = vpop.permute.xlu0 %1148
        %1150 = vrot.lane.b32.xlu0 %v1109, 32
        %v1151 = vpop.permute.xlu0 %1150
        %1152 = vrot.lane.b32.xlu0 %v1110, 32
        %v1153 = vpop.permute.xlu0 %1152
        %1154 = vrot.lane.b32.xlu0 %v1111, 32
        %v1155 = vpop.permute.xlu0 %1154
        %1156 = vrot.lane.b32.xlu0 %v1112, 32
        %v1157 = vpop.permute.xlu0 %1156
        %1158 = vrot.lane.b32.xlu0 %v1113, 32
        %v1159 = vpop.permute.xlu0 %1158
        %1160 = vrot.lane.b32.xlu0 %v1114, 32
        %v1161 = vpop.permute.xlu0 %1160
        %1162 = vrot.lane.b32.xlu0 %v1115, 32
        %v1163 = vpop.permute.xlu0 %1162
        %1164 = vrot.lane.b32.xlu0 %v1116, 32
        %v1165 = vpop.permute.xlu0 %1164
        %1166 = vrot.lane.b32.xlu0 %v1117, 32
        %v1167 = vpop.permute.xlu0 %1166
        %1168 = vrot.lane.b32.xlu0 %v1118, 32
        %v1169 = vpop.permute.xlu0 %1168
        %1170 = vrot.lane.b32.xlu0 %v1119, 32
        %v1171 = vpop.permute.xlu0 %1170
        %1172 = vrot.lane.b32.xlu0 %v1120, 32
        %v1173 = vpop.permute.xlu0 %1172
        %1174 = vrot.lane.b32.xlu0 %v1121, 32
        %v1175 = vpop.permute.xlu0 %1174
        %1176 = vrot.lane.b32.xlu0 %v1122, 32
        %v1177 = vpop.permute.xlu0 %1176
        %1178 = vrot.lane.b32.xlu0 %v1123, 32
        %v1179 = vpop.permute.xlu0 %1178
        %1180 = vrot.lane.b32.xlu0 %v1124, 32
        %v1181 = vpop.permute.xlu0 %1180
        %1182 = vrot.lane.b32.xlu0 %v1125, 32
        %v1183 = vpop.permute.xlu0 %1182
        %1184 = vrot.lane.b32.xlu0 %v1126, 32
        %v1185 = vpop.permute.xlu0 %1184
        %1186 = vrot.lane.b32.xlu0 %v1127, 32
        %v1187 = vpop.permute.xlu0 %1186
        %1188 = vrot.lane.b32.xlu0 %v1128, 32
        %v1189 = vpop.permute.xlu0 %1188
        %1190 = vrot.lane.b32.xlu0 %v1129, 32
        %v1191 = vpop.permute.xlu0 %1190
        %1192 = vrot.lane.b32.xlu0 %v1130, 32
        %v1193 = vpop.permute.xlu0 %1192
        %1194 = vrot.lane.b32.xlu0 %v1131, 32
        %v1195 = vpop.permute.xlu0 %1194
        %1196 = vrot.lane.b32.xlu0 %v840, 96
        %v1197 = vpop.permute.xlu0 %1196
        %1198 = vrot.lane.b32.xlu0 %v841, 96
        %v1199 = vpop.permute.xlu0 %1198
        %1200 = vrot.lane.b32.xlu0 %v842, 96
        %v1201 = vpop.permute.xlu0 %1200
        %1202 = vrot.lane.b32.xlu0 %v843, 96
        %v1203 = vpop.permute.xlu0 %1202
        %1204 = vrot.lane.b32.xlu0 %v844, 96
        %v1205 = vpop.permute.xlu0 %1204
        %1206 = vrot.lane.b32.xlu0 %v845, 96
        %v1207 = vpop.permute.xlu0 %1206
        %1208 = vrot.lane.b32.xlu0 %v846, 96
        %v1209 = vpop.permute.xlu0 %1208
        %1210 = vrot.lane.b32.xlu0 %v847, 96
        %v1211 = vpop.permute.xlu0 %1210
        %1212 = vrot.lane.b32.xlu0 %v1133, 96
        %v1213 = vpop.permute.xlu0 %1212
        %1214 = vrot.lane.b32.xlu0 %v1135, 96
        %v1215 = vpop.permute.xlu0 %1214
        %1216 = vrot.lane.b32.xlu0 %v1137, 96
        %v1217 = vpop.permute.xlu0 %1216
        %1218 = vrot.lane.b32.xlu0 %v1139, 96
        %v1219 = vpop.permute.xlu0 %1218
        %1220 = vrot.lane.b32.xlu0 %v1141, 96
        %v1221 = vpop.permute.xlu0 %1220
        %1222 = vrot.lane.b32.xlu0 %v1143, 96
        %v1223 = vpop.permute.xlu0 %1222
        %1224 = vrot.lane.b32.xlu0 %v1145, 96
        %v1225 = vpop.permute.xlu0 %1224
        %1226 = vrot.lane.b32.xlu0 %v1147, 96
        %v1227 = vpop.permute.xlu0 %1226
        %vm1228 = vcmask 64512
        %v1230 = vsel %vm1228, %v840, 0
        %v1233 = vsel %vm1228, %v841, 0
        %v1236 = vsel %vm1228, %v842, 0
        %v1239 = vsel %vm1228, %v843, 0
        %v1242 = vsel %vm1228, %v844, 0
        %v1245 = vsel %vm1228, %v845, 0
        %v1248 = vsel %vm1228, %v846, 0
        %v1251 = vsel %vm1228, %v847, 0
        %v1254 = vsel %vm1228, %v904, 0
        %v1257 = vsel %vm1228, %v1197, 0
        %v1260 = vsel %vm1228, %v1199, 0
        %v1263 = vsel %vm1228, %v1201, 0
        %v1266 = vsel %vm1228, %v1203, 0
        %v1269 = vsel %vm1228, %v1205, 0
        %v1272 = vsel %vm1228, %v1207, 0
        %v1275 = vsel %vm1228, %v1209, 0
        %v1278 = vsel %vm1228, %v1211, 0
        %v1281 = vsel %vm1228, %v1213, 0
        %v1284 = vsel %vm1228, %v1215, 0
        %v1287 = vsel %vm1228, %v1217, 0
        %v1290 = vsel %vm1228, %v1219, 0
        %v1293 = vsel %vm1228, %v1221, 0
        %v1296 = vsel %vm1228, %v1223, 0
        %v1299 = vsel %vm1228, %v1225, 0
        %v1302 = vsel %vm1228, %v1227, 0
        %1304 = vmatprep.subr.bf16.mxu0 0
        %1305 = vmatpush1.bf16.xpose.msra.mxu0 %v1257
        %1306 = vmatprep.subr.bf16.mxu0 0
        %1307 = vmatpush1.bf16.xpose.msra.mxu0 %v1260
        %1308 = vmatprep.subr.bf16.mxu0 0
        %1309 = vmatpush1.bf16.xpose.msra.mxu0 %v1263
        %1310 = vmatprep.subr.bf16.mxu0 0
        %1311 = vmatpush1.bf16.xpose.msra.mxu0 %v1266
        %1312 = vmatprep.subr.bf16.mxu0 0
        %1313 = vmatpush1.bf16.xpose.msra.mxu0 %v1269
        %1314 = vmatprep.subr.bf16.mxu0 0
        %1315 = vmatpush1.bf16.xpose.msra.mxu0 %v1272
        %1316 = vmatprep.subr.bf16.mxu0 0
        %1317 = vmatpush1.bf16.xpose.msra.mxu0 %v1275
        %1318 = vmatprep.subr.bf16.mxu0 0
        %1319 = vmatpush1.bf16.xpose.msra.mxu0 %v1278
        %1320 = vmatprep.subr.bf16.mxu0 0
        %1321 = vmatpush1.bf16.xpose.msra.mxu0 %v1281
        %1322 = vmatprep.subr.bf16.mxu0 0
        %1323 = vmatpush1.bf16.xpose.msra.mxu0 %v1284
        %1324 = vmatprep.subr.bf16.mxu0 0
        %1325 = vmatpush1.bf16.xpose.msra.mxu0 %v1287
        %1326 = vmatprep.subr.bf16.mxu0 0
        %1327 = vmatpush1.bf16.xpose.msra.mxu0 %v1290
        %1328 = vmatprep.subr.bf16.mxu0 0
        %1329 = vmatpush1.bf16.xpose.msra.mxu0 %v1293
        %1330 = vmatprep.subr.bf16.mxu0 0
        %1331 = vmatpush1.bf16.xpose.msra.mxu0 %v1296
        %1332 = vmatprep.subr.bf16.mxu0 0
        %1333 = vmatpush1.bf16.xpose.msra.mxu0 %v1299
        %1334 = vmatprep.subr.bf16.mxu0 0
        %1335 = vmatpush1.bf16.xpose.msra.mxu0 %v1302
        %1336 = vmatprep.mubr.bf16.mxu0 0
        %1337 = vmatmul.mubr.bf16.gmra.mrb[0].mxu0 %v1230
        %v1338 = vpop.f32.mrb[0].mxu0
        %v1339 = vadd.f32 0.0, %v1338
        %v1340 = vpop.f32.mrb[0].mxu0
        %v1341 = vadd.f32 0.0, %v1340
        %v1342 = vpop.f32.mrb[0].mxu0
        %v1343 = vadd.f32 0.0, %v1342
        %v1344 = vpop.f32.mrb[0].mxu0
        %v1345 = vadd.f32 0.0, %v1344
        %1346 = vmatprep.mubr.bf16.mxu0 0
        %1347 = vmatmul.mubr.bf16.gmra.mrb[0].mxu0 %v1233
        %v1348 = vpop.f32.mrb[0].mxu0
        %v1349 = vadd.f32 0.0, %v1348
        %v1350 = vpop.f32.mrb[0].mxu0
        %v1351 = vadd.f32 0.0, %v1350
        %v1352 = vpop.f32.mrb[0].mxu0
        %v1353 = vadd.f32 0.0, %v1352
        %v1354 = vpop.f32.mrb[0].mxu0
        %v1355 = vadd.f32 0.0, %v1354
        %1356 = vmatprep.mubr.bf16.mxu0 0
        %1357 = vmatmul.mubr.bf16.gmra.mrb[0].mxu0 %v1236
        %v1358 = vpop.f32.mrb[0].mxu0
        %v1359 = vadd.f32 0.0, %v1358
        %v1360 = vpop.f32.mrb[0].mxu0
        %v1361 = vadd.f32 0.0, %v1360
        %v1362 = vpop.f32.mrb[0].mxu0
        %v1363 = vadd.f32 0.0, %v1362
        %v1364 = vpop.f32.mrb[0].mxu0
        %v1365 = vadd.f32 0.0, %v1364
        %1366 = vmatprep.mubr.bf16.mxu0 0
        %1367 = vmatmul.mubr.bf16.gmra.mrb[0].mxu0 %v1239
        %v1368 = vpop.f32.mrb[0].mxu0
        %v1369 = vadd.f32 0.0, %v1368
        %v1370 = vpop.f32.mrb[0].mxu0
        %v1371 = vadd.f32 0.0, %v1370
        %v1372 = vpop.f32.mrb[0].mxu0
        %v1373 = vadd.f32 0.0, %v1372
        %v1374 = vpop.f32.mrb[0].mxu0
        %v1375 = vadd.f32 0.0, %v1374
        %1376 = vmatprep.mubr.bf16.mxu0 0
        %1377 = vmatmul.mubr.bf16.gmra.mrb[0].mxu0 %v1242
        %v1378 = vpop.f32.mrb[0].mxu0
        %v1379 = vadd.f32 0.0, %v1378
        %v1380 = vpop.f32.mrb[0].mxu0
        %v1381 = vadd.f32 0.0, %v1380
        %v1382 = vpop.f32.mrb[0].mxu0
        %v1383 = vadd.f32 0.0, %v1382
        %v1384 = vpop.f32.mrb[0].mxu0
        %v1385 = vadd.f32 0.0, %v1384
        %1386 = vmatprep.mubr.bf16.mxu0 0
        %1387 = vmatmul.mubr.bf16.gmra.mrb[0].mxu0 %v1245
        %v1388 = vpop.f32.mrb[0].mxu0
        %v1389 = vadd.f32 0.0, %v1388
        %v1390 = vpop.f32.mrb[0].mxu0
        %v1391 = vadd.f32 0.0, %v1390
        %v1392 = vpop.f32.mrb[0].mxu0
        %v1393 = vadd.f32 0.0, %v1392
        %v1394 = vpop.f32.mrb[0].mxu0
        %v1395 = vadd.f32 0.0, %v1394
        %1396 = vmatprep.mubr.bf16.mxu0 0
        %1397 = vmatmul.mubr.bf16.gmra.mrb[0].mxu0 %v1248
        %v1398 = vpop.f32.mrb[0].mxu0
        %v1399 = vadd.f32 0.0, %v1398
        %v1400 = vpop.f32.mrb[0].mxu0
        %v1401 = vadd.f32 0.0, %v1400
        %v1402 = vpop.f32.mrb[0].mxu0
        %v1403 = vadd.f32 0.0, %v1402
        %v1404 = vpop.f32.mrb[0].mxu0
        %v1405 = vadd.f32 0.0, %v1404
        %1406 = vmatprep.mubr.bf16.mxu0 0
        %1407 = vmatmul.mubr.bf16.gmra.mrb[0].mxu0 %v1251
        %v1408 = vpop.f32.mrb[0].mxu0
        %v1409 = vadd.f32 0.0, %v1408
        %v1410 = vpop.f32.mrb[0].mxu0
        %v1411 = vadd.f32 0.0, %v1410
        %v1412 = vpop.f32.mrb[0].mxu0
        %v1413 = vadd.f32 0.0, %v1412
        %v1414 = vpop.f32.mrb[0].mxu0
        %v1415 = vadd.f32 0.0, %v1414
        %1416 = vmatprep.mubr.bf16.mxu0 0
        %1417 = vmatmul.mubr.bf16.gmra.mrb[0].mxu0 %v1254
        %v1418 = vpop.f32.mrb[0].mxu0
        %v1419 = vadd.f32 0.0, %v1418
        %v1420 = vpop.f32.mrb[0].mxu0
        %v1421 = vpop.f32.mrb[0].mxu0
        %v1422 = vpop.f32.mrb[0].mxu0
        %1423 = vdwg.mxu0
        %1424 = vrot.lane.b32.xlu0 %v857, 96
        %v1425 = vpop.permute.xlu0 %1424
        %1426 = vrot.lane.b32.xlu0 %v859, 96
        %v1427 = vpop.permute.xlu0 %1426
        %1428 = vrot.lane.b32.xlu0 %v861, 96
        %v1429 = vpop.permute.xlu0 %1428
        %1430 = vrot.lane.b32.xlu0 %v863, 96
        %v1431 = vpop.permute.xlu0 %1430
        %1432 = vrot.lane.b32.xlu0 %v865, 96
        %v1433 = vpop.permute.xlu0 %1432
        %1434 = vrot.lane.b32.xlu0 %v867, 96
        %v1435 = vpop.permute.xlu0 %1434
        %1436 = vrot.lane.b32.xlu0 %v869, 96
        %v1437 = vpop.permute.xlu0 %1436
        %1438 = vrot.lane.b32.xlu0 %v871, 96
        %v1439 = vpop.permute.xlu0 %1438
        %1440 = vrot.lane.b32.xlu0 %v1149, 96
        %v1441 = vpop.permute.xlu0 %1440
        %1442 = vrot.lane.b32.xlu0 %v1151, 96
        %v1443 = vpop.permute.xlu0 %1442
        %1444 = vrot.lane.b32.xlu0 %v1153, 96
        %v1445 = vpop.permute.xlu0 %1444
        %1446 = vrot.lane.b32.xlu0 %v1155, 96
        %v1447 = vpop.permute.xlu0 %1446
        %1448 = vrot.lane.b32.xlu0 %v1157, 96
        %v1449 = vpop.permute.xlu0 %1448
        %1450 = vrot.lane.b32.xlu0 %v1159, 96
        %v1451 = vpop.permute.xlu0 %1450
        %1452 = vrot.lane.b32.xlu0 %v1161, 96
        %v1453 = vpop.permute.xlu0 %1452
        %1454 = vrot.lane.b32.xlu0 %v1163, 96
        %v1455 = vpop.permute.xlu0 %1454
        %v1457 = vsel %vm1228, %v857, 0
        %v1460 = vsel %vm1228, %v859, 0
        %v1463 = vsel %vm1228, %v861, 0
        %v1466 = vsel %vm1228, %v863, 0
        %v1469 = vsel %vm1228, %v865, 0
        %v1472 = vsel %vm1228, %v867, 0
        %v1475 = vsel %vm1228, %v869, 0
        %v1478 = vsel %vm1228, %v871, 0
        %v1481 = vsel %vm1228, %v905, 0
        %v1484 = vsel %vm1228, %v1425, 0
        %v1487 = vsel %vm1228, %v1427, 0
        %v1490 = vsel %vm1228, %v1429, 0
        %v1493 = vsel %vm1228, %v1431, 0
        %v1496 = vsel %vm1228, %v1433, 0
        %v1499 = vsel %vm1228, %v1435, 0
        %v1502 = vsel %vm1228, %v1437, 0
        %v1505 = vsel %vm1228, %v1439, 0
        %v1508 = vsel %vm1228, %v1441, 0
        %v1511 = vsel %vm1228, %v1443, 0
        %v1514 = vsel %vm1228, %v1445, 0
        %v1517 = vsel %vm1228, %v1447, 0
        %v1520 = vsel %vm1228, %v1449, 0
        %v1523 = vsel %vm1228, %v1451, 0
        %v1526 = vsel %vm1228, %v1453, 0
        %v1529 = vsel %vm1228, %v1455, 0
        %1531 = vmatprep.subr.bf16.mxu0 0
        %1532 = vmatpush1.bf16.xpose.msra.mxu0 %v1484
        %1533 = vmatprep.subr.bf16.mxu0 0
        %1534 = vmatpush1.bf16.xpose.msra.mxu0 %v1487
        %1535 = vmatprep.subr.bf16.mxu0 0
        %1536 = vmatpush1.bf16.xpose.msra.mxu0 %v1490
        %1537 = vmatprep.subr.bf16.mxu0 0
        %1538 = vmatpush1.bf16.xpose.msra.mxu0 %v1493
        %1539 = vmatprep.subr.bf16.mxu0 0
        %1540 = vmatpush1.bf16.xpose.msra.mxu0 %v1496
        %1541 = vmatprep.subr.bf16.mxu0 0
        %1542 = vmatpush1.bf16.xpose.msra.mxu0 %v1499
        %1543 = vmatprep.subr.bf16.mxu0 0
        %1544 = vmatpush1.bf16.xpose.msra.mxu0 %v1502
        %1545 = vmatprep.subr.bf16.mxu0 0
        %1546 = vmatpush1.bf16.xpose.msra.mxu0 %v1505
        %1547 = vmatprep.subr.bf16.mxu0 0
        %1548 = vmatpush1.bf16.xpose.msra.mxu0 %v1508
        %1549 = vmatprep.subr.bf16.mxu0 0
        %1550 = vmatpush1.bf16.xpose.msra.mxu0 %v1511
        %1551 = vmatprep.subr.bf16.mxu0 0
        %1552 = vmatpush1.bf16.xpose.msra.mxu0 %v1514
        %1553 = vmatprep.subr.bf16.mxu0 0
        %1554 = vmatpush1.bf16.xpose.msra.mxu0 %v1517
        %1555 = vmatprep.subr.bf16.mxu0 0
        %1556 = vmatpush1.bf16.xpose.msra.mxu0 %v1520
        %1557 = vmatprep.subr.bf16.mxu0 0
        %1558 = vmatpush1.bf16.xpose.msra.mxu0 %v1523
        %1559 = vmatprep.subr.bf16.mxu0 0
        %1560 = vmatpush1.bf16.xpose.msra.mxu0 %v1526
        %1561 = vmatprep.subr.bf16.mxu0 0
        %1562 = vmatpush1.bf16.xpose.msra.mxu0 %v1529
        %1563 = vmatprep.mubr.bf16.mxu0 0
        %1564 = vmatmul.mubr.bf16.gmra.mrb[0].mxu0 %v1457
        %v1565 = vpop.f32.mrb[0].mxu0
        %v1566 = vadd.f32 0.0, %v1565
        %v1567 = vpop.f32.mrb[0].mxu0
        %v1568 = vadd.f32 0.0, %v1567
        %v1569 = vpop.f32.mrb[0].mxu0
        %v1570 = vadd.f32 0.0, %v1569
        %v1571 = vpop.f32.mrb[0].mxu0
        %v1572 = vadd.f32 0.0, %v1571
        %1573 = vmatprep.mubr.bf16.mxu0 0
        %1574 = vmatmul.mubr.bf16.gmra.mrb[0].mxu0 %v1460
        %v1575 = vpop.f32.mrb[0].mxu0
        %v1576 = vadd.f32 0.0, %v1575
        %v1577 = vpop.f32.mrb[0].mxu0
        %v1578 = vadd.f32 0.0, %v1577
        %v1579 = vpop.f32.mrb[0].mxu0
        %v1580 = vadd.f32 0.0, %v1579
        %v1581 = vpop.f32.mrb[0].mxu0
        %v1582 = vadd.f32 0.0, %v1581
        %1583 = vmatprep.mubr.bf16.mxu0 0
        %1584 = vmatmul.mubr.bf16.gmra.mrb[0].mxu0 %v1463
        %v1585 = vpop.f32.mrb[0].mxu0
        %v1586 = vadd.f32 0.0, %v1585
        %v1587 = vpop.f32.mrb[0].mxu0
        %v1588 = vadd.f32 0.0, %v1587
        %v1589 = vpop.f32.mrb[0].mxu0
        %v1590 = vadd.f32 0.0, %v1589
        %v1591 = vpop.f32.mrb[0].mxu0
        %v1592 = vadd.f32 0.0, %v1591
        %1593 = vmatprep.mubr.bf16.mxu0 0
        %1594 = vmatmul.mubr.bf16.gmra.mrb[0].mxu0 %v1466
        %v1595 = vpop.f32.mrb[0].mxu0
        %v1596 = vadd.f32 0.0, %v1595
        %v1597 = vpop.f32.mrb[0].mxu0
        %v1598 = vadd.f32 0.0, %v1597
        %v1599 = vpop.f32.mrb[0].mxu0
        %v1600 = vadd.f32 0.0, %v1599
        %v1601 = vpop.f32.mrb[0].mxu0
        %v1602 = vadd.f32 0.0, %v1601
        %1603 = vmatprep.mubr.bf16.mxu0 0
        %1604 = vmatmul.mubr.bf16.gmra.mrb[0].mxu0 %v1469
        %v1605 = vpop.f32.mrb[0].mxu0
        %v1606 = vadd.f32 0.0, %v1605
        %v1607 = vpop.f32.mrb[0].mxu0
        %v1608 = vadd.f32 0.0, %v1607
        %v1609 = vpop.f32.mrb[0].mxu0
        %v1610 = vadd.f32 0.0, %v1609
        %v1611 = vpop.f32.mrb[0].mxu0
        %v1612 = vadd.f32 0.0, %v1611
        %1613 = vmatprep.mubr.bf16.mxu0 0
        %1614 = vmatmul.mubr.bf16.gmra.mrb[0].mxu0 %v1472
        %v1615 = vpop.f32.mrb[0].mxu0
        %v1616 = vadd.f32 0.0, %v1615
        %v1617 = vpop.f32.mrb[0].mxu0
        %v1618 = vadd.f32 0.0, %v1617
        %v1619 = vpop.f32.mrb[0].mxu0
        %v1620 = vadd.f32 0.0, %v1619
        %v1621 = vpop.f32.mrb[0].mxu0
        %v1622 = vadd.f32 0.0, %v1621
        %1623 = vmatprep.mubr.bf16.mxu0 0
        %1624 = vmatmul.mubr.bf16.gmra.mrb[0].mxu0 %v1475
        %v1625 = vpop.f32.mrb[0].mxu0
        %v1626 = vadd.f32 0.0, %v1625
        %v1627 = vpop.f32.mrb[0].mxu0
        %v1628 = vadd.f32 0.0, %v1627
        %v1629 = vpop.f32.mrb[0].mxu0
        %v1630 = vadd.f32 0.0, %v1629
        %v1631 = vpop.f32.mrb[0].mxu0
        %v1632 = vadd.f32 0.0, %v1631
        %1633 = vmatprep.mubr.bf16.mxu0 0
        %1634 = vmatmul.mubr.bf16.gmra.mrb[0].mxu0 %v1478
        %v1635 = vpop.f32.mrb[0].mxu0
        %v1636 = vadd.f32 0.0, %v1635
        %v1637 = vpop.f32.mrb[0].mxu0
        %v1638 = vadd.f32 0.0, %v1637
        %v1639 = vpop.f32.mrb[0].mxu0
        %v1640 = vadd.f32 0.0, %v1639
        %v1641 = vpop.f32.mrb[0].mxu0
        %v1642 = vadd.f32 0.0, %v1641
        %1643 = vmatprep.mubr.bf16.mxu0 0
        %1644 = vmatmul.mubr.bf16.gmra.mrb[0].mxu0 %v1481
        %v1645 = vpop.f32.mrb[0].mxu0
        %v1646 = vadd.f32 0.0, %v1645
        %v1647 = vpop.f32.mrb[0].mxu0
        %v1648 = vpop.f32.mrb[0].mxu0
        %v1649 = vpop.f32.mrb[0].mxu0
        %1650 = vdwg.mxu0
        %1651 = vrot.lane.b32.xlu0 %v873, 96
        %v1652 = vpop.permute.xlu0 %1651
        %1653 = vrot.lane.b32.xlu0 %v875, 96
        %v1654 = vpop.permute.xlu0 %1653
        %1655 = vrot.lane.b32.xlu0 %v877, 96
        %v1656 = vpop.permute.xlu0 %1655
        %1657 = vrot.lane.b32.xlu0 %v879, 96
        %v1658 = vpop.permute.xlu0 %1657
        %1659 = vrot.lane.b32.xlu0 %v881, 96
        %v1660 = vpop.permute.xlu0 %1659
        %1661 = vrot.lane.b32.xlu0 %v883, 96
        %v1662 = vpop.permute.xlu0 %1661
        %1663 = vrot.lane.b32.xlu0 %v885, 96
        %v1664 = vpop.permute.xlu0 %1663
        %1665 = vrot.lane.b32.xlu0 %v887, 96
        %v1666 = vpop.permute.xlu0 %1665
        %1667 = vrot.lane.b32.xlu0 %v1165, 96
        %v1668 = vpop.permute.xlu0 %1667
        %1669 = vrot.lane.b32.xlu0 %v1167, 96
        %v1670 = vpop.permute.xlu0 %1669
        %1671 = vrot.lane.b32.xlu0 %v1169, 96
        %v1672 = vpop.permute.xlu0 %1671
        %1673 = vrot.lane.b32.xlu0 %v1171, 96
        %v1674 = vpop.permute.xlu0 %1673
        %1675 = vrot.lane.b32.xlu0 %v1173, 96
        %v1676 = vpop.permute.xlu0 %1675
        %1677 = vrot.lane.b32.xlu0 %v1175, 96
        %v1678 = vpop.permute.xlu0 %1677
        %1679 = vrot.lane.b32.xlu0 %v1177, 96
        %v1680 = vpop.permute.xlu0 %1679
        %1681 = vrot.lane.b32.xlu0 %v1179, 96
        %v1682 = vpop.permute.xlu0 %1681
        %v1684 = vsel %vm1228, %v873, 0
        %v1687 = vsel %vm1228, %v875, 0
        %v1690 = vsel %vm1228, %v877, 0
        %v1693 = vsel %vm1228, %v879, 0
        %v1696 = vsel %vm1228, %v881, 0
        %v1699 = vsel %vm1228, %v883, 0
        %v1702 = vsel %vm1228, %v885, 0
        %v1705 = vsel %vm1228, %v887, 0
        %v1708 = vsel %vm1228, %v906, 0
        %v1711 = vsel %vm1228, %v1652, 0
        %v1714 = vsel %vm1228, %v1654, 0
        %v1717 = vsel %vm1228, %v1656, 0
        %v1720 = vsel %vm1228, %v1658, 0
        %v1723 = vsel %vm1228, %v1660, 0
        %v1726 = vsel %vm1228, %v1662, 0
        %v1729 = vsel %vm1228, %v1664, 0
        %v1732 = vsel %vm1228, %v1666, 0
        %v1735 = vsel %vm1228, %v1668, 0
        %v1738 = vsel %vm1228, %v1670, 0
        %v1741 = vsel %vm1228, %v1672, 0
        %v1744 = vsel %vm1228, %v1674, 0
        %v1747 = vsel %vm1228, %v1676, 0
        %v1750 = vsel %vm1228, %v1678, 0
        %v1753 = vsel %vm1228, %v1680, 0
        %v1756 = vsel %vm1228, %v1682, 0
        %1758 = vmatprep.subr.bf16.mxu0 0
        %1759 = vmatpush1.bf16.xpose.msra.mxu0 %v1711
        %1760 = vmatprep.subr.bf16.mxu0 0
        %1761 = vmatpush1.bf16.xpose.msra.mxu0 %v1714
        %1762 = vmatprep.subr.bf16.mxu0 0
        %1763 = vmatpush1.bf16.xpose.msra.mxu0 %v1717
        %1764 = vmatprep.subr.bf16.mxu0 0
        %1765 = vmatpush1.bf16.xpose.msra.mxu0 %v1720
        %1766 = vmatprep.subr.bf16.mxu0 0
        %1767 = vmatpush1.bf16.xpose.msra.mxu0 %v1723
        %1768 = vmatprep.subr.bf16.mxu0 0
        %1769 = vmatpush1.bf16.xpose.msra.mxu0 %v1726
        %1770 = vmatprep.subr.bf16.mxu0 0
        %1771 = vmatpush1.bf16.xpose.msra.mxu0 %v1729
        %1772 = vmatprep.subr.bf16.mxu0 0
        %1773 = vmatpush1.bf16.xpose.msra.mxu0 %v1732
        %1774 = vmatprep.subr.bf16.mxu0 0
        %1775 = vmatpush1.bf16.xpose.msra.mxu0 %v1735
        %1776 = vmatprep.subr.bf16.mxu0 0
        %1777 = vmatpush1.bf16.xpose.msra.mxu0 %v1738
        %1778 = vmatprep.subr.bf16.mxu0 0
        %1779 = vmatpush1.bf16.xpose.msra.mxu0 %v1741
        %1780 = vmatprep.subr.bf16.mxu0 0
        %1781 = vmatpush1.bf16.xpose.msra.mxu0 %v1744
        %1782 = vmatprep.subr.bf16.mxu0 0
        %1783 = vmatpush1.bf16.xpose.msra.mxu0 %v1747
        %1784 = vmatprep.subr.bf16.mxu0 0
        %1785 = vmatpush1.bf16.xpose.msra.mxu0 %v1750
        %1786 = vmatprep.subr.bf16.mxu0 0
        %1787 = vmatpush1.bf16.xpose.msra.mxu0 %v1753
        %1788 = vmatprep.subr.bf16.mxu0 0
        %1789 = vmatpush1.bf16.xpose.msra.mxu0 %v1756
        %1790 = vmatprep.mubr.bf16.mxu0 0
        %1791 = vmatmul.mubr.bf16.gmra.mrb[0].mxu0 %v1684
        %v1792 = vpop.f32.mrb[0].mxu0
        %v1793 = vadd.f32 0.0, %v1792
        %v1794 = vpop.f32.mrb[0].mxu0
        %v1795 = vadd.f32 0.0, %v1794
        %v1796 = vpop.f32.mrb[0].mxu0
        %v1797 = vadd.f32 0.0, %v1796
        %v1798 = vpop.f32.mrb[0].mxu0
        %v1799 = vadd.f32 0.0, %v1798
        %1800 = vmatprep.mubr.bf16.mxu0 0
        %1801 = vmatmul.mubr.bf16.gmra.mrb[0].mxu0 %v1687
        %v1802 = vpop.f32.mrb[0].mxu0
        %v1803 = vadd.f32 0.0, %v1802
        %v1804 = vpop.f32.mrb[0].mxu0
        %v1805 = vadd.f32 0.0, %v1804
        %v1806 = vpop.f32.mrb[0].mxu0
        %v1807 = vadd.f32 0.0, %v1806
        %v1808 = vpop.f32.mrb[0].mxu0
        %v1809 = vadd.f32 0.0, %v1808
        %1810 = vmatprep.mubr.bf16.mxu0 0
        %1811 = vmatmul.mubr.bf16.gmra.mrb[0].mxu0 %v1690
        %v1812 = vpop.f32.mrb[0].mxu0
        %v1813 = vadd.f32 0.0, %v1812
        %v1814 = vpop.f32.mrb[0].mxu0
        %v1815 = vadd.f32 0.0, %v1814
        %v1816 = vpop.f32.mrb[0].mxu0
        %v1817 = vadd.f32 0.0, %v1816
        %v1818 = vpop.f32.mrb[0].mxu0
        %v1819 = vadd.f32 0.0, %v1818
        %1820 = vmatprep.mubr.bf16.mxu0 0
        %1821 = vmatmul.mubr.bf16.gmra.mrb[0].mxu0 %v1693
        %v1822 = vpop.f32.mrb[0].mxu0
        %v1823 = vadd.f32 0.0, %v1822
        %v1824 = vpop.f32.mrb[0].mxu0
        %v1825 = vadd.f32 0.0, %v1824
        %v1826 = vpop.f32.mrb[0].mxu0
        %v1827 = vadd.f32 0.0, %v1826
        %v1828 = vpop.f32.mrb[0].mxu0
        %v1829 = vadd.f32 0.0, %v1828
        %1830 = vmatprep.mubr.bf16.mxu0 0
        %1831 = vmatmul.mubr.bf16.gmra.mrb[0].mxu0 %v1696
        %v1832 = vpop.f32.mrb[0].mxu0
        %v1833 = vadd.f32 0.0, %v1832
        %v1834 = vpop.f32.mrb[0].mxu0
        %v1835 = vadd.f32 0.0, %v1834
        %v1836 = vpop.f32.mrb[0].mxu0
        %v1837 = vadd.f32 0.0, %v1836
        %v1838 = vpop.f32.mrb[0].mxu0
        %v1839 = vadd.f32 0.0, %v1838
        %1840 = vmatprep.mubr.bf16.mxu0 0
        %1841 = vmatmul.mubr.bf16.gmra.mrb[0].mxu0 %v1699
        %v1842 = vpop.f32.mrb[0].mxu0
        %v1843 = vadd.f32 0.0, %v1842
        %v1844 = vpop.f32.mrb[0].mxu0
        %v1845 = vadd.f32 0.0, %v1844
        %v1846 = vpop.f32.mrb[0].mxu0
        %v1847 = vadd.f32 0.0, %v1846
        %v1848 = vpop.f32.mrb[0].mxu0
        %v1849 = vadd.f32 0.0, %v1848
        %1850 = vmatprep.mubr.bf16.mxu0 0
        %1851 = vmatmul.mubr.bf16.gmra.mrb[0].mxu0 %v1702
        %v1852 = vpop.f32.mrb[0].mxu0
        %v1853 = vadd.f32 0.0, %v1852
        %v1854 = vpop.f32.mrb[0].mxu0
        %v1855 = vadd.f32 0.0, %v1854
        %v1856 = vpop.f32.mrb[0].mxu0
        %v1857 = vadd.f32 0.0, %v1856
        %v1858 = vpop.f32.mrb[0].mxu0
        %v1859 = vadd.f32 0.0, %v1858
        %1860 = vmatprep.mubr.bf16.mxu0 0
        %1861 = vmatmul.mubr.bf16.gmra.mrb[0].mxu0 %v1705
        %v1862 = vpop.f32.mrb[0].mxu0
        %v1863 = vadd.f32 0.0, %v1862
        %v1864 = vpop.f32.mrb[0].mxu0
        %v1865 = vadd.f32 0.0, %v1864
        %v1866 = vpop.f32.mrb[0].mxu0
        %v1867 = vadd.f32 0.0, %v1866
        %v1868 = vpop.f32.mrb[0].mxu0
        %v1869 = vadd.f32 0.0, %v1868
        %1870 = vmatprep.mubr.bf16.mxu0 0
        %1871 = vmatmul.mubr.bf16.gmra.mrb[0].mxu0 %v1708
        %v1872 = vpop.f32.mrb[0].mxu0
        %v1873 = vadd.f32 0.0, %v1872
        %v1874 = vpop.f32.mrb[0].mxu0
        %v1875 = vpop.f32.mrb[0].mxu0
        %v1876 = vpop.f32.mrb[0].mxu0
        %1877 = vdwg.mxu0
        %1878 = vrot.lane.b32.xlu0 %v889, 96
        %v1879 = vpop.permute.xlu0 %1878
        %1880 = vrot.lane.b32.xlu0 %v891, 96
        %v1881 = vpop.permute.xlu0 %1880
        %1882 = vrot.lane.b32.xlu0 %v893, 96
        %v1883 = vpop.permute.xlu0 %1882
        %1884 = vrot.lane.b32.xlu0 %v895, 96
        %v1885 = vpop.permute.xlu0 %1884
        %1886 = vrot.lane.b32.xlu0 %v897, 96
        %v1887 = vpop.permute.xlu0 %1886
        %1888 = vrot.lane.b32.xlu0 %v899, 96
        %v1889 = vpop.permute.xlu0 %1888
        %1890 = vrot.lane.b32.xlu0 %v901, 96
        %v1891 = vpop.permute.xlu0 %1890
        %1892 = vrot.lane.b32.xlu0 %v903, 96
        %v1893 = vpop.permute.xlu0 %1892
        %1894 = vrot.lane.b32.xlu0 %v1181, 96
        %v1895 = vpop.permute.xlu0 %1894
        %1896 = vrot.lane.b32.xlu0 %v1183, 96
        %v1897 = vpop.permute.xlu0 %1896
        %1898 = vrot.lane.b32.xlu0 %v1185, 96
        %v1899 = vpop.permute.xlu0 %1898
        %1900 = vrot.lane.b32.xlu0 %v1187, 96
        %v1901 = vpop.permute.xlu0 %1900
        %1902 = vrot.lane.b32.xlu0 %v1189, 96
        %v1903 = vpop.permute.xlu0 %1902
        %1904 = vrot.lane.b32.xlu0 %v1191, 96
        %v1905 = vpop.permute.xlu0 %1904
        %1906 = vrot.lane.b32.xlu0 %v1193, 96
        %v1907 = vpop.permute.xlu0 %1906
        %1908 = vrot.lane.b32.xlu0 %v1195, 96
        %v1909 = vpop.permute.xlu0 %1908
        %v1911 = vsel %vm1228, %v889, 0
        %v1914 = vsel %vm1228, %v891, 0
        %v1917 = vsel %vm1228, %v893, 0
        %v1920 = vsel %vm1228, %v895, 0
        %v1923 = vsel %vm1228, %v897, 0
        %v1926 = vsel %vm1228, %v899, 0
        %v1929 = vsel %vm1228, %v901, 0
        %v1932 = vsel %vm1228, %v903, 0
        %v1935 = vsel %vm1228, %v907, 0
        %v1938 = vsel %vm1228, %v1879, 0
        %v1941 = vsel %vm1228, %v1881, 0
        %v1944 = vsel %vm1228, %v1883, 0
        %v1947 = vsel %vm1228, %v1885, 0
        %v1950 = vsel %vm1228, %v1887, 0
        %v1953 = vsel %vm1228, %v1889, 0
        %v1956 = vsel %vm1228, %v1891, 0
        %v1959 = vsel %vm1228, %v1893, 0
        %v1962 = vsel %vm1228, %v1895, 0
        %v1965 = vsel %vm1228, %v1897, 0
        %v1968 = vsel %vm1228, %v1899, 0
        %v1971 = vsel %vm1228, %v1901, 0
        %v1974 = vsel %vm1228, %v1903, 0
        %v1977 = vsel %vm1228, %v1905, 0
        %v1980 = vsel %vm1228, %v1907, 0
        %v1983 = vsel %vm1228, %v1909, 0
        %1985 = vmatprep.subr.bf16.mxu0 0
        %1986 = vmatpush1.bf16.xpose.msra.mxu0 %v1938
        %1987 = vmatprep.subr.bf16.mxu0 0
        %1988 = vmatpush1.bf16.xpose.msra.mxu0 %v1941
        %1989 = vmatprep.subr.bf16.mxu0 0
        %1990 = vmatpush1.bf16.xpose.msra.mxu0 %v1944
        %1991 = vmatprep.subr.bf16.mxu0 0
        %1992 = vmatpush1.bf16.xpose.msra.mxu0 %v1947
        %1993 = vmatprep.subr.bf16.mxu0 0
        %1994 = vmatpush1.bf16.xpose.msra.mxu0 %v1950
        %1995 = vmatprep.subr.bf16.mxu0 0
        %1996 = vmatpush1.bf16.xpose.msra.mxu0 %v1953
        %1997 = vmatprep.subr.bf16.mxu0 0
        %1998 = vmatpush1.bf16.xpose.msra.mxu0 %v1956
        %1999 = vmatprep.subr.bf16.mxu0 0
        %2000 = vmatpush1.bf16.xpose.msra.mxu0 %v1959
        %2001 = vmatprep.subr.bf16.mxu0 0
        %2002 = vmatpush1.bf16.xpose.msra.mxu0 %v1962
        %2003 = vmatprep.subr.bf16.mxu0 0
        %2004 = vmatpush1.bf16.xpose.msra.mxu0 %v1965
        %2005 = vmatprep.subr.bf16.mxu0 0
        %2006 = vmatpush1.bf16.xpose.msra.mxu0 %v1968
        %2007 = vmatprep.subr.bf16.mxu0 0
        %2008 = vmatpush1.bf16.xpose.msra.mxu0 %v1971
        %2009 = vmatprep.subr.bf16.mxu0 0
        %2010 = vmatpush1.bf16.xpose.msra.mxu0 %v1974
        %2011 = vmatprep.subr.bf16.mxu0 0
        %2012 = vmatpush1.bf16.xpose.msra.mxu0 %v1977
        %2013 = vmatprep.subr.bf16.mxu0 0
        %2014 = vmatpush1.bf16.xpose.msra.mxu0 %v1980
        %2015 = vmatprep.subr.bf16.mxu0 0
        %2016 = vmatpush1.bf16.xpose.msra.mxu0 %v1983
        %2017 = vmatprep.mubr.bf16.mxu0 0
        %2018 = vmatmul.mubr.bf16.gmra.mrb[0].mxu0 %v1911
        %v2019 = vpop.f32.mrb[0].mxu0
        %v2020 = vadd.f32 0.0, %v2019
        %v2021 = vpop.f32.mrb[0].mxu0
        %v2022 = vadd.f32 0.0, %v2021
        %v2023 = vpop.f32.mrb[0].mxu0
        %v2024 = vadd.f32 0.0, %v2023
        %v2025 = vpop.f32.mrb[0].mxu0
        %v2026 = vadd.f32 0.0, %v2025
        %2027 = vmatprep.mubr.bf16.mxu0 0
        %2028 = vmatmul.mubr.bf16.gmra.mrb[0].mxu0 %v1914
        %v2029 = vpop.f32.mrb[0].mxu0
        %v2030 = vadd.f32 0.0, %v2029
        %v2031 = vpop.f32.mrb[0].mxu0
        %v2032 = vadd.f32 0.0, %v2031
        %v2033 = vpop.f32.mrb[0].mxu0
        %v2034 = vadd.f32 0.0, %v2033
        %v2035 = vpop.f32.mrb[0].mxu0
        %v2036 = vadd.f32 0.0, %v2035
        %2037 = vmatprep.mubr.bf16.mxu0 0
        %2038 = vmatmul.mubr.bf16.gmra.mrb[0].mxu0 %v1917
        %v2039 = vpop.f32.mrb[0].mxu0
        %v2040 = vadd.f32 0.0, %v2039
        %v2041 = vpop.f32.mrb[0].mxu0
        %v2042 = vadd.f32 0.0, %v2041
        %v2043 = vpop.f32.mrb[0].mxu0
        %v2044 = vadd.f32 0.0, %v2043
        %v2045 = vpop.f32.mrb[0].mxu0
        %v2046 = vadd.f32 0.0, %v2045
        %2047 = vmatprep.mubr.bf16.mxu0 0
        %2048 = vmatmul.mubr.bf16.gmra.mrb[0].mxu0 %v1920
        %v2049 = vpop.f32.mrb[0].mxu0
        %v2050 = vadd.f32 0.0, %v2049
        %v2051 = vpop.f32.mrb[0].mxu0
        %v2052 = vadd.f32 0.0, %v2051
        %v2053 = vpop.f32.mrb[0].mxu0
        %v2054 = vadd.f32 0.0, %v2053
        %v2055 = vpop.f32.mrb[0].mxu0
        %v2056 = vadd.f32 0.0, %v2055
        %2057 = vmatprep.mubr.bf16.mxu0 0
        %2058 = vmatmul.mubr.bf16.gmra.mrb[0].mxu0 %v1923
        %v2059 = vpop.f32.mrb[0].mxu0
        %v2060 = vadd.f32 0.0, %v2059
        %v2061 = vpop.f32.mrb[0].mxu0
        %v2062 = vadd.f32 0.0, %v2061
        %v2063 = vpop.f32.mrb[0].mxu0
        %v2064 = vadd.f32 0.0, %v2063
        %v2065 = vpop.f32.mrb[0].mxu0
        %v2066 = vadd.f32 0.0, %v2065
        %2067 = vmatprep.mubr.bf16.mxu0 0
        %2068 = vmatmul.mubr.bf16.gmra.mrb[0].mxu0 %v1926
        %v2069 = vpop.f32.mrb[0].mxu0
        %v2070 = vadd.f32 0.0, %v2069
        %v2071 = vpop.f32.mrb[0].mxu0
        %v2072 = vadd.f32 0.0, %v2071
        %v2073 = vpop.f32.mrb[0].mxu0
        %v2074 = vadd.f32 0.0, %v2073
        %v2075 = vpop.f32.mrb[0].mxu0
        %v2076 = vadd.f32 0.0, %v2075
        %2077 = vmatprep.mubr.bf16.mxu0 0
        %2078 = vmatmul.mubr.bf16.gmra.mrb[0].mxu0 %v1929
        %v2079 = vpop.f32.mrb[0].mxu0
        %v2080 = vadd.f32 0.0, %v2079
        %v2081 = vpop.f32.mrb[0].mxu0
        %v2082 = vadd.f32 0.0, %v2081
        %v2083 = vpop.f32.mrb[0].mxu0
        %v2084 = vadd.f32 0.0, %v2083
        %v2085 = vpop.f32.mrb[0].mxu0
        %v2086 = vadd.f32 0.0, %v2085
        %2087 = vmatprep.mubr.bf16.mxu0 0
        %2088 = vmatmul.mubr.bf16.gmra.mrb[0].mxu0 %v1932
        %v2089 = vpop.f32.mrb[0].mxu0
        %v2090 = vadd.f32 0.0, %v2089
        %v2091 = vpop.f32.mrb[0].mxu0
        %v2092 = vadd.f32 0.0, %v2091
        %v2093 = vpop.f32.mrb[0].mxu0
        %v2094 = vadd.f32 0.0, %v2093
        %v2095 = vpop.f32.mrb[0].mxu0
        %v2096 = vadd.f32 0.0, %v2095
        %2097 = vmatprep.mubr.bf16.mxu0 0
        %2098 = vmatmul.mubr.bf16.gmra.mrb[0].mxu0 %v1935
        %v2099 = vpop.f32.mrb[0].mxu0
        %v2100 = vadd.f32 0.0, %v2099
        %v2101 = vpop.f32.mrb[0].mxu0
        %v2102 = vpop.f32.mrb[0].mxu0
        %v2103 = vpop.f32.mrb[0].mxu0
        %2104 = vdwg.mxu0
        %v2105 = vlaneseq
        %v2106 = vshrl.u32 %v2105, 7
        %v2107 = vsub.s32 0, %v2106
        %v2108 = vrot.slane %v1419, %v2107
        %v2109 = vlaneseq
        %v2110 = vshrl.u32 %v2109, 7
        %v2111 = vsub.s32 0, %v2110
        %v2112 = vrot.slane %v1646, %v2111
        %v2113 = vlaneseq
        %v2114 = vshrl.u32 %v2113, 7
        %v2115 = vsub.s32 0, %v2114
        %v2116 = vrot.slane %v1873, %v2115
        %v2117 = vlaneseq
        %v2118 = vshrl.u32 %v2117, 7
        %v2119 = vsub.s32 0, %v2118
        %v2120 = vrot.slane %v2100, %v2119
        %v2121 = vadd.f32 %v1339, %v2108
        %v2122 = vadd.f32 %v1343, %v2108
        %v2123 = vadd.f32 %v1349, %v2108
        %v2124 = vadd.f32 %v1353, %v2108
        %v2125 = vadd.f32 %v1359, %v2108
        %v2126 = vadd.f32 %v1363, %v2108
        %v2127 = vadd.f32 %v1369, %v2108
        %v2128 = vadd.f32 %v1373, %v2108
        %v2129 = vadd.f32 %v1379, %v2108
        %v2130 = vadd.f32 %v1383, %v2108
        %v2131 = vadd.f32 %v1389, %v2108
        %v2132 = vadd.f32 %v1393, %v2108
        %v2133 = vadd.f32 %v1399, %v2108
        %v2134 = vadd.f32 %v1403, %v2108
        %v2135 = vadd.f32 %v1409, %v2108
        %v2136 = vadd.f32 %v1413, %v2108
        %v2137 = vadd.f32 %v1566, %v2112
        %v2138 = vadd.f32 %v1570, %v2112
        %v2139 = vadd.f32 %v1576, %v2112
        %v2140 = vadd.f32 %v1580, %v2112
        %v2141 = vadd.f32 %v1586, %v2112
        %v2142 = vadd.f32 %v1590, %v2112
        %v2143 = vadd.f32 %v1596, %v2112
        %v2144 = vadd.f32 %v1600, %v2112
        %v2145 = vadd.f32 %v1606, %v2112
        %v2146 = vadd.f32 %v1610, %v2112
        %v2147 = vadd.f32 %v1616, %v2112
        %v2148 = vadd.f32 %v1620, %v2112
        %v2149 = vadd.f32 %v1626, %v2112
        %v2150 = vadd.f32 %v1630, %v2112
        %v2151 = vadd.f32 %v1636, %v2112
        %v2152 = vadd.f32 %v1640, %v2112
        %v2153 = vadd.f32 %v1793, %v2116
        %v2154 = vadd.f32 %v1797, %v2116
        %v2155 = vadd.f32 %v1803, %v2116
        %v2156 = vadd.f32 %v1807, %v2116
        %v2157 = vadd.f32 %v1813, %v2116
        %v2158 = vadd.f32 %v1817, %v2116
        %v2159 = vadd.f32 %v1823, %v2116
        %v2160 = vadd.f32 %v1827, %v2116
        %v2161 = vadd.f32 %v1833, %v2116
        %v2162 = vadd.f32 %v1837, %v2116
        %v2163 = vadd.f32 %v1843, %v2116
        %v2164 = vadd.f32 %v1847, %v2116
        %v2165 = vadd.f32 %v1853, %v2116
        %v2166 = vadd.f32 %v1857, %v2116
        %v2167 = vadd.f32 %v1863, %v2116
        %v2168 = vadd.f32 %v1867, %v2116
        %v2169 = vadd.f32 %v2020, %v2120
        %v2170 = vadd.f32 %v2024, %v2120
        %v2171 = vadd.f32 %v2030, %v2120
        %v2172 = vadd.f32 %v2034, %v2120
        %v2173 = vadd.f32 %v2040, %v2120
        %v2174 = vadd.f32 %v2044, %v2120
        %v2175 = vadd.f32 %v2050, %v2120
        %v2176 = vadd.f32 %v2054, %v2120
        %v2177 = vadd.f32 %v2060, %v2120
        %v2178 = vadd.f32 %v2064, %v2120
        %v2179 = vadd.f32 %v2070, %v2120
        %v2180 = vadd.f32 %v2074, %v2120
        %v2181 = vadd.f32 %v2080, %v2120
        %v2182 = vadd.f32 %v2084, %v2120
        %v2183 = vadd.f32 %v2090, %v2120
        %v2184 = vadd.f32 %v2094, %v2120
        %v2185 = vld [vmem:[#allocation14] sm:$0x1]
        %v2186 = vld [vmem:[#allocation14 + $0x1] sm:$0x1]
        %v2187 = vld [vmem:[#allocation14 + $0x2] sm:$0x1]
        %v2188 = vld [vmem:[#allocation14 + $0x3] sm:$0x1]
        %v2193 = vlaneseq
        %v2194 = vshrl.u32 %v2193, 7
        %v2195 = vsub.s32 0, %v2194
        %v2196 = vrot.slane %v2185, %v2195
        %v2197 = vlaneseq
        %v2198 = vshrl.u32 %v2197, 7
        %v2199 = vsub.s32 0, %v2198
        %v2200 = vrot.slane %v2186, %v2199
        %v2201 = vlaneseq
        %v2202 = vshrl.u32 %v2201, 7
        %v2203 = vsub.s32 0, %v2202
        %v2204 = vrot.slane %v2187, %v2203
        %v2205 = vlaneseq
        %v2206 = vshrl.u32 %v2205, 7
        %v2207 = vsub.s32 0, %v2206
        %v2208 = vrot.slane %v2188, %v2207
        %v2213 = vadd.f32 %v1341, %v2196
        %v2214 = vadd.f32 %v1345, %v2196
        %v2215 = vadd.f32 %v1351, %v2196
        %v2216 = vadd.f32 %v1355, %v2196
        %v2217 = vadd.f32 %v1361, %v2196
        %v2218 = vadd.f32 %v1365, %v2196
        %v2219 = vadd.f32 %v1371, %v2196
        %v2220 = vadd.f32 %v1375, %v2196
        %v2221 = vadd.f32 %v1381, %v2196
        %v2222 = vadd.f32 %v1385, %v2196
        %v2223 = vadd.f32 %v1391, %v2196
        %v2224 = vadd.f32 %v1395, %v2196
        %v2225 = vadd.f32 %v1401, %v2196
        %v2226 = vadd.f32 %v1405, %v2196
        %v2227 = vadd.f32 %v1411, %v2196
        %v2228 = vadd.f32 %v1415, %v2196
        %v2229 = vadd.f32 %v1568, %v2200
        %v2230 = vadd.f32 %v1572, %v2200
        %v2231 = vadd.f32 %v1578, %v2200
        %v2232 = vadd.f32 %v1582, %v2200
        %v2233 = vadd.f32 %v1588, %v2200
        %v2234 = vadd.f32 %v1592, %v2200
        %v2235 = vadd.f32 %v1598, %v2200
        %v2236 = vadd.f32 %v1602, %v2200
        %v2237 = vadd.f32 %v1608, %v2200
        %v2238 = vadd.f32 %v1612, %v2200
        %v2239 = vadd.f32 %v1618, %v2200
        %v2240 = vadd.f32 %v1622, %v2200
        %v2241 = vadd.f32 %v1628, %v2200
        %v2242 = vadd.f32 %v1632, %v2200
        %v2243 = vadd.f32 %v1638, %v2200
        %v2244 = vadd.f32 %v1642, %v2200
        %v2245 = vadd.f32 %v1795, %v2204
        %v2246 = vadd.f32 %v1799, %v2204
        %v2247 = vadd.f32 %v1805, %v2204
        %v2248 = vadd.f32 %v1809, %v2204
        %v2249 = vadd.f32 %v1815, %v2204
        %v2250 = vadd.f32 %v1819, %v2204
        %v2251 = vadd.f32 %v1825, %v2204
        %v2252 = vadd.f32 %v1829, %v2204
        %v2253 = vadd.f32 %v1835, %v2204
        %v2254 = vadd.f32 %v1839, %v2204
        %v2255 = vadd.f32 %v1845, %v2204
        %v2256 = vadd.f32 %v1849, %v2204
        %v2257 = vadd.f32 %v1855, %v2204
        %v2258 = vadd.f32 %v1859, %v2204
        %v2259 = vadd.f32 %v1865, %v2204
        %v2260 = vadd.f32 %v1869, %v2204
        %v2261 = vadd.f32 %v2022, %v2208
        %v2262 = vadd.f32 %v2026, %v2208
        %v2263 = vadd.f32 %v2032, %v2208
        %v2264 = vadd.f32 %v2036, %v2208
        %v2265 = vadd.f32 %v2042, %v2208
        %v2266 = vadd.f32 %v2046, %v2208
        %v2267 = vadd.f32 %v2052, %v2208
        %v2268 = vadd.f32 %v2056, %v2208
        %v2269 = vadd.f32 %v2062, %v2208
        %v2270 = vadd.f32 %v2066, %v2208
        %v2271 = vadd.f32 %v2072, %v2208
        %v2272 = vadd.f32 %v2076, %v2208
        %v2273 = vadd.f32 %v2082, %v2208
        %v2274 = vadd.f32 %v2086, %v2208
        %v2275 = vadd.f32 %v2092, %v2208
        %v2276 = vadd.f32 %v2096, %v2208
        %2277 = vrot.lane.b32.xlu0 %v2213, 1
        %v2278 = vpop.permute.xlu0 %2277
        %2279 = vrot.lane.b32.xlu0 %v2214, 1
        %v2280 = vpop.permute.xlu0 %2279
        %2281 = vrot.lane.b32.xlu0 %v2215, 1
        %v2282 = vpop.permute.xlu0 %2281
        %2283 = vrot.lane.b32.xlu0 %v2216, 1
        %v2284 = vpop.permute.xlu0 %2283
        %2285 = vrot.lane.b32.xlu0 %v2217, 1
        %v2286 = vpop.permute.xlu0 %2285
        %2287 = vrot.lane.b32.xlu0 %v2218, 1
        %v2288 = vpop.permute.xlu0 %2287
        %2289 = vrot.lane.b32.xlu0 %v2219, 1
        %v2290 = vpop.permute.xlu0 %2289
        %2291 = vrot.lane.b32.xlu0 %v2220, 1
        %v2292 = vpop.permute.xlu0 %2291
        %2293 = vrot.lane.b32.xlu0 %v2221, 1
        %v2294 = vpop.permute.xlu0 %2293
        %2295 = vrot.lane.b32.xlu0 %v2222, 1
        %v2296 = vpop.permute.xlu0 %2295
        %2297 = vrot.lane.b32.xlu0 %v2223, 1
        %v2298 = vpop.permute.xlu0 %2297
        %2299 = vrot.lane.b32.xlu0 %v2224, 1
        %v2300 = vpop.permute.xlu0 %2299
        %2301 = vrot.lane.b32.xlu0 %v2225, 1
        %v2302 = vpop.permute.xlu0 %2301
        %2303 = vrot.lane.b32.xlu0 %v2226, 1
        %v2304 = vpop.permute.xlu0 %2303
        %2305 = vrot.lane.b32.xlu0 %v2227, 1
        %v2306 = vpop.permute.xlu0 %2305
        %2307 = vrot.lane.b32.xlu0 %v2228, 1
        %v2308 = vpop.permute.xlu0 %2307
        %2309 = vrot.lane.b32.xlu0 %v2229, 1
        %v2310 = vpop.permute.xlu0 %2309
        %2311 = vrot.lane.b32.xlu0 %v2230, 1
        %v2312 = vpop.permute.xlu0 %2311
        %2313 = vrot.lane.b32.xlu0 %v2231, 1
        %v2314 = vpop.permute.xlu0 %2313
        %2315 = vrot.lane.b32.xlu0 %v2232, 1
        %v2316 = vpop.permute.xlu0 %2315
        %2317 = vrot.lane.b32.xlu0 %v2233, 1
        %v2318 = vpop.permute.xlu0 %2317
        %2319 = vrot.lane.b32.xlu0 %v2234, 1
        %v2320 = vpop.permute.xlu0 %2319
        %2321 = vrot.lane.b32.xlu0 %v2235, 1
        %v2322 = vpop.permute.xlu0 %2321
        %2323 = vrot.lane.b32.xlu0 %v2236, 1
        %v2324 = vpop.permute.xlu0 %2323
        %2325 = vrot.lane.b32.xlu0 %v2237, 1
        %v2326 = vpop.permute.xlu0 %2325
        %2327 = vrot.lane.b32.xlu0 %v2238, 1
        %v2328 = vpop.permute.xlu0 %2327
        %2329 = vrot.lane.b32.xlu0 %v2239, 1
        %v2330 = vpop.permute.xlu0 %2329
        %2331 = vrot.lane.b32.xlu0 %v2240, 1
        %v2332 = vpop.permute.xlu0 %2331
        %2333 = vrot.lane.b32.xlu0 %v2241, 1
        %v2334 = vpop.permute.xlu0 %2333
        %2335 = vrot.lane.b32.xlu0 %v2242, 1
        %v2336 = vpop.permute.xlu0 %2335
        %2337 = vrot.lane.b32.xlu0 %v2243, 1
        %v2338 = vpop.permute.xlu0 %2337
        %2339 = vrot.lane.b32.xlu0 %v2244, 1
        %v2340 = vpop.permute.xlu0 %2339
        %2341 = vrot.lane.b32.xlu0 %v2245, 1
        %v2342 = vpop.permute.xlu0 %2341
        %2343 = vrot.lane.b32.xlu0 %v2246, 1
        %v2344 = vpop.permute.xlu0 %2343
        %2345 = vrot.lane.b32.xlu0 %v2247, 1
        %v2346 = vpop.permute.xlu0 %2345
        %2347 = vrot.lane.b32.xlu0 %v2248, 1
        %v2348 = vpop.permute.xlu0 %2347
        %2349 = vrot.lane.b32.xlu0 %v2249, 1
        %v2350 = vpop.permute.xlu0 %2349
        %2351 = vrot.lane.b32.xlu0 %v2250, 1
        %v2352 = vpop.permute.xlu0 %2351
        %2353 = vrot.lane.b32.xlu0 %v2251, 1
        %v2354 = vpop.permute.xlu0 %2353
        %2355 = vrot.lane.b32.xlu0 %v2252, 1
        %v2356 = vpop.permute.xlu0 %2355
        %2357 = vrot.lane.b32.xlu0 %v2253, 1
        %v2358 = vpop.permute.xlu0 %2357
        %2359 = vrot.lane.b32.xlu0 %v2254, 1
        %v2360 = vpop.permute.xlu0 %2359
        %2361 = vrot.lane.b32.xlu0 %v2255, 1
        %v2362 = vpop.permute.xlu0 %2361
        %2363 = vrot.lane.b32.xlu0 %v2256, 1
        %v2364 = vpop.permute.xlu0 %2363
        %2365 = vrot.lane.b32.xlu0 %v2257, 1
        %v2366 = vpop.permute.xlu0 %2365
        %2367 = vrot.lane.b32.xlu0 %v2258, 1
        %v2368 = vpop.permute.xlu0 %2367
        %2369 = vrot.lane.b32.xlu0 %v2259, 1
        %v2370 = vpop.permute.xlu0 %2369
        %2371 = vrot.lane.b32.xlu0 %v2260, 1
        %v2372 = vpop.permute.xlu0 %2371
        %2373 = vrot.lane.b32.xlu0 %v2261, 1
        %v2374 = vpop.permute.xlu0 %2373
        %2375 = vrot.lane.b32.xlu0 %v2262, 1
        %v2376 = vpop.permute.xlu0 %2375
        %2377 = vrot.lane.b32.xlu0 %v2263, 1
        %v2378 = vpop.permute.xlu0 %2377
        %2379 = vrot.lane.b32.xlu0 %v2264, 1
        %v2380 = vpop.permute.xlu0 %2379
        %2381 = vrot.lane.b32.xlu0 %v2265, 1
        %v2382 = vpop.permute.xlu0 %2381
        %2383 = vrot.lane.b32.xlu0 %v2266, 1
        %v2384 = vpop.permute.xlu0 %2383
        %2385 = vrot.lane.b32.xlu0 %v2267, 1
        %v2386 = vpop.permute.xlu0 %2385
        %2387 = vrot.lane.b32.xlu0 %v2268, 1
        %v2388 = vpop.permute.xlu0 %2387
        %2389 = vrot.lane.b32.xlu0 %v2269, 1
        %v2390 = vpop.permute.xlu0 %2389
        %2391 = vrot.lane.b32.xlu0 %v2270, 1
        %v2392 = vpop.permute.xlu0 %2391
        %2393 = vrot.lane.b32.xlu0 %v2271, 1
        %v2394 = vpop.permute.xlu0 %2393
        %2395 = vrot.lane.b32.xlu0 %v2272, 1
        %v2396 = vpop.permute.xlu0 %2395
        %2397 = vrot.lane.b32.xlu0 %v2273, 1
        %v2398 = vpop.permute.xlu0 %2397
        %2399 = vrot.lane.b32.xlu0 %v2274, 1
        %v2400 = vpop.permute.xlu0 %2399
        %2401 = vrot.lane.b32.xlu0 %v2275, 1
        %v2402 = vpop.permute.xlu0 %2401
        %2403 = vrot.lane.b32.xlu0 %v2276, 1
        %v2404 = vpop.permute.xlu0 %2403
        %2406 = vrot.lane.b32.xlu0 %v2278, 256
        %v2407 = vpop.permute.xlu0 %2406
        %2409 = vrot.lane.b32.xlu0 %v2310, 256
        %v2410 = vpop.permute.xlu0 %2409
        %2412 = vrot.lane.b32.xlu0 %v2342, 256
        %v2413 = vpop.permute.xlu0 %2412
        %2415 = vrot.lane.b32.xlu0 %v2374, 256
        %v2416 = vpop.permute.xlu0 %2415
        %s2418 = sor.u32 256, 8
        %2419 = vrot.lane.b32.xlu0 %v2280, %s2418
        %v2420 = vpop.permute.xlu0 %2419
        %s2422 = sor.u32 256, 8
        %2423 = vrot.lane.b32.xlu0 %v2312, %s2422
        %v2424 = vpop.permute.xlu0 %2423
        %s2426 = sor.u32 256, 8
        %2427 = vrot.lane.b32.xlu0 %v2344, %s2426
        %v2428 = vpop.permute.xlu0 %2427
        %s2430 = sor.u32 256, 8
        %2431 = vrot.lane.b32.xlu0 %v2376, %s2430
        %v2432 = vpop.permute.xlu0 %2431
        %s2434 = sor.u32 256, 16
        %2435 = vrot.lane.b32.xlu0 %v2282, %s2434
        %v2436 = vpop.permute.xlu0 %2435
        %s2438 = sor.u32 256, 16
        %2439 = vrot.lane.b32.xlu0 %v2314, %s2438
        %v2440 = vpop.permute.xlu0 %2439
        %s2442 = sor.u32 256, 16
        %2443 = vrot.lane.b32.xlu0 %v2346, %s2442
        %v2444 = vpop.permute.xlu0 %2443
        %s2446 = sor.u32 256, 16
        %2447 = vrot.lane.b32.xlu0 %v2378, %s2446
        %v2448 = vpop.permute.xlu0 %2447
        %s2450 = sor.u32 256, 24
        %2451 = vrot.lane.b32.xlu0 %v2284, %s2450
        %v2452 = vpop.permute.xlu0 %2451
        %s2454 = sor.u32 256, 24
        %2455 = vrot.lane.b32.xlu0 %v2316, %s2454
        %v2456 = vpop.permute.xlu0 %2455
        %s2458 = sor.u32 256, 24
        %2459 = vrot.lane.b32.xlu0 %v2348, %s2458
        %v2460 = vpop.permute.xlu0 %2459
        %s2462 = sor.u32 256, 24
        %2463 = vrot.lane.b32.xlu0 %v2380, %s2462
        %v2464 = vpop.permute.xlu0 %2463
        %s2466 = sor.u32 256, 32
        %2467 = vrot.lane.b32.xlu0 %v2286, %s2466
        %v2468 = vpop.permute.xlu0 %2467
        %s2470 = sor.u32 256, 32
        %2471 = vrot.lane.b32.xlu0 %v2318, %s2470
        %v2472 = vpop.permute.xlu0 %2471
        %s2474 = sor.u32 256, 32
        %2475 = vrot.lane.b32.xlu0 %v2350, %s2474
        %v2476 = vpop.permute.xlu0 %2475
        %s2478 = sor.u32 256, 32
        %2479 = vrot.lane.b32.xlu0 %v2382, %s2478
        %v2480 = vpop.permute.xlu0 %2479
        %s2482 = sor.u32 256, 40
        %2483 = vrot.lane.b32.xlu0 %v2288, %s2482
        %v2484 = vpop.permute.xlu0 %2483
        %s2486 = sor.u32 256, 40
        %2487 = vrot.lane.b32.xlu0 %v2320, %s2486
        %v2488 = vpop.permute.xlu0 %2487
        %s2490 = sor.u32 256, 40
        %2491 = vrot.lane.b32.xlu0 %v2352, %s2490
        %v2492 = vpop.permute.xlu0 %2491
        %s2494 = sor.u32 256, 40
        %2495 = vrot.lane.b32.xlu0 %v2384, %s2494
        %v2496 = vpop.permute.xlu0 %2495
        %s2498 = sor.u32 256, 48
        %2499 = vrot.lane.b32.xlu0 %v2290, %s2498
        %v2500 = vpop.permute.xlu0 %2499
        %s2502 = sor.u32 256, 48
        %2503 = vrot.lane.b32.xlu0 %v2322, %s2502
        %v2504 = vpop.permute.xlu0 %2503
        %s2506 = sor.u32 256, 48
        %2507 = vrot.lane.b32.xlu0 %v2354, %s2506
        %v2508 = vpop.permute.xlu0 %2507
        %s2510 = sor.u32 256, 48
        %2511 = vrot.lane.b32.xlu0 %v2386, %s2510
        %v2512 = vpop.permute.xlu0 %2511
        %s2514 = sor.u32 256, 56
        %2515 = vrot.lane.b32.xlu0 %v2292, %s2514
        %v2516 = vpop.permute.xlu0 %2515
        %s2518 = sor.u32 256, 56
        %2519 = vrot.lane.b32.xlu0 %v2324, %s2518
        %v2520 = vpop.permute.xlu0 %2519
        %s2522 = sor.u32 256, 56
        %2523 = vrot.lane.b32.xlu0 %v2356, %s2522
        %v2524 = vpop.permute.xlu0 %2523
        %s2526 = sor.u32 256, 56
        %2527 = vrot.lane.b32.xlu0 %v2388, %s2526
        %v2528 = vpop.permute.xlu0 %2527
        %s2530 = sor.u32 256, 64
        %2531 = vrot.lane.b32.xlu0 %v2294, %s2530
        %v2532 = vpop.permute.xlu0 %2531
        %s2534 = sor.u32 256, 64
        %2535 = vrot.lane.b32.xlu0 %v2326, %s2534
        %v2536 = vpop.permute.xlu0 %2535
        %s2538 = sor.u32 256, 64
        %2539 = vrot.lane.b32.xlu0 %v2358, %s2538
        %v2540 = vpop.permute.xlu0 %2539
        %s2542 = sor.u32 256, 64
        %2543 = vrot.lane.b32.xlu0 %v2390, %s2542
        %v2544 = vpop.permute.xlu0 %2543
        %s2546 = sor.u32 256, 72
        %2547 = vrot.lane.b32.xlu0 %v2296, %s2546
        %v2548 = vpop.permute.xlu0 %2547
        %s2550 = sor.u32 256, 72
        %2551 = vrot.lane.b32.xlu0 %v2328, %s2550
        %v2552 = vpop.permute.xlu0 %2551
        %s2554 = sor.u32 256, 72
        %2555 = vrot.lane.b32.xlu0 %v2360, %s2554
        %v2556 = vpop.permute.xlu0 %2555
        %s2558 = sor.u32 256, 72
        %2559 = vrot.lane.b32.xlu0 %v2392, %s2558
        %v2560 = vpop.permute.xlu0 %2559
        %s2562 = sor.u32 256, 80
        %2563 = vrot.lane.b32.xlu0 %v2298, %s2562
        %v2564 = vpop.permute.xlu0 %2563
        %s2566 = sor.u32 256, 80
        %2567 = vrot.lane.b32.xlu0 %v2330, %s2566
        %v2568 = vpop.permute.xlu0 %2567
        %s2570 = sor.u32 256, 80
        %2571 = vrot.lane.b32.xlu0 %v2362, %s2570
        %v2572 = vpop.permute.xlu0 %2571
        %s2574 = sor.u32 256, 80
        %2575 = vrot.lane.b32.xlu0 %v2394, %s2574
        %v2576 = vpop.permute.xlu0 %2575
        %s2578 = sor.u32 256, 88
        %2579 = vrot.lane.b32.xlu0 %v2300, %s2578
        %v2580 = vpop.permute.xlu0 %2579
        %s2582 = sor.u32 256, 88
        %2583 = vrot.lane.b32.xlu0 %v2332, %s2582
        %v2584 = vpop.permute.xlu0 %2583
        %s2586 = sor.u32 256, 88
        %2587 = vrot.lane.b32.xlu0 %v2364, %s2586
        %v2588 = vpop.permute.xlu0 %2587
        %s2590 = sor.u32 256, 88
        %2591 = vrot.lane.b32.xlu0 %v2396, %s2590
        %v2592 = vpop.permute.xlu0 %2591
        %s2594 = sor.u32 256, 96
        %2595 = vrot.lane.b32.xlu0 %v2302, %s2594
        %v2596 = vpop.permute.xlu0 %2595
        %s2598 = sor.u32 256, 96
        %2599 = vrot.lane.b32.xlu0 %v2334, %s2598
        %v2600 = vpop.permute.xlu0 %2599
        %s2602 = sor.u32 256, 96
        %2603 = vrot.lane.b32.xlu0 %v2366, %s2602
        %v2604 = vpop.permute.xlu0 %2603
        %s2606 = sor.u32 256, 96
        %2607 = vrot.lane.b32.xlu0 %v2398, %s2606
        %v2608 = vpop.permute.xlu0 %2607
        %s2610 = sor.u32 256, 104
        %2611 = vrot.lane.b32.xlu0 %v2304, %s2610
        %v2612 = vpop.permute.xlu0 %2611
        %s2614 = sor.u32 256, 104
        %2615 = vrot.lane.b32.xlu0 %v2336, %s2614
        %v2616 = vpop.permute.xlu0 %2615
        %s2618 = sor.u32 256, 104
        %2619 = vrot.lane.b32.xlu0 %v2368, %s2618
        %v2620 = vpop.permute.xlu0 %2619
        %s2622 = sor.u32 256, 104
        %2623 = vrot.lane.b32.xlu0 %v2400, %s2622
        %v2624 = vpop.permute.xlu0 %2623
        %s2626 = sor.u32 256, 112
        %2627 = vrot.lane.b32.xlu0 %v2306, %s2626
        %v2628 = vpop.permute.xlu0 %2627
        %s2630 = sor.u32 256, 112
        %2631 = vrot.lane.b32.xlu0 %v2338, %s2630
        %v2632 = vpop.permute.xlu0 %2631
        %s2634 = sor.u32 256, 112
        %2635 = vrot.lane.b32.xlu0 %v2370, %s2634
        %v2636 = vpop.permute.xlu0 %2635
        %s2638 = sor.u32 256, 112
        %2639 = vrot.lane.b32.xlu0 %v2402, %s2638
        %v2640 = vpop.permute.xlu0 %2639
        %s2642 = sor.u32 256, 120
        %2643 = vrot.lane.b32.xlu0 %v2308, %s2642
        %v2644 = vpop.permute.xlu0 %2643
        %s2646 = sor.u32 256, 120
        %2647 = vrot.lane.b32.xlu0 %v2340, %s2646
        %v2648 = vpop.permute.xlu0 %2647
        %s2650 = sor.u32 256, 120
        %2651 = vrot.lane.b32.xlu0 %v2372, %s2650
        %v2652 = vpop.permute.xlu0 %2651
        %s2654 = sor.u32 256, 120
        %2655 = vrot.lane.b32.xlu0 %v2404, %s2654
        %v2656 = vpop.permute.xlu0 %2655
        %vm2721 = vcmask 1046528
        %v2722 = vrot.slane %v2407, 1
        %v2723 = vrot.slane %v2420, 1
        %v2724 = vsel %vm2721, %v2722, %v2723
        %v2725 = vrot.slane %v2436, 1
        %v2726 = vsel %vm2721, %v2723, %v2725
        %v2727 = vrot.slane %v2452, 1
        %v2728 = vsel %vm2721, %v2725, %v2727
        %v2729 = vrot.slane %v2468, 1
        %v2730 = vsel %vm2721, %v2727, %v2729
        %v2731 = vrot.slane %v2484, 1
        %v2732 = vsel %vm2721, %v2729, %v2731
        %v2733 = vrot.slane %v2500, 1
        %v2734 = vsel %vm2721, %v2731, %v2733
        %v2735 = vrot.slane %v2516, 1
        %v2736 = vsel %vm2721, %v2733, %v2735
        %v2737 = vrot.slane %v2532, 1
        %v2738 = vsel %vm2721, %v2735, %v2737
        %v2739 = vrot.slane %v2548, 1
        %v2740 = vsel %vm2721, %v2737, %v2739
        %v2741 = vrot.slane %v2564, 1
        %v2742 = vsel %vm2721, %v2739, %v2741
        %v2743 = vrot.slane %v2580, 1
        %v2744 = vsel %vm2721, %v2741, %v2743
        %v2745 = vrot.slane %v2596, 1
        %v2746 = vsel %vm2721, %v2743, %v2745
        %v2747 = vrot.slane %v2612, 1
        %v2748 = vsel %vm2721, %v2745, %v2747
        %v2749 = vrot.slane %v2628, 1
        %v2750 = vsel %vm2721, %v2747, %v2749
        %v2751 = vrot.slane %v2644, 1
        %v2752 = vsel %vm2721, %v2749, %v2751
        %v2753 = vrot.slane %v2410, 1
        %v2754 = vrot.slane %v2424, 1
        %v2755 = vsel %vm2721, %v2753, %v2754
        %v2756 = vrot.slane %v2440, 1
        %v2757 = vsel %vm2721, %v2754, %v2756
        %v2758 = vrot.slane %v2456, 1
        %v2759 = vsel %vm2721, %v2756, %v2758
        %v2760 = vrot.slane %v2472, 1
        %v2761 = vsel %vm2721, %v2758, %v2760
        %v2762 = vrot.slane %v2488, 1
        %v2763 = vsel %vm2721, %v2760, %v2762
        %v2764 = vrot.slane %v2504, 1
        %v2765 = vsel %vm2721, %v2762, %v2764
        %v2766 = vrot.slane %v2520, 1
        %v2767 = vsel %vm2721, %v2764, %v2766
        %v2768 = vrot.slane %v2536, 1
        %v2769 = vsel %vm2721, %v2766, %v2768
        %v2770 = vrot.slane %v2552, 1
        %v2771 = vsel %vm2721, %v2768, %v2770
        %v2772 = vrot.slane %v2568, 1
        %v2773 = vsel %vm2721, %v2770, %v2772
        %v2774 = vrot.slane %v2584, 1
        %v2775 = vsel %vm2721, %v2772, %v2774
        %v2776 = vrot.slane %v2600, 1
        %v2777 = vsel %vm2721, %v2774, %v2776
        %v2778 = vrot.slane %v2616, 1
        %v2779 = vsel %vm2721, %v2776, %v2778
        %v2780 = vrot.slane %v2632, 1
        %v2781 = vsel %vm2721, %v2778, %v2780
        %v2782 = vrot.slane %v2648, 1
        %v2783 = vsel %vm2721, %v2780, %v2782
        %v2784 = vrot.slane %v2413, 1
        %v2785 = vrot.slane %v2428, 1
        %v2786 = vsel %vm2721, %v2784, %v2785
        %v2787 = vrot.slane %v2444, 1
        %v2788 = vsel %vm2721, %v2785, %v2787
        %v2789 = vrot.slane %v2460, 1
        %v2790 = vsel %vm2721, %v2787, %v2789
        %v2791 = vrot.slane %v2476, 1
        %v2792 = vsel %vm2721, %v2789, %v2791
        %v2793 = vrot.slane %v2492, 1
        %v2794 = vsel %vm2721, %v2791, %v2793
        %v2795 = vrot.slane %v2508, 1
        %v2796 = vsel %vm2721, %v2793, %v2795
        %v2797 = vrot.slane %v2524, 1
        %v2798 = vsel %vm2721, %v2795, %v2797
        %v2799 = vrot.slane %v2540, 1
        %v2800 = vsel %vm2721, %v2797, %v2799
        %v2801 = vrot.slane %v2556, 1
        %v2802 = vsel %vm2721, %v2799, %v2801
        %v2803 = vrot.slane %v2572, 1
        %v2804 = vsel %vm2721, %v2801, %v2803
        %v2805 = vrot.slane %v2588, 1
        %v2806 = vsel %vm2721, %v2803, %v2805
        %v2807 = vrot.slane %v2604, 1
        %v2808 = vsel %vm2721, %v2805, %v2807
        %v2809 = vrot.slane %v2620, 1
        %v2810 = vsel %vm2721, %v2807, %v2809
        %v2811 = vrot.slane %v2636, 1
        %v2812 = vsel %vm2721, %v2809, %v2811
        %v2813 = vrot.slane %v2652, 1
        %v2814 = vsel %vm2721, %v2811, %v2813
        %v2815 = vrot.slane %v2416, 1
        %v2816 = vrot.slane %v2432, 1
        %v2817 = vsel %vm2721, %v2815, %v2816
        %v2818 = vrot.slane %v2448, 1
        %v2819 = vsel %vm2721, %v2816, %v2818
        %v2820 = vrot.slane %v2464, 1
        %v2821 = vsel %vm2721, %v2818, %v2820
        %v2822 = vrot.slane %v2480, 1
        %v2823 = vsel %vm2721, %v2820, %v2822
        %v2824 = vrot.slane %v2496, 1
        %v2825 = vsel %vm2721, %v2822, %v2824
        %v2826 = vrot.slane %v2512, 1
        %v2827 = vsel %vm2721, %v2824, %v2826
        %v2828 = vrot.slane %v2528, 1
        %v2829 = vsel %vm2721, %v2826, %v2828
        %v2830 = vrot.slane %v2544, 1
        %v2831 = vsel %vm2721, %v2828, %v2830
        %v2832 = vrot.slane %v2560, 1
        %v2833 = vsel %vm2721, %v2830, %v2832
        %v2834 = vrot.slane %v2576, 1
        %v2835 = vsel %vm2721, %v2832, %v2834
        %v2836 = vrot.slane %v2592, 1
        %v2837 = vsel %vm2721, %v2834, %v2836
        %v2838 = vrot.slane %v2608, 1
        %v2839 = vsel %vm2721, %v2836, %v2838
        %v2840 = vrot.slane %v2624, 1
        %v2841 = vsel %vm2721, %v2838, %v2840
        %v2842 = vrot.slane %v2640, 1
        %v2843 = vsel %vm2721, %v2840, %v2842
        %v2844 = vrot.slane %v2656, 1
        %v2845 = vsel %vm2721, %v2842, %v2844
        %v2910 = vsel %vm2721, %v2751, 0.0
        %v2911 = vsel %vm2721, %v2782, 0.0
        %v2912 = vsel %vm2721, %v2813, 0.0
        %v2913 = vsel %vm2721, %v2844, 0.0
        %v2914 = vlaneseq
        %v2915 = vshrl.u32 %v2914, 7
        %v2916 = vadd.s32 %v2915, 8
        %v2917 = vadd.s32 %v2915, 16
        %v2918 = vadd.s32 %v2915, 24
        %v2919 = vadd.s32 %v2915, 32
        %v2920 = vadd.s32 %v2915, 40
        %v2921 = vadd.s32 %v2915, 48
        %v2922 = vadd.s32 %v2915, 56
        %v2923 = vadd.s32 %v2915, 64
        %v2924 = vadd.s32 %v2915, 72
        %v2925 = vadd.s32 %v2915, 80
        %v2926 = vadd.s32 %v2915, 88
        %v2927 = vadd.s32 %v2915, 96
        %v2928 = vadd.s32 %v2915, 104
        %v2929 = vadd.s32 %v2915, 112
        %v2930 = vadd.s32 %v2915, 120
        %v2931 = vlaneseq
        %v2932 = vand.u32 %v2931, 127
        %vm2933 = vcmp.le.s32.totalorder %v2932, %v2915
        %vm2934 = vcmp.le.s32.totalorder %v2932, %v2916
        %vm2935 = vcmp.le.s32.totalorder %v2932, %v2917
        %vm2936 = vcmp.le.s32.totalorder %v2932, %v2918
        %vm2937 = vcmp.le.s32.totalorder %v2932, %v2919
        %vm2938 = vcmp.le.s32.totalorder %v2932, %v2920
        %vm2939 = vcmp.le.s32.totalorder %v2932, %v2921
        %vm2940 = vcmp.le.s32.totalorder %v2932, %v2922
        %vm2941 = vcmp.le.s32.totalorder %v2932, %v2923
        %vm2942 = vcmp.le.s32.totalorder %v2932, %v2924
        %vm2943 = vcmp.le.s32.totalorder %v2932, %v2925
        %vm2944 = vcmp.le.s32.totalorder %v2932, %v2926
        %vm2945 = vcmp.le.s32.totalorder %v2932, %v2927
        %vm2946 = vcmp.le.s32.totalorder %v2932, %v2928
        %vm2947 = vcmp.le.s32.totalorder %v2932, %v2929
        %vm2948 = vcmp.le.s32.totalorder %v2932, %v2930
        %v2949 = vadd.s32 %v2915, 1
        %v2950 = vadd.s32 %v2916, 1
        %v2951 = vadd.s32 %v2917, 1
        %v2952 = vadd.s32 %v2918, 1
        %v2953 = vadd.s32 %v2919, 1
        %v2954 = vadd.s32 %v2920, 1
        %v2955 = vadd.s32 %v2921, 1
        %v2956 = vadd.s32 %v2922, 1
        %v2957 = vadd.s32 %v2923, 1
        %v2958 = vadd.s32 %v2924, 1
        %v2959 = vadd.s32 %v2925, 1
        %v2960 = vadd.s32 %v2926, 1
        %v2961 = vadd.s32 %v2927, 1
        %v2962 = vadd.s32 %v2928, 1
        %v2963 = vadd.s32 %v2929, 1
        %v2964 = vadd.s32 %v2930, 1
        %vm2965 = vcmp.eq.s32.totalorder %v2932, %v2949
        %vm2966 = vcmp.eq.s32.totalorder %v2932, %v2950
        %vm2967 = vcmp.eq.s32.totalorder %v2932, %v2951
        %vm2968 = vcmp.eq.s32.totalorder %v2932, %v2952
        %vm2969 = vcmp.eq.s32.totalorder %v2932, %v2953
        %vm2970 = vcmp.eq.s32.totalorder %v2932, %v2954
        %vm2971 = vcmp.eq.s32.totalorder %v2932, %v2955
        %vm2972 = vcmp.eq.s32.totalorder %v2932, %v2956
        %vm2973 = vcmp.eq.s32.totalorder %v2932, %v2957
        %vm2974 = vcmp.eq.s32.totalorder %v2932, %v2958
        %vm2975 = vcmp.eq.s32.totalorder %v2932, %v2959
        %vm2976 = vcmp.eq.s32.totalorder %v2932, %v2960
        %vm2977 = vcmp.eq.s32.totalorder %v2932, %v2961
        %vm2978 = vcmp.eq.s32.totalorder %v2932, %v2962
        %vm2979 = vcmp.eq.s32.totalorder %v2932, %v2963
        %vm2980 = vcmp.eq.s32.totalorder %v2932, %v2964
        %v2981 = vsel %vm2965, 0.0, %v2724
        %v2982 = vsel %vm2966, 0.0, %v2726
        %v2983 = vsel %vm2967, 0.0, %v2728
        %v2984 = vsel %vm2968, 0.0, %v2730
        %v2985 = vsel %vm2969, 0.0, %v2732
        %v2986 = vsel %vm2970, 0.0, %v2734
        %v2987 = vsel %vm2971, 0.0, %v2736
        %v2988 = vsel %vm2972, 0.0, %v2738
        %v2989 = vsel %vm2973, 0.0, %v2740
        %v2990 = vsel %vm2974, 0.0, %v2742
        %v2991 = vsel %vm2975, 0.0, %v2744
        %v2992 = vsel %vm2976, 0.0, %v2746
        %v2993 = vsel %vm2977, 0.0, %v2748
        %v2994 = vsel %vm2978, 0.0, %v2750
        %v2995 = vsel %vm2979, 0.0, %v2752
        %v2996 = vsel %vm2980, 0.0, %v2910
        %v2997 = vsel %vm2965, 0.0, %v2755
        %v2998 = vsel %vm2966, 0.0, %v2757
        %v2999 = vsel %vm2967, 0.0, %v2759
        %v3000 = vsel %vm2968, 0.0, %v2761
        %v3001 = vsel %vm2969, 0.0, %v2763
        %v3002 = vsel %vm2970, 0.0, %v2765
        %v3003 = vsel %vm2971, 0.0, %v2767
        %v3004 = vsel %vm2972, 0.0, %v2769
        %v3005 = vsel %vm2973, 0.0, %v2771
        %v3006 = vsel %vm2974, 0.0, %v2773
        %v3007 = vsel %vm2975, 0.0, %v2775
        %v3008 = vsel %vm2976, 0.0, %v2777
        %v3009 = vsel %vm2977, 0.0, %v2779
        %v3010 = vsel %vm2978, 0.0, %v2781
        %v3011 = vsel %vm2979, 0.0, %v2783
        %v3012 = vsel %vm2980, 0.0, %v2911
        %v3013 = vsel %vm2965, 0.0, %v2786
        %v3014 = vsel %vm2966, 0.0, %v2788
        %v3015 = vsel %vm2967, 0.0, %v2790
        %v3016 = vsel %vm2968, 0.0, %v2792
        %v3017 = vsel %vm2969, 0.0, %v2794
        %v3018 = vsel %vm2970, 0.0, %v2796
        %v3019 = vsel %vm2971, 0.0, %v2798
        %v3020 = vsel %vm2972, 0.0, %v2800
        %v3021 = vsel %vm2973, 0.0, %v2802
        %v3022 = vsel %vm2974, 0.0, %v2804
        %v3023 = vsel %vm2975, 0.0, %v2806
        %v3024 = vsel %vm2976, 0.0, %v2808
        %v3025 = vsel %vm2977, 0.0, %v2810
        %v3026 = vsel %vm2978, 0.0, %v2812
        %v3027 = vsel %vm2979, 0.0, %v2814
        %v3028 = vsel %vm2980, 0.0, %v2912
        %v3029 = vsel %vm2965, 0.0, %v2817
        %v3030 = vsel %vm2966, 0.0, %v2819
        %v3031 = vsel %vm2967, 0.0, %v2821
        %v3032 = vsel %vm2968, 0.0, %v2823
        %v3033 = vsel %vm2969, 0.0, %v2825
        %v3034 = vsel %vm2970, 0.0, %v2827
        %v3035 = vsel %vm2971, 0.0, %v2829
        %v3036 = vsel %vm2972, 0.0, %v2831
        %v3037 = vsel %vm2973, 0.0, %v2833
        %v3038 = vsel %vm2974, 0.0, %v2835
        %v3039 = vsel %vm2975, 0.0, %v2837
        %v3040 = vsel %vm2976, 0.0, %v2839
        %v3041 = vsel %vm2977, 0.0, %v2841
        %v3042 = vsel %vm2978, 0.0, %v2843
        %v3043 = vsel %vm2979, 0.0, %v2845
        %v3044 = vsel %vm2980, 0.0, %v2913
        %v3045 = vsel %vm2933, %v2407, %v2981
        %v3046 = vsel %vm2934, %v2420, %v2982
        %v3047 = vsel %vm2935, %v2436, %v2983
        %v3048 = vsel %vm2936, %v2452, %v2984
        %v3049 = vsel %vm2937, %v2468, %v2985
        %v3050 = vsel %vm2938, %v2484, %v2986
        %v3051 = vsel %vm2939, %v2500, %v2987
        %v3052 = vsel %vm2940, %v2516, %v2988
        %v3053 = vsel %vm2941, %v2532, %v2989
        %v3054 = vsel %vm2942, %v2548, %v2990
        %v3055 = vsel %vm2943, %v2564, %v2991
        %v3056 = vsel %vm2944, %v2580, %v2992
        %v3057 = vsel %vm2945, %v2596, %v2993
        %v3058 = vsel %vm2946, %v2612, %v2994
        %v3059 = vsel %vm2947, %v2628, %v2995
        %v3060 = vsel %vm2948, %v2644, %v2996
        %v3061 = vsel %vm2933, %v2410, %v2997
        %v3062 = vsel %vm2934, %v2424, %v2998
        %v3063 = vsel %vm2935, %v2440, %v2999
        %v3064 = vsel %vm2936, %v2456, %v3000
        %v3065 = vsel %vm2937, %v2472, %v3001
        %v3066 = vsel %vm2938, %v2488, %v3002
        %v3067 = vsel %vm2939, %v2504, %v3003
        %v3068 = vsel %vm2940, %v2520, %v3004
        %v3069 = vsel %vm2941, %v2536, %v3005
        %v3070 = vsel %vm2942, %v2552, %v3006
        %v3071 = vsel %vm2943, %v2568, %v3007
        %v3072 = vsel %vm2944, %v2584, %v3008
        %v3073 = vsel %vm2945, %v2600, %v3009
        %v3074 = vsel %vm2946, %v2616, %v3010
        %v3075 = vsel %vm2947, %v2632, %v3011
        %v3076 = vsel %vm2948, %v2648, %v3012
        %v3077 = vsel %vm2933, %v2413, %v3013
        %v3078 = vsel %vm2934, %v2428, %v3014
        %v3079 = vsel %vm2935, %v2444, %v3015
        %v3080 = vsel %vm2936, %v2460, %v3016
        %v3081 = vsel %vm2937, %v2476, %v3017
        %v3082 = vsel %vm2938, %v2492, %v3018
        %v3083 = vsel %vm2939, %v2508, %v3019
        %v3084 = vsel %vm2940, %v2524, %v3020
        %v3085 = vsel %vm2941, %v2540, %v3021
        %v3086 = vsel %vm2942, %v2556, %v3022
        %v3087 = vsel %vm2943, %v2572, %v3023
        %v3088 = vsel %vm2944, %v2588, %v3024
        %v3089 = vsel %vm2945, %v2604, %v3025
        %v3090 = vsel %vm2946, %v2620, %v3026
        %v3091 = vsel %vm2947, %v2636, %v3027
        %v3092 = vsel %vm2948, %v2652, %v3028
        %v3093 = vsel %vm2933, %v2416, %v3029
        %v3094 = vsel %vm2934, %v2432, %v3030
        %v3095 = vsel %vm2935, %v2448, %v3031
        %v3096 = vsel %vm2936, %v2464, %v3032
        %v3097 = vsel %vm2937, %v2480, %v3033
        %v3098 = vsel %vm2938, %v2496, %v3034
        %v3099 = vsel %vm2939, %v2512, %v3035
        %v3100 = vsel %vm2940, %v2528, %v3036
        %v3101 = vsel %vm2941, %v2544, %v3037
        %v3102 = vsel %vm2942, %v2560, %v3038
        %v3103 = vsel %vm2943, %v2576, %v3039
        %v3104 = vsel %vm2944, %v2592, %v3040
        %v3105 = vsel %vm2945, %v2608, %v3041
        %v3106 = vsel %vm2946, %v2624, %v3042
        %v3107 = vsel %vm2947, %v2640, %v3043
        %v3108 = vsel %vm2948, %v2656, %v3044
        %v3109 = vadd.f32 %v2121, %v3045
        %v3110 = vadd.f32 %v2122, %v3046
        %v3111 = vadd.f32 %v2123, %v3047
        %v3112 = vadd.f32 %v2124, %v3048
        %v3113 = vadd.f32 %v2125, %v3049
        %v3114 = vadd.f32 %v2126, %v3050
        %v3115 = vadd.f32 %v2127, %v3051
        %v3116 = vadd.f32 %v2128, %v3052
        %v3117 = vadd.f32 %v2129, %v3053
        %v3118 = vadd.f32 %v2130, %v3054
        %v3119 = vadd.f32 %v2131, %v3055
        %v3120 = vadd.f32 %v2132, %v3056
        %v3121 = vadd.f32 %v2133, %v3057
        %v3122 = vadd.f32 %v2134, %v3058
        %v3123 = vadd.f32 %v2135, %v3059
        %v3124 = vadd.f32 %v2136, %v3060
        %v3125 = vadd.f32 %v2137, %v3061
        %v3126 = vadd.f32 %v2138, %v3062
        %v3127 = vadd.f32 %v2139, %v3063
        %v3128 = vadd.f32 %v2140, %v3064
        %v3129 = vadd.f32 %v2141, %v3065
        %v3130 = vadd.f32 %v2142, %v3066
        %v3131 = vadd.f32 %v2143, %v3067
        %v3132 = vadd.f32 %v2144, %v3068
        %v3133 = vadd.f32 %v2145, %v3069
        %v3134 = vadd.f32 %v2146, %v3070
        %v3135 = vadd.f32 %v2147, %v3071
        %v3136 = vadd.f32 %v2148, %v3072
        %v3137 = vadd.f32 %v2149, %v3073
        %v3138 = vadd.f32 %v2150, %v3074
        %v3139 = vadd.f32 %v2151, %v3075
        %v3140 = vadd.f32 %v2152, %v3076
        %v3141 = vadd.f32 %v2153, %v3077
        %v3142 = vadd.f32 %v2154, %v3078
        %v3143 = vadd.f32 %v2155, %v3079
        %v3144 = vadd.f32 %v2156, %v3080
        %v3145 = vadd.f32 %v2157, %v3081
        %v3146 = vadd.f32 %v2158, %v3082
        %v3147 = vadd.f32 %v2159, %v3083
        %v3148 = vadd.f32 %v2160, %v3084
        %v3149 = vadd.f32 %v2161, %v3085
        %v3150 = vadd.f32 %v2162, %v3086
        %v3151 = vadd.f32 %v2163, %v3087
        %v3152 = vadd.f32 %v2164, %v3088
        %v3153 = vadd.f32 %v2165, %v3089
        %v3154 = vadd.f32 %v2166, %v3090
        %v3155 = vadd.f32 %v2167, %v3091
        %v3156 = vadd.f32 %v2168, %v3092
        %v3157 = vadd.f32 %v2169, %v3093
        %v3158 = vadd.f32 %v2170, %v3094
        %v3159 = vadd.f32 %v2171, %v3095
        %v3160 = vadd.f32 %v2172, %v3096
        %v3161 = vadd.f32 %v2173, %v3097
        %v3162 = vadd.f32 %v2174, %v3098
        %v3163 = vadd.f32 %v2175, %v3099
        %v3164 = vadd.f32 %v2176, %v3100
        %v3165 = vadd.f32 %v2177, %v3101
        %v3166 = vadd.f32 %v2178, %v3102
        %v3167 = vadd.f32 %v2179, %v3103
        %v3168 = vadd.f32 %v2180, %v3104
        %v3169 = vadd.f32 %v2181, %v3105
        %v3170 = vadd.f32 %v2182, %v3106
        %v3171 = vadd.f32 %v2183, %v3107
        %v3172 = vadd.f32 %v2184, %v3108
        %3173 = vmax.xlane.f32.xlu0 %v3109
        %v3174 = vpop.xlane.xlu0 %3173
        %3175 = vmax.xlane.f32.xlu0 %v3110
        %v3176 = vpop.xlane.xlu0 %3175
        %3177 = vmax.xlane.f32.xlu0 %v3111
        %v3178 = vpop.xlane.xlu0 %3177
        %3179 = vmax.xlane.f32.xlu0 %v3112
        %v3180 = vpop.xlane.xlu0 %3179
        %3181 = vmax.xlane.f32.xlu0 %v3113
        %v3182 = vpop.xlane.xlu0 %3181
        %3183 = vmax.xlane.f32.xlu0 %v3114
        %v3184 = vpop.xlane.xlu0 %3183
        %3185 = vmax.xlane.f32.xlu0 %v3115
        %v3186 = vpop.xlane.xlu0 %3185
        %3187 = vmax.xlane.f32.xlu0 %v3116
        %v3188 = vpop.xlane.xlu0 %3187
        %3189 = vmax.xlane.f32.xlu0 %v3117
        %v3190 = vpop.xlane.xlu0 %3189
        %3191 = vmax.xlane.f32.xlu0 %v3118
        %v3192 = vpop.xlane.xlu0 %3191
        %3193 = vmax.xlane.f32.xlu0 %v3119
        %v3194 = vpop.xlane.xlu0 %3193
        %3195 = vmax.xlane.f32.xlu0 %v3120
        %v3196 = vpop.xlane.xlu0 %3195
        %3197 = vmax.xlane.f32.xlu0 %v3121
        %v3198 = vpop.xlane.xlu0 %3197
        %3199 = vmax.xlane.f32.xlu0 %v3122
        %v3200 = vpop.xlane.xlu0 %3199
        %3201 = vmax.xlane.f32.xlu0 %v3123
        %v3202 = vpop.xlane.xlu0 %3201
        %3203 = vmax.xlane.f32.xlu0 %v3124
        %v3204 = vpop.xlane.xlu0 %3203
        %3205 = vmax.xlane.f32.xlu0 %v3125
        %v3206 = vpop.xlane.xlu0 %3205
        %3207 = vmax.xlane.f32.xlu0 %v3126
        %v3208 = vpop.xlane.xlu0 %3207
        %3209 = vmax.xlane.f32.xlu0 %v3127
        %v3210 = vpop.xlane.xlu0 %3209
        %3211 = vmax.xlane.f32.xlu0 %v3128
        %v3212 = vpop.xlane.xlu0 %3211
        %3213 = vmax.xlane.f32.xlu0 %v3129
        %v3214 = vpop.xlane.xlu0 %3213
        %3215 = vmax.xlane.f32.xlu0 %v3130
        %v3216 = vpop.xlane.xlu0 %3215
        %3217 = vmax.xlane.f32.xlu0 %v3131
        %v3218 = vpop.xlane.xlu0 %3217
        %3219 = vmax.xlane.f32.xlu0 %v3132
        %v3220 = vpop.xlane.xlu0 %3219
        %3221 = vmax.xlane.f32.xlu0 %v3133
        %v3222 = vpop.xlane.xlu0 %3221
        %3223 = vmax.xlane.f32.xlu0 %v3134
        %v3224 = vpop.xlane.xlu0 %3223
        %3225 = vmax.xlane.f32.xlu0 %v3135
        %v3226 = vpop.xlane.xlu0 %3225
        %3227 = vmax.xlane.f32.xlu0 %v3136
        %v3228 = vpop.xlane.xlu0 %3227
        %3229 = vmax.xlane.f32.xlu0 %v3137
        %v3230 = vpop.xlane.xlu0 %3229
        %3231 = vmax.xlane.f32.xlu0 %v3138
        %v3232 = vpop.xlane.xlu0 %3231
        %3233 = vmax.xlane.f32.xlu0 %v3139
        %v3234 = vpop.xlane.xlu0 %3233
        %3235 = vmax.xlane.f32.xlu0 %v3140
        %v3236 = vpop.xlane.xlu0 %3235
        %3237 = vmax.xlane.f32.xlu0 %v3141
        %v3238 = vpop.xlane.xlu0 %3237
        %3239 = vmax.xlane.f32.xlu0 %v3142
        %v3240 = vpop.xlane.xlu0 %3239
        %3241 = vmax.xlane.f32.xlu0 %v3143
        %v3242 = vpop.xlane.xlu0 %3241
        %3243 = vmax.xlane.f32.xlu0 %v3144
        %v3244 = vpop.xlane.xlu0 %3243
        %3245 = vmax.xlane.f32.xlu0 %v3145
        %v3246 = vpop.xlane.xlu0 %3245
        %3247 = vmax.xlane.f32.xlu0 %v3146
        %v3248 = vpop.xlane.xlu0 %3247
        %3249 = vmax.xlane.f32.xlu0 %v3147
        %v3250 = vpop.xlane.xlu0 %3249
        %3251 = vmax.xlane.f32.xlu0 %v3148
        %v3252 = vpop.xlane.xlu0 %3251
        %3253 = vmax.xlane.f32.xlu0 %v3149
        %v3254 = vpop.xlane.xlu0 %3253
        %3255 = vmax.xlane.f32.xlu0 %v3150
        %v3256 = vpop.xlane.xlu0 %3255
        %3257 = vmax.xlane.f32.xlu0 %v3151
        %v3258 = vpop.xlane.xlu0 %3257
        %3259 = vmax.xlane.f32.xlu0 %v3152
        %v3260 = vpop.xlane.xlu0 %3259
        %3261 = vmax.xlane.f32.xlu0 %v3153
        %v3262 = vpop.xlane.xlu0 %3261
        %3263 = vmax.xlane.f32.xlu0 %v3154
        %v3264 = vpop.xlane.xlu0 %3263
        %3265 = vmax.xlane.f32.xlu0 %v3155
        %v3266 = vpop.xlane.xlu0 %3265
        %3267 = vmax.xlane.f32.xlu0 %v3156
        %v3268 = vpop.xlane.xlu0 %3267
        %3269 = vmax.xlane.f32.xlu0 %v3157
        %v3270 = vpop.xlane.xlu0 %3269
        %3271 = vmax.xlane.f32.xlu0 %v3158
        %v3272 = vpop.xlane.xlu0 %3271
        %3273 = vmax.xlane.f32.xlu0 %v3159
        %v3274 = vpop.xlane.xlu0 %3273
        %3275 = vmax.xlane.f32.xlu0 %v3160
        %v3276 = vpop.xlane.xlu0 %3275
        %3277 = vmax.xlane.f32.xlu0 %v3161
        %v3278 = vpop.xlane.xlu0 %3277
        %3279 = vmax.xlane.f32.xlu0 %v3162
        %v3280 = vpop.xlane.xlu0 %3279
        %3281 = vmax.xlane.f32.xlu0 %v3163
        %v3282 = vpop.xlane.xlu0 %3281
        %3283 = vmax.xlane.f32.xlu0 %v3164
        %v3284 = vpop.xlane.xlu0 %3283
        %3285 = vmax.xlane.f32.xlu0 %v3165
        %v3286 = vpop.xlane.xlu0 %3285
        %3287 = vmax.xlane.f32.xlu0 %v3166
        %v3288 = vpop.xlane.xlu0 %3287
        %3289 = vmax.xlane.f32.xlu0 %v3167
        %v3290 = vpop.xlane.xlu0 %3289
        %3291 = vmax.xlane.f32.xlu0 %v3168
        %v3292 = vpop.xlane.xlu0 %3291
        %3293 = vmax.xlane.f32.xlu0 %v3169
        %v3294 = vpop.xlane.xlu0 %3293
        %3295 = vmax.xlane.f32.xlu0 %v3170
        %v3296 = vpop.xlane.xlu0 %3295
        %3297 = vmax.xlane.f32.xlu0 %v3171
        %v3298 = vpop.xlane.xlu0 %3297
        %3299 = vmax.xlane.f32.xlu0 %v3172
        %v3300 = vpop.xlane.xlu0 %3299
        %v3301 = vsub.f32 %v3109, %v3174
        %v3302 = vsub.f32 %v3110, %v3176
        %v3303 = vsub.f32 %v3111, %v3178
        %v3304 = vsub.f32 %v3112, %v3180
        %v3305 = vsub.f32 %v3113, %v3182
        %v3306 = vsub.f32 %v3114, %v3184
        %v3307 = vsub.f32 %v3115, %v3186
        %v3308 = vsub.f32 %v3116, %v3188
        %v3309 = vsub.f32 %v3117, %v3190
        %v3310 = vsub.f32 %v3118, %v3192
        %v3311 = vsub.f32 %v3119, %v3194
        %v3312 = vsub.f32 %v3120, %v3196
        %v3313 = vsub.f32 %v3121, %v3198
        %v3314 = vsub.f32 %v3122, %v3200
        %v3315 = vsub.f32 %v3123, %v3202
        %v3316 = vsub.f32 %v3124, %v3204
        %v3317 = vsub.f32 %v3125, %v3206
        %v3318 = vsub.f32 %v3126, %v3208
        %v3319 = vsub.f32 %v3127, %v3210
        %v3320 = vsub.f32 %v3128, %v3212
        %v3321 = vsub.f32 %v3129, %v3214
        %v3322 = vsub.f32 %v3130, %v3216
        %v3323 = vsub.f32 %v3131, %v3218
        %v3324 = vsub.f32 %v3132, %v3220
        %v3325 = vsub.f32 %v3133, %v3222
        %v3326 = vsub.f32 %v3134, %v3224
        %v3327 = vsub.f32 %v3135, %v3226
        %v3328 = vsub.f32 %v3136, %v3228
        %v3329 = vsub.f32 %v3137, %v3230
        %v3330 = vsub.f32 %v3138, %v3232
        %v3331 = vsub.f32 %v3139, %v3234
        %v3332 = vsub.f32 %v3140, %v3236
        %v3333 = vsub.f32 %v3141, %v3238
        %v3334 = vsub.f32 %v3142, %v3240
        %v3335 = vsub.f32 %v3143, %v3242
        %v3336 = vsub.f32 %v3144, %v3244
        %v3337 = vsub.f32 %v3145, %v3246
        %v3338 = vsub.f32 %v3146, %v3248
        %v3339 = vsub.f32 %v3147, %v3250
        %v3340 = vsub.f32 %v3148, %v3252
        %v3341 = vsub.f32 %v3149, %v3254
        %v3342 = vsub.f32 %v3150, %v3256
        %v3343 = vsub.f32 %v3151, %v3258
        %v3344 = vsub.f32 %v3152, %v3260
        %v3345 = vsub.f32 %v3153, %v3262
        %v3346 = vsub.f32 %v3154, %v3264
        %v3347 = vsub.f32 %v3155, %v3266
        %v3348 = vsub.f32 %v3156, %v3268
        %v3349 = vsub.f32 %v3157, %v3270
        %v3350 = vsub.f32 %v3158, %v3272
        %v3351 = vsub.f32 %v3159, %v3274
        %v3352 = vsub.f32 %v3160, %v3276
        %v3353 = vsub.f32 %v3161, %v3278
        %v3354 = vsub.f32 %v3162, %v3280
        %v3355 = vsub.f32 %v3163, %v3282
        %v3356 = vsub.f32 %v3164, %v3284
        %v3357 = vsub.f32 %v3165, %v3286
        %v3358 = vsub.f32 %v3166, %v3288
        %v3359 = vsub.f32 %v3167, %v3290
        %v3360 = vsub.f32 %v3168, %v3292
        %v3361 = vsub.f32 %v3169, %v3294
        %v3362 = vsub.f32 %v3170, %v3296
        %v3363 = vsub.f32 %v3171, %v3298
        %v3364 = vsub.f32 %v3172, %v3300
        %v3365 = vmul.f32 %v3301, 1.442695
        %v3366 = vpow.pop %v3365
        %v3367 = vmul.f32 %v3302, 1.442695
        %v3368 = vpow.pop %v3367
        %v3369 = vmul.f32 %v3303, 1.442695
        %v3370 = vpow.pop %v3369
        %v3371 = vmul.f32 %v3304, 1.442695
        %v3372 = vpow.pop %v3371
        %v3373 = vmul.f32 %v3305, 1.442695
        %v3374 = vpow.pop %v3373
        %v3375 = vmul.f32 %v3306, 1.442695
        %v3376 = vpow.pop %v3375
        %v3377 = vmul.f32 %v3307, 1.442695
        %v3378 = vpow.pop %v3377
        %v3379 = vmul.f32 %v3308, 1.442695
        %v3380 = vpow.pop %v3379
        %v3381 = vmul.f32 %v3309, 1.442695
        %v3382 = vpow.pop %v3381
        %v3383 = vmul.f32 %v3310, 1.442695
        %v3384 = vpow.pop %v3383
        %v3385 = vmul.f32 %v3311, 1.442695
        %v3386 = vpow.pop %v3385
        %v3387 = vmul.f32 %v3312, 1.442695
        %v3388 = vpow.pop %v3387
        %v3389 = vmul.f32 %v3313, 1.442695
        %v3390 = vpow.pop %v3389
        %v3391 = vmul.f32 %v3314, 1.442695
        %v3392 = vpow.pop %v3391
        %v3393 = vmul.f32 %v3315, 1.442695
        %v3394 = vpow.pop %v3393
        %v3395 = vmul.f32 %v3316, 1.442695
        %v3396 = vpow.pop %v3395
        %v3397 = vmul.f32 %v3317, 1.442695
        %v3398 = vpow.pop %v3397
        %v3399 = vmul.f32 %v3318, 1.442695
        %v3400 = vpow.pop %v3399
        %v3401 = vmul.f32 %v3319, 1.442695
        %v3402 = vpow.pop %v3401
        %v3403 = vmul.f32 %v3320, 1.442695
        %v3404 = vpow.pop %v3403
        %v3405 = vmul.f32 %v3321, 1.442695
        %v3406 = vpow.pop %v3405
        %v3407 = vmul.f32 %v3322, 1.442695
        %v3408 = vpow.pop %v3407
        %v3409 = vmul.f32 %v3323, 1.442695
        %v3410 = vpow.pop %v3409
        %v3411 = vmul.f32 %v3324, 1.442695
        %v3412 = vpow.pop %v3411
        %v3413 = vmul.f32 %v3325, 1.442695
        %v3414 = vpow.pop %v3413
        %v3415 = vmul.f32 %v3326, 1.442695
        %v3416 = vpow.pop %v3415
        %v3417 = vmul.f32 %v3327, 1.442695
        %v3418 = vpow.pop %v3417
        %v3419 = vmul.f32 %v3328, 1.442695
        %v3420 = vpow.pop %v3419
        %v3421 = vmul.f32 %v3329, 1.442695
        %v3422 = vpow.pop %v3421
        %v3423 = vmul.f32 %v3330, 1.442695
        %v3424 = vpow.pop %v3423
        %v3425 = vmul.f32 %v3331, 1.442695
        %v3426 = vpow.pop %v3425
        %v3427 = vmul.f32 %v3332, 1.442695
        %v3428 = vpow.pop %v3427
        %v3429 = vmul.f32 %v3333, 1.442695
        %v3430 = vpow.pop %v3429
        %v3431 = vmul.f32 %v3334, 1.442695
        %v3432 = vpow.pop %v3431
        %v3433 = vmul.f32 %v3335, 1.442695
        %v3434 = vpow.pop %v3433
        %v3435 = vmul.f32 %v3336, 1.442695
        %v3436 = vpow.pop %v3435
        %v3437 = vmul.f32 %v3337, 1.442695
        %v3438 = vpow.pop %v3437
        %v3439 = vmul.f32 %v3338, 1.442695
        %v3440 = vpow.pop %v3439
        %v3441 = vmul.f32 %v3339, 1.442695
        %v3442 = vpow.pop %v3441
        %v3443 = vmul.f32 %v3340, 1.442695
        %v3444 = vpow.pop %v3443
        %v3445 = vmul.f32 %v3341, 1.442695
        %v3446 = vpow.pop %v3445
        %v3447 = vmul.f32 %v3342, 1.442695
        %v3448 = vpow.pop %v3447
        %v3449 = vmul.f32 %v3343, 1.442695
        %v3450 = vpow.pop %v3449
        %v3451 = vmul.f32 %v3344, 1.442695
        %v3452 = vpow.pop %v3451
        %v3453 = vmul.f32 %v3345, 1.442695
        %v3454 = vpow.pop %v3453
        %v3455 = vmul.f32 %v3346, 1.442695
        %v3456 = vpow.pop %v3455
        %v3457 = vmul.f32 %v3347, 1.442695
        %v3458 = vpow.pop %v3457
        %v3459 = vmul.f32 %v3348, 1.442695
        %v3460 = vpow.pop %v3459
        %v3461 = vmul.f32 %v3349, 1.442695
        %v3462 = vpow.pop %v3461
        %v3463 = vmul.f32 %v3350, 1.442695
        %v3464 = vpow.pop %v3463
        %v3465 = vmul.f32 %v3351, 1.442695
        %v3466 = vpow.pop %v3465
        %v3467 = vmul.f32 %v3352, 1.442695
        %v3468 = vpow.pop %v3467
        %v3469 = vmul.f32 %v3353, 1.442695
        %v3470 = vpow.pop %v3469
        %v3471 = vmul.f32 %v3354, 1.442695
        %v3472 = vpow.pop %v3471
        %v3473 = vmul.f32 %v3355, 1.442695
        %v3474 = vpow.pop %v3473
        %v3475 = vmul.f32 %v3356, 1.442695
        %v3476 = vpow.pop %v3475
        %v3477 = vmul.f32 %v3357, 1.442695
        %v3478 = vpow.pop %v3477
        %v3479 = vmul.f32 %v3358, 1.442695
        %v3480 = vpow.pop %v3479
        %v3481 = vmul.f32 %v3359, 1.442695
        %v3482 = vpow.pop %v3481
        %v3483 = vmul.f32 %v3360, 1.442695
        %v3484 = vpow.pop %v3483
        %v3485 = vmul.f32 %v3361, 1.442695
        %v3486 = vpow.pop %v3485
        %v3487 = vmul.f32 %v3362, 1.442695
        %v3488 = vpow.pop %v3487
        %v3489 = vmul.f32 %v3363, 1.442695
        %v3490 = vpow.pop %v3489
        %v3491 = vmul.f32 %v3364, 1.442695
        %v3492 = vpow.pop %v3491
        %3493 = vadd.xlane.f32.xlu0 %v3366
        %v3494 = vpop.xlane.xlu0 %3493
        %3495 = vadd.xlane.f32.xlu0 %v3368
        %v3496 = vpop.xlane.xlu0 %3495
        %3497 = vadd.xlane.f32.xlu0 %v3370
        %v3498 = vpop.xlane.xlu0 %3497
        %3499 = vadd.xlane.f32.xlu0 %v3372
        %v3500 = vpop.xlane.xlu0 %3499
        %3501 = vadd.xlane.f32.xlu0 %v3374
        %v3502 = vpop.xlane.xlu0 %3501
        %3503 = vadd.xlane.f32.xlu0 %v3376
        %v3504 = vpop.xlane.xlu0 %3503
        %3505 = vadd.xlane.f32.xlu0 %v3378
        %v3506 = vpop.xlane.xlu0 %3505
        %3507 = vadd.xlane.f32.xlu0 %v3380
        %v3508 = vpop.xlane.xlu0 %3507
        %3509 = vadd.xlane.f32.xlu0 %v3382
        %v3510 = vpop.xlane.xlu0 %3509
        %3511 = vadd.xlane.f32.xlu0 %v3384
        %v3512 = vpop.xlane.xlu0 %3511
        %3513 = vadd.xlane.f32.xlu0 %v3386
        %v3514 = vpop.xlane.xlu0 %3513
        %3515 = vadd.xlane.f32.xlu0 %v3388
        %v3516 = vpop.xlane.xlu0 %3515
        %3517 = vadd.xlane.f32.xlu0 %v3390
        %v3518 = vpop.xlane.xlu0 %3517
        %3519 = vadd.xlane.f32.xlu0 %v3392
        %v3520 = vpop.xlane.xlu0 %3519
        %3521 = vadd.xlane.f32.xlu0 %v3394
        %v3522 = vpop.xlane.xlu0 %3521
        %3523 = vadd.xlane.f32.xlu0 %v3396
        %v3524 = vpop.xlane.xlu0 %3523
        %3525 = vadd.xlane.f32.xlu0 %v3398
        %v3526 = vpop.xlane.xlu0 %3525
        %3527 = vadd.xlane.f32.xlu0 %v3400
        %v3528 = vpop.xlane.xlu0 %3527
        %3529 = vadd.xlane.f32.xlu0 %v3402
        %v3530 = vpop.xlane.xlu0 %3529
        %3531 = vadd.xlane.f32.xlu0 %v3404
        %v3532 = vpop.xlane.xlu0 %3531
        %3533 = vadd.xlane.f32.xlu0 %v3406
        %v3534 = vpop.xlane.xlu0 %3533
        %3535 = vadd.xlane.f32.xlu0 %v3408
        %v3536 = vpop.xlane.xlu0 %3535
        %3537 = vadd.xlane.f32.xlu0 %v3410
        %v3538 = vpop.xlane.xlu0 %3537
        %3539 = vadd.xlane.f32.xlu0 %v3412
        %v3540 = vpop.xlane.xlu0 %3539
        %3541 = vadd.xlane.f32.xlu0 %v3414
        %v3542 = vpop.xlane.xlu0 %3541
        %3543 = vadd.xlane.f32.xlu0 %v3416
        %v3544 = vpop.xlane.xlu0 %3543
        %3545 = vadd.xlane.f32.xlu0 %v3418
        %v3546 = vpop.xlane.xlu0 %3545
        %3547 = vadd.xlane.f32.xlu0 %v3420
        %v3548 = vpop.xlane.xlu0 %3547
        %3549 = vadd.xlane.f32.xlu0 %v3422
        %v3550 = vpop.xlane.xlu0 %3549
        %3551 = vadd.xlane.f32.xlu0 %v3424
        %v3552 = vpop.xlane.xlu0 %3551
        %3553 = vadd.xlane.f32.xlu0 %v3426
        %v3554 = vpop.xlane.xlu0 %3553
        %3555 = vadd.xlane.f32.xlu0 %v3428
        %v3556 = vpop.xlane.xlu0 %3555
        %3557 = vadd.xlane.f32.xlu0 %v3430
        %v3558 = vpop.xlane.xlu0 %3557
        %3559 = vadd.xlane.f32.xlu0 %v3432
        %v3560 = vpop.xlane.xlu0 %3559
        %3561 = vadd.xlane.f32.xlu0 %v3434
        %v3562 = vpop.xlane.xlu0 %3561
        %3563 = vadd.xlane.f32.xlu0 %v3436
        %v3564 = vpop.xlane.xlu0 %3563
        %3565 = vadd.xlane.f32.xlu0 %v3438
        %v3566 = vpop.xlane.xlu0 %3565
        %3567 = vadd.xlane.f32.xlu0 %v3440
        %v3568 = vpop.xlane.xlu0 %3567
        %3569 = vadd.xlane.f32.xlu0 %v3442
        %v3570 = vpop.xlane.xlu0 %3569
        %3571 = vadd.xlane.f32.xlu0 %v3444
        %v3572 = vpop.xlane.xlu0 %3571
        %3573 = vadd.xlane.f32.xlu0 %v3446
        %v3574 = vpop.xlane.xlu0 %3573
        %3575 = vadd.xlane.f32.xlu0 %v3448
        %v3576 = vpop.xlane.xlu0 %3575
        %3577 = vadd.xlane.f32.xlu0 %v3450
        %v3578 = vpop.xlane.xlu0 %3577
        %3579 = vadd.xlane.f32.xlu0 %v3452
        %v3580 = vpop.xlane.xlu0 %3579
        %3581 = vadd.xlane.f32.xlu0 %v3454
        %v3582 = vpop.xlane.xlu0 %3581
        %3583 = vadd.xlane.f32.xlu0 %v3456
        %v3584 = vpop.xlane.xlu0 %3583
        %3585 = vadd.xlane.f32.xlu0 %v3458
        %v3586 = vpop.xlane.xlu0 %3585
        %3587 = vadd.xlane.f32.xlu0 %v3460
        %v3588 = vpop.xlane.xlu0 %3587
        %3589 = vadd.xlane.f32.xlu0 %v3462
        %v3590 = vpop.xlane.xlu0 %3589
        %3591 = vadd.xlane.f32.xlu0 %v3464
        %v3592 = vpop.xlane.xlu0 %3591
        %3593 = vadd.xlane.f32.xlu0 %v3466
        %v3594 = vpop.xlane.xlu0 %3593
        %3595 = vadd.xlane.f32.xlu0 %v3468
        %v3596 = vpop.xlane.xlu0 %3595
        %3597 = vadd.xlane.f32.xlu0 %v3470
        %v3598 = vpop.xlane.xlu0 %3597
        %3599 = vadd.xlane.f32.xlu0 %v3472
        %v3600 = vpop.xlane.xlu0 %3599
        %3601 = vadd.xlane.f32.xlu0 %v3474
        %v3602 = vpop.xlane.xlu0 %3601
        %3603 = vadd.xlane.f32.xlu0 %v3476
        %v3604 = vpop.xlane.xlu0 %3603
        %3605 = vadd.xlane.f32.xlu0 %v3478
        %v3606 = vpop.xlane.xlu0 %3605
        %3607 = vadd.xlane.f32.xlu0 %v3480
        %v3608 = vpop.xlane.xlu0 %3607
        %3609 = vadd.xlane.f32.xlu0 %v3482
        %v3610 = vpop.xlane.xlu0 %3609
        %3611 = vadd.xlane.f32.xlu0 %v3484
        %v3612 = vpop.xlane.xlu0 %3611
        %3613 = vadd.xlane.f32.xlu0 %v3486
        %v3614 = vpop.xlane.xlu0 %3613
        %3615 = vadd.xlane.f32.xlu0 %v3488
        %v3616 = vpop.xlane.xlu0 %3615
        %3617 = vadd.xlane.f32.xlu0 %v3490
        %v3618 = vpop.xlane.xlu0 %3617
        %3619 = vadd.xlane.f32.xlu0 %v3492
        %v3620 = vpop.xlane.xlu0 %3619
        %v3621 = vrcp.pop %v3494
        %v3622 = vrcp.pop %v3496
        %v3623 = vrcp.pop %v3498
        %v3624 = vrcp.pop %v3500
        %v3625 = vrcp.pop %v3502
        %v3626 = vrcp.pop %v3504
        %v3627 = vrcp.pop %v3506
        %v3628 = vrcp.pop %v3508
        %v3629 = vrcp.pop %v3510
        %v3630 = vrcp.pop %v3512
        %v3631 = vrcp.pop %v3514
        %v3632 = vrcp.pop %v3516
        %v3633 = vrcp.pop %v3518
        %v3634 = vrcp.pop %v3520
        %v3635 = vrcp.pop %v3522
        %v3636 = vrcp.pop %v3524
        %v3637 = vrcp.pop %v3526
        %v3638 = vrcp.pop %v3528
        %v3639 = vrcp.pop %v3530
        %v3640 = vrcp.pop %v3532
        %v3641 = vrcp.pop %v3534
        %v3642 = vrcp.pop %v3536
        %v3643 = vrcp.pop %v3538
        %v3644 = vrcp.pop %v3540
        %v3645 = vrcp.pop %v3542
        %v3646 = vrcp.pop %v3544
        %v3647 = vrcp.pop %v3546
        %v3648 = vrcp.pop %v3548
        %v3649 = vrcp.pop %v3550
        %v3650 = vrcp.pop %v3552
        %v3651 = vrcp.pop %v3554
        %v3652 = vrcp.pop %v3556
        %v3653 = vrcp.pop %v3558
        %v3654 = vrcp.pop %v3560
        %v3655 = vrcp.pop %v3562
        %v3656 = vrcp.pop %v3564
        %v3657 = vrcp.pop %v3566
        %v3658 = vrcp.pop %v3568
        %v3659 = vrcp.pop %v3570
        %v3660 = vrcp.pop %v3572
        %v3661 = vrcp.pop %v3574
        %v3662 = vrcp.pop %v3576
        %v3663 = vrcp.pop %v3578
        %v3664 = vrcp.pop %v3580
        %v3665 = vrcp.pop %v3582
        %v3666 = vrcp.pop %v3584
        %v3667 = vrcp.pop %v3586
        %v3668 = vrcp.pop %v3588
        %v3669 = vrcp.pop %v3590
        %v3670 = vrcp.pop %v3592
        %v3671 = vrcp.pop %v3594
        %v3672 = vrcp.pop %v3596
        %v3673 = vrcp.pop %v3598
        %v3674 = vrcp.pop %v3600
        %v3675 = vrcp.pop %v3602
        %v3676 = vrcp.pop %v3604
        %v3677 = vrcp.pop %v3606
        %v3678 = vrcp.pop %v3608
        %v3679 = vrcp.pop %v3610
        %v3680 = vrcp.pop %v3612
        %v3681 = vrcp.pop %v3614
        %v3682 = vrcp.pop %v3616
        %v3683 = vrcp.pop %v3618
        %v3684 = vrcp.pop %v3620
        %v3685 = vmul.f32 %v3366, %v3621
        %v3686 = vmul.f32 %v3368, %v3622
        %v3687 = vmul.f32 %v3370, %v3623
        %v3688 = vmul.f32 %v3372, %v3624
        %v3689 = vmul.f32 %v3374, %v3625
        %v3690 = vmul.f32 %v3376, %v3626
        %v3691 = vmul.f32 %v3378, %v3627
        %v3692 = vmul.f32 %v3380, %v3628
        %v3693 = vmul.f32 %v3382, %v3629
        %v3694 = vmul.f32 %v3384, %v3630
        %v3695 = vmul.f32 %v3386, %v3631
        %v3696 = vmul.f32 %v3388, %v3632
        %v3697 = vmul.f32 %v3390, %v3633
        %v3698 = vmul.f32 %v3392, %v3634
        %v3699 = vmul.f32 %v3394, %v3635
        %v3700 = vmul.f32 %v3396, %v3636
        %v3701 = vmul.f32 %v3398, %v3637
        %v3702 = vmul.f32 %v3400, %v3638
        %v3703 = vmul.f32 %v3402, %v3639
        %v3704 = vmul.f32 %v3404, %v3640
        %v3705 = vmul.f32 %v3406, %v3641
        %v3706 = vmul.f32 %v3408, %v3642
        %v3707 = vmul.f32 %v3410, %v3643
        %v3708 = vmul.f32 %v3412, %v3644
        %v3709 = vmul.f32 %v3414, %v3645
        %v3710 = vmul.f32 %v3416, %v3646
        %v3711 = vmul.f32 %v3418, %v3647
        %v3712 = vmul.f32 %v3420, %v3648
        %v3713 = vmul.f32 %v3422, %v3649
        %v3714 = vmul.f32 %v3424, %v3650
        %v3715 = vmul.f32 %v3426, %v3651
        %v3716 = vmul.f32 %v3428, %v3652
        %v3717 = vmul.f32 %v3430, %v3653
        %v3718 = vmul.f32 %v3432, %v3654
        %v3719 = vmul.f32 %v3434, %v3655
        %v3720 = vmul.f32 %v3436, %v3656
        %v3721 = vmul.f32 %v3438, %v3657
        %v3722 = vmul.f32 %v3440, %v3658
        %v3723 = vmul.f32 %v3442, %v3659
        %v3724 = vmul.f32 %v3444, %v3660
        %v3725 = vmul.f32 %v3446, %v3661
        %v3726 = vmul.f32 %v3448, %v3662
        %v3727 = vmul.f32 %v3450, %v3663
        %v3728 = vmul.f32 %v3452, %v3664
        %v3729 = vmul.f32 %v3454, %v3665
        %v3730 = vmul.f32 %v3456, %v3666
        %v3731 = vmul.f32 %v3458, %v3667
        %v3732 = vmul.f32 %v3460, %v3668
        %v3733 = vmul.f32 %v3462, %v3669
        %v3734 = vmul.f32 %v3464, %v3670
        %v3735 = vmul.f32 %v3466, %v3671
        %v3736 = vmul.f32 %v3468, %v3672
        %v3737 = vmul.f32 %v3470, %v3673
        %v3738 = vmul.f32 %v3472, %v3674
        %v3739 = vmul.f32 %v3474, %v3675
        %v3740 = vmul.f32 %v3476, %v3676
        %v3741 = vmul.f32 %v3478, %v3677
        %v3742 = vmul.f32 %v3480, %v3678
        %v3743 = vmul.f32 %v3482, %v3679
        %v3744 = vmul.f32 %v3484, %v3680
        %v3745 = vmul.f32 %v3486, %v3681
        %v3746 = vmul.f32 %v3488, %v3682
        %v3747 = vmul.f32 %v3490, %v3683
        %v3748 = vmul.f32 %v3492, %v3684
        %v3749 = vpack.c.bf16 %v3686, %v3685
        %v3750 = vpack.c.bf16 %v3688, %v3687
        %v3751 = vpack.c.bf16 %v3690, %v3689
        %v3752 = vpack.c.bf16 %v3692, %v3691
        %v3753 = vpack.c.bf16 %v3694, %v3693
        %v3754 = vpack.c.bf16 %v3696, %v3695
        %v3755 = vpack.c.bf16 %v3698, %v3697
        %v3756 = vpack.c.bf16 %v3700, %v3699
        %v3757 = vpack.c.bf16 %v3702, %v3701
        %v3758 = vpack.c.bf16 %v3704, %v3703
        %v3759 = vpack.c.bf16 %v3706, %v3705
        %v3760 = vpack.c.bf16 %v3708, %v3707
        %v3761 = vpack.c.bf16 %v3710, %v3709
        %v3762 = vpack.c.bf16 %v3712, %v3711
        %v3763 = vpack.c.bf16 %v3714, %v3713
        %v3764 = vpack.c.bf16 %v3716, %v3715
        %v3765 = vpack.c.bf16 %v3718, %v3717
        %v3766 = vpack.c.bf16 %v3720, %v3719
        %v3767 = vpack.c.bf16 %v3722, %v3721
        %v3768 = vpack.c.bf16 %v3724, %v3723
        %v3769 = vpack.c.bf16 %v3726, %v3725
        %v3770 = vpack.c.bf16 %v3728, %v3727
        %v3771 = vpack.c.bf16 %v3730, %v3729
        %v3772 = vpack.c.bf16 %v3732, %v3731
        %v3773 = vpack.c.bf16 %v3734, %v3733
        %v3774 = vpack.c.bf16 %v3736, %v3735
        %v3775 = vpack.c.bf16 %v3738, %v3737
        %v3776 = vpack.c.bf16 %v3740, %v3739
        %v3777 = vpack.c.bf16 %v3742, %v3741
        %v3778 = vpack.c.bf16 %v3744, %v3743
        %v3779 = vpack.c.bf16 %v3746, %v3745
        %v3780 = vpack.c.bf16 %v3748, %v3747
        %3781 = vrot.lane.b32.xlu0 %v840, 64
        %v3782 = vpop.permute.xlu0 %3781
        %3783 = vrot.lane.b32.xlu0 %v841, 64
        %v3784 = vpop.permute.xlu0 %3783
        %3785 = vrot.lane.b32.xlu0 %v842, 64
        %v3786 = vpop.permute.xlu0 %3785
        %3787 = vrot.lane.b32.xlu0 %v843, 64
        %v3788 = vpop.permute.xlu0 %3787
        %3789 = vrot.lane.b32.xlu0 %v844, 64
        %v3790 = vpop.permute.xlu0 %3789
        %3791 = vrot.lane.b32.xlu0 %v845, 64
        %v3792 = vpop.permute.xlu0 %3791
        %3793 = vrot.lane.b32.xlu0 %v846, 64
        %v3794 = vpop.permute.xlu0 %3793
        %3795 = vrot.lane.b32.xlu0 %v847, 64
        %v3796 = vpop.permute.xlu0 %3795
        %3805 = vmatprep.subr.bf16.mxu0 0
        %3806 = vmatpush1.bf16.msra.mxu0 %v3782
        %3807 = vmatprep.subr.bf16.mxu0 0
        %3808 = vmatpush1.bf16.msra.mxu0 %v3784
        %3809 = vmatprep.subr.bf16.mxu0 0
        %3810 = vmatpush1.bf16.msra.mxu0 %v3786
        %3811 = vmatprep.subr.bf16.mxu0 0
        %3812 = vmatpush1.bf16.msra.mxu0 %v3788
        %3813 = vmatprep.subr.bf16.mxu0 0
        %3814 = vmatpush1.bf16.msra.mxu0 %v3790
        %3815 = vmatprep.subr.bf16.mxu0 0
        %3816 = vmatpush1.bf16.msra.mxu0 %v3792
        %3817 = vmatprep.subr.bf16.mxu0 0
        %3818 = vmatpush1.bf16.msra.mxu0 %v3794
        %3819 = vmatprep.subr.bf16.mxu0 0
        %3820 = vmatpush1.bf16.msra.mxu0 %v3796
        %3821 = vmatprep.subr.bf16.mxu0 0
        %3822 = vmatpush1.bf16.msra.mxu0 0
        %3823 = vmatprep.subr.bf16.mxu0 0
        %3824 = vmatpush1.bf16.msra.mxu0 0
        %3825 = vmatprep.subr.bf16.mxu0 0
        %3826 = vmatpush1.bf16.msra.mxu0 0
        %3827 = vmatprep.subr.bf16.mxu0 0
        %3828 = vmatpush1.bf16.msra.mxu0 0
        %3829 = vmatprep.subr.bf16.mxu0 0
        %3830 = vmatpush1.bf16.msra.mxu0 0
        %3831 = vmatprep.subr.bf16.mxu0 0
        %3832 = vmatpush1.bf16.msra.mxu0 0
        %3833 = vmatprep.subr.bf16.mxu0 0
        %3834 = vmatpush1.bf16.msra.mxu0 0
        %3835 = vmatprep.subr.bf16.mxu0 0
        %3836 = vmatpush1.bf16.msra.mxu0 0
        %3837 = vmatprep.mubr.bf16.mxu0 0
        %3838 = vmatmul.mubr.bf16.gmra.mrb[0].mxu0 %v3749
        %v3839 = vpop.f32.mrb[0].mxu0
        %v3840 = vadd.f32 0.0, %v3839
        %v3841 = vpop.f32.mrb[0].mxu0
        %v3842 = vpop.f32.mrb[0].mxu0
        %v3843 = vadd.f32 0.0, %v3842
        %v3844 = vpop.f32.mrb[0].mxu0
        %3845 = vmatprep.mubr.bf16.mxu0 0
        %3846 = vmatmul.mubr.bf16.gmra.mrb[0].mxu0 %v3750
        %v3847 = vpop.f32.mrb[0].mxu0
        %v3848 = vadd.f32 0.0, %v3847
        %v3849 = vpop.f32.mrb[0].mxu0
        %v3850 = vpop.f32.mrb[0].mxu0
        %v3851 = vadd.f32 0.0, %v3850
        %v3852 = vpop.f32.mrb[0].mxu0
        %3853 = vmatprep.mubr.bf16.mxu0 0
        %3854 = vmatmul.mubr.bf16.gmra.mrb[0].mxu0 %v3751
        %v3855 = vpop.f32.mrb[0].mxu0
        %v3856 = vadd.f32 0.0, %v3855
        %v3857 = vpop.f32.mrb[0].mxu0
        %v3858 = vpop.f32.mrb[0].mxu0
        %v3859 = vadd.f32 0.0, %v3858
        %v3860 = vpop.f32.mrb[0].mxu0
        %3861 = vmatprep.mubr.bf16.mxu0 0
        %3862 = vmatmul.mubr.bf16.gmra.mrb[0].mxu0 %v3752
        %v3863 = vpop.f32.mrb[0].mxu0
        %v3864 = vadd.f32 0.0, %v3863
        %v3865 = vpop.f32.mrb[0].mxu0
        %v3866 = vpop.f32.mrb[0].mxu0
        %v3867 = vadd.f32 0.0, %v3866
        %v3868 = vpop.f32.mrb[0].mxu0
        %3869 = vmatprep.mubr.bf16.mxu0 0
        %3870 = vmatmul.mubr.bf16.gmra.mrb[0].mxu0 %v3753
        %v3871 = vpop.f32.mrb[0].mxu0
        %v3872 = vadd.f32 0.0, %v3871
        %v3873 = vpop.f32.mrb[0].mxu0
        %v3874 = vpop.f32.mrb[0].mxu0
        %v3875 = vadd.f32 0.0, %v3874
        %v3876 = vpop.f32.mrb[0].mxu0
        %3877 = vmatprep.mubr.bf16.mxu0 0
        %3878 = vmatmul.mubr.bf16.gmra.mrb[0].mxu0 %v3754
        %v3879 = vpop.f32.mrb[0].mxu0
        %v3880 = vadd.f32 0.0, %v3879
        %v3881 = vpop.f32.mrb[0].mxu0
        %v3882 = vpop.f32.mrb[0].mxu0
        %v3883 = vadd.f32 0.0, %v3882
        %v3884 = vpop.f32.mrb[0].mxu0
        %3885 = vmatprep.mubr.bf16.mxu0 0
        %3886 = vmatmul.mubr.bf16.gmra.mrb[0].mxu0 %v3755
        %v3887 = vpop.f32.mrb[0].mxu0
        %v3888 = vadd.f32 0.0, %v3887
        %v3889 = vpop.f32.mrb[0].mxu0
        %v3890 = vpop.f32.mrb[0].mxu0
        %v3891 = vadd.f32 0.0, %v3890
        %v3892 = vpop.f32.mrb[0].mxu0
        %3893 = vmatprep.mubr.bf16.mxu0 0
        %3894 = vmatmul.mubr.bf16.gmra.mrb[0].mxu0 %v3756
        %v3895 = vpop.f32.mrb[0].mxu0
        %v3896 = vadd.f32 0.0, %v3895
        %v3897 = vpop.f32.mrb[0].mxu0
        %v3898 = vpop.f32.mrb[0].mxu0
        %v3899 = vadd.f32 0.0, %v3898
        %v3900 = vpop.f32.mrb[0].mxu0
        %3901 = vdwg.mxu0
        %3902 = vrot.lane.b32.xlu0 %v857, 64
        %v3903 = vpop.permute.xlu0 %3902
        %3904 = vrot.lane.b32.xlu0 %v859, 64
        %v3905 = vpop.permute.xlu0 %3904
        %3906 = vrot.lane.b32.xlu0 %v861, 64
        %v3907 = vpop.permute.xlu0 %3906
        %3908 = vrot.lane.b32.xlu0 %v863, 64
        %v3909 = vpop.permute.xlu0 %3908
        %3910 = vrot.lane.b32.xlu0 %v865, 64
        %v3911 = vpop.permute.xlu0 %3910
        %3912 = vrot.lane.b32.xlu0 %v867, 64
        %v3913 = vpop.permute.xlu0 %3912
        %3914 = vrot.lane.b32.xlu0 %v869, 64
        %v3915 = vpop.permute.xlu0 %3914
        %3916 = vrot.lane.b32.xlu0 %v871, 64
        %v3917 = vpop.permute.xlu0 %3916
        %3926 = vmatprep.subr.bf16.mxu0 0
        %3927 = vmatpush1.bf16.msra.mxu0 %v3903
        %3928 = vmatprep.subr.bf16.mxu0 0
        %3929 = vmatpush1.bf16.msra.mxu0 %v3905
        %3930 = vmatprep.subr.bf16.mxu0 0
        %3931 = vmatpush1.bf16.msra.mxu0 %v3907
        %3932 = vmatprep.subr.bf16.mxu0 0
        %3933 = vmatpush1.bf16.msra.mxu0 %v3909
        %3934 = vmatprep.subr.bf16.mxu0 0
        %3935 = vmatpush1.bf16.msra.mxu0 %v3911
        %3936 = vmatprep.subr.bf16.mxu0 0
        %3937 = vmatpush1.bf16.msra.mxu0 %v3913
        %3938 = vmatprep.subr.bf16.mxu0 0
        %3939 = vmatpush1.bf16.msra.mxu0 %v3915
        %3940 = vmatprep.subr.bf16.mxu0 0
        %3941 = vmatpush1.bf16.msra.mxu0 %v3917
        %3942 = vmatprep.subr.bf16.mxu0 0
        %3943 = vmatpush1.bf16.msra.mxu0 0
        %3944 = vmatprep.subr.bf16.mxu0 0
        %3945 = vmatpush1.bf16.msra.mxu0 0
        %3946 = vmatprep.subr.bf16.mxu0 0
        %3947 = vmatpush1.bf16.msra.mxu0 0
        %3948 = vmatprep.subr.bf16.mxu0 0
        %3949 = vmatpush1.bf16.msra.mxu0 0
        %3950 = vmatprep.subr.bf16.mxu0 0
        %3951 = vmatpush1.bf16.msra.mxu0 0
        %3952 = vmatprep.subr.bf16.mxu0 0
        %3953 = vmatpush1.bf16.msra.mxu0 0
        %3954 = vmatprep.subr.bf16.mxu0 0
        %3955 = vmatpush1.bf16.msra.mxu0 0
        %3956 = vmatprep.subr.bf16.mxu0 0
        %3957 = vmatpush1.bf16.msra.mxu0 0
        %3958 = vmatprep.mubr.bf16.mxu0 0
        %3959 = vmatmul.mubr.bf16.gmra.mrb[0].mxu0 %v3757
        %v3960 = vpop.f32.mrb[0].mxu0
        %v3961 = vadd.f32 0.0, %v3960
        %v3962 = vpop.f32.mrb[0].mxu0
        %v3963 = vpop.f32.mrb[0].mxu0
        %v3964 = vadd.f32 0.0, %v3963
        %v3965 = vpop.f32.mrb[0].mxu0
        %3966 = vmatprep.mubr.bf16.mxu0 0
        %3967 = vmatmul.mubr.bf16.gmra.mrb[0].mxu0 %v3758
        %v3968 = vpop.f32.mrb[0].mxu0
        %v3969 = vadd.f32 0.0, %v3968
        %v3970 = vpop.f32.mrb[0].mxu0
        %v3971 = vpop.f32.mrb[0].mxu0
        %v3972 = vadd.f32 0.0, %v3971
        %v3973 = vpop.f32.mrb[0].mxu0
        %3974 = vmatprep.mubr.bf16.mxu0 0
        %3975 = vmatmul.mubr.bf16.gmra.mrb[0].mxu0 %v3759
        %v3976 = vpop.f32.mrb[0].mxu0
        %v3977 = vadd.f32 0.0, %v3976
        %v3978 = vpop.f32.mrb[0].mxu0
        %v3979 = vpop.f32.mrb[0].mxu0
        %v3980 = vadd.f32 0.0, %v3979
        %v3981 = vpop.f32.mrb[0].mxu0
        %3982 = vmatprep.mubr.bf16.mxu0 0
        %3983 = vmatmul.mubr.bf16.gmra.mrb[0].mxu0 %v3760
        %v3984 = vpop.f32.mrb[0].mxu0
        %v3985 = vadd.f32 0.0, %v3984
        %v3986 = vpop.f32.mrb[0].mxu0
        %v3987 = vpop.f32.mrb[0].mxu0
        %v3988 = vadd.f32 0.0, %v3987
        %v3989 = vpop.f32.mrb[0].mxu0
        %3990 = vmatprep.mubr.bf16.mxu0 0
        %3991 = vmatmul.mubr.bf16.gmra.mrb[0].mxu0 %v3761
        %v3992 = vpop.f32.mrb[0].mxu0
        %v3993 = vadd.f32 0.0, %v3992
        %v3994 = vpop.f32.mrb[0].mxu0
        %v3995 = vpop.f32.mrb[0].mxu0
        %v3996 = vadd.f32 0.0, %v3995
        %v3997 = vpop.f32.mrb[0].mxu0
        %3998 = vmatprep.mubr.bf16.mxu0 0
        %3999 = vmatmul.mubr.bf16.gmra.mrb[0].mxu0 %v3762
        %v4000 = vpop.f32.mrb[0].mxu0
        %v4001 = vadd.f32 0.0, %v4000
        %v4002 = vpop.f32.mrb[0].mxu0
        %v4003 = vpop.f32.mrb[0].mxu0
        %v4004 = vadd.f32 0.0, %v4003
        %v4005 = vpop.f32.mrb[0].mxu0
        %4006 = vmatprep.mubr.bf16.mxu0 0
        %4007 = vmatmul.mubr.bf16.gmra.mrb[0].mxu0 %v3763
        %v4008 = vpop.f32.mrb[0].mxu0
        %v4009 = vadd.f32 0.0, %v4008
        %v4010 = vpop.f32.mrb[0].mxu0
        %v4011 = vpop.f32.mrb[0].mxu0
        %v4012 = vadd.f32 0.0, %v4011
        %v4013 = vpop.f32.mrb[0].mxu0
        %4014 = vmatprep.mubr.bf16.mxu0 0
        %4015 = vmatmul.mubr.bf16.gmra.mrb[0].mxu0 %v3764
        %v4016 = vpop.f32.mrb[0].mxu0
        %v4017 = vadd.f32 0.0, %v4016
        %v4018 = vpop.f32.mrb[0].mxu0
        %v4019 = vpop.f32.mrb[0].mxu0
        %v4020 = vadd.f32 0.0, %v4019
        %v4021 = vpop.f32.mrb[0].mxu0
        %4022 = vdwg.mxu0
        %4023 = vrot.lane.b32.xlu0 %v873, 64
        %v4024 = vpop.permute.xlu0 %4023
        %4025 = vrot.lane.b32.xlu0 %v875, 64
        %v4026 = vpop.permute.xlu0 %4025
        %4027 = vrot.lane.b32.xlu0 %v877, 64
        %v4028 = vpop.permute.xlu0 %4027
        %4029 = vrot.lane.b32.xlu0 %v879, 64
        %v4030 = vpop.permute.xlu0 %4029
        %4031 = vrot.lane.b32.xlu0 %v881, 64
        %v4032 = vpop.permute.xlu0 %4031
        %4033 = vrot.lane.b32.xlu0 %v883, 64
        %v4034 = vpop.permute.xlu0 %4033
        %4035 = vrot.lane.b32.xlu0 %v885, 64
        %v4036 = vpop.permute.xlu0 %4035
        %4037 = vrot.lane.b32.xlu0 %v887, 64
        %v4038 = vpop.permute.xlu0 %4037
        %4047 = vmatprep.subr.bf16.mxu0 0
        %4048 = vmatpush1.bf16.msra.mxu0 %v4024
        %4049 = vmatprep.subr.bf16.mxu0 0
        %4050 = vmatpush1.bf16.msra.mxu0 %v4026
        %4051 = vmatprep.subr.bf16.mxu0 0
        %4052 = vmatpush1.bf16.msra.mxu0 %v4028
        %4053 = vmatprep.subr.bf16.mxu0 0
        %4054 = vmatpush1.bf16.msra.mxu0 %v4030
        %4055 = vmatprep.subr.bf16.mxu0 0
        %4056 = vmatpush1.bf16.msra.mxu0 %v4032
        %4057 = vmatprep.subr.bf16.mxu0 0
        %4058 = vmatpush1.bf16.msra.mxu0 %v4034
        %4059 = vmatprep.subr.bf16.mxu0 0
        %4060 = vmatpush1.bf16.msra.mxu0 %v4036
        %4061 = vmatprep.subr.bf16.mxu0 0
        %4062 = vmatpush1.bf16.msra.mxu0 %v4038
        %4063 = vmatprep.subr.bf16.mxu0 0
        %4064 = vmatpush1.bf16.msra.mxu0 0
        %4065 = vmatprep.subr.bf16.mxu0 0
        %4066 = vmatpush1.bf16.msra.mxu0 0
        %4067 = vmatprep.subr.bf16.mxu0 0
        %4068 = vmatpush1.bf16.msra.mxu0 0
        %4069 = vmatprep.subr.bf16.mxu0 0
        %4070 = vmatpush1.bf16.msra.mxu0 0
        %4071 = vmatprep.subr.bf16.mxu0 0
        %4072 = vmatpush1.bf16.msra.mxu0 0
        %4073 = vmatprep.subr.bf16.mxu0 0
        %4074 = vmatpush1.bf16.msra.mxu0 0
        %4075 = vmatprep.subr.bf16.mxu0 0
        %4076 = vmatpush1.bf16.msra.mxu0 0
        %4077 = vmatprep.subr.bf16.mxu0 0
        %4078 = vmatpush1.bf16.msra.mxu0 0
        %4079 = vmatprep.mubr.bf16.mxu0 0
        %4080 = vmatmul.mubr.bf16.gmra.mrb[0].mxu0 %v3765
        %v4081 = vpop.f32.mrb[0].mxu0
        %v4082 = vadd.f32 0.0, %v4081
        %v4083 = vpop.f32.mrb[0].mxu0
        %v4084 = vpop.f32.mrb[0].mxu0
        %v4085 = vadd.f32 0.0, %v4084
        %v4086 = vpop.f32.mrb[0].mxu0
        %4087 = vmatprep.mubr.bf16.mxu0 0
        %4088 = vmatmul.mubr.bf16.gmra.mrb[0].mxu0 %v3766
        %v4089 = vpop.f32.mrb[0].mxu0
        %v4090 = vadd.f32 0.0, %v4089
        %v4091 = vpop.f32.mrb[0].mxu0
        %v4092 = vpop.f32.mrb[0].mxu0
        %v4093 = vadd.f32 0.0, %v4092
        %v4094 = vpop.f32.mrb[0].mxu0
        %4095 = vmatprep.mubr.bf16.mxu0 0
        %4096 = vmatmul.mubr.bf16.gmra.mrb[0].mxu0 %v3767
        %v4097 = vpop.f32.mrb[0].mxu0
        %v4098 = vadd.f32 0.0, %v4097
        %v4099 = vpop.f32.mrb[0].mxu0
        %v4100 = vpop.f32.mrb[0].mxu0
        %v4101 = vadd.f32 0.0, %v4100
        %v4102 = vpop.f32.mrb[0].mxu0
        %4103 = vmatprep.mubr.bf16.mxu0 0
        %4104 = vmatmul.mubr.bf16.gmra.mrb[0].mxu0 %v3768
        %v4105 = vpop.f32.mrb[0].mxu0
        %v4106 = vadd.f32 0.0, %v4105
        %v4107 = vpop.f32.mrb[0].mxu0
        %v4108 = vpop.f32.mrb[0].mxu0
        %v4109 = vadd.f32 0.0, %v4108
        %v4110 = vpop.f32.mrb[0].mxu0
        %4111 = vmatprep.mubr.bf16.mxu0 0
        %4112 = vmatmul.mubr.bf16.gmra.mrb[0].mxu0 %v3769
        %v4113 = vpop.f32.mrb[0].mxu0
        %v4114 = vadd.f32 0.0, %v4113
        %v4115 = vpop.f32.mrb[0].mxu0
        %v4116 = vpop.f32.mrb[0].mxu0
        %v4117 = vadd.f32 0.0, %v4116
        %v4118 = vpop.f32.mrb[0].mxu0
        %4119 = vmatprep.mubr.bf16.mxu0 0
        %4120 = vmatmul.mubr.bf16.gmra.mrb[0].mxu0 %v3770
        %v4121 = vpop.f32.mrb[0].mxu0
        %v4122 = vadd.f32 0.0, %v4121
        %v4123 = vpop.f32.mrb[0].mxu0
        %v4124 = vpop.f32.mrb[0].mxu0
        %v4125 = vadd.f32 0.0, %v4124
        %v4126 = vpop.f32.mrb[0].mxu0
        %4127 = vmatprep.mubr.bf16.mxu0 0
        %4128 = vmatmul.mubr.bf16.gmra.mrb[0].mxu0 %v3771
        %v4129 = vpop.f32.mrb[0].mxu0
        %v4130 = vadd.f32 0.0, %v4129
        %v4131 = vpop.f32.mrb[0].mxu0
        %v4132 = vpop.f32.mrb[0].mxu0
        %v4133 = vadd.f32 0.0, %v4132
        %v4134 = vpop.f32.mrb[0].mxu0
        %4135 = vmatprep.mubr.bf16.mxu0 0
        %4136 = vmatmul.mubr.bf16.gmra.mrb[0].mxu0 %v3772
        %v4137 = vpop.f32.mrb[0].mxu0
        %v4138 = vadd.f32 0.0, %v4137
        %v4139 = vpop.f32.mrb[0].mxu0
        %v4140 = vpop.f32.mrb[0].mxu0
        %v4141 = vadd.f32 0.0, %v4140
        %v4142 = vpop.f32.mrb[0].mxu0
        %4143 = vdwg.mxu0
        %4144 = vrot.lane.b32.xlu0 %v889, 64
        %v4145 = vpop.permute.xlu0 %4144
        %4146 = vrot.lane.b32.xlu0 %v891, 64
        %v4147 = vpop.permute.xlu0 %4146
        %4148 = vrot.lane.b32.xlu0 %v893, 64
        %v4149 = vpop.permute.xlu0 %4148
        %4150 = vrot.lane.b32.xlu0 %v895, 64
        %v4151 = vpop.permute.xlu0 %4150
        %4152 = vrot.lane.b32.xlu0 %v897, 64
        %v4153 = vpop.permute.xlu0 %4152
        %4154 = vrot.lane.b32.xlu0 %v899, 64
        %v4155 = vpop.permute.xlu0 %4154
        %4156 = vrot.lane.b32.xlu0 %v901, 64
        %v4157 = vpop.permute.xlu0 %4156
        %4158 = vrot.lane.b32.xlu0 %v903, 64
        %v4159 = vpop.permute.xlu0 %4158
        %4168 = vmatprep.subr.bf16.mxu0 0
        %4169 = vmatpush1.bf16.msra.mxu0 %v4145
        %4170 = vmatprep.subr.bf16.mxu0 0
        %4171 = vmatpush1.bf16.msra.mxu0 %v4147
        %4172 = vmatprep.subr.bf16.mxu0 0
        %4173 = vmatpush1.bf16.msra.mxu0 %v4149
        %4174 = vmatprep.subr.bf16.mxu0 0
        %4175 = vmatpush1.bf16.msra.mxu0 %v4151
        %4176 = vmatprep.subr.bf16.mxu0 0
        %4177 = vmatpush1.bf16.msra.mxu0 %v4153
        %4178 = vmatprep.subr.bf16.mxu0 0
        %4179 = vmatpush1.bf16.msra.mxu0 %v4155
        %4180 = vmatprep.subr.bf16.mxu0 0
        %4181 = vmatpush1.bf16.msra.mxu0 %v4157
        %4182 = vmatprep.subr.bf16.mxu0 0
        %4183 = vmatpush1.bf16.msra.mxu0 %v4159
        %4184 = vmatprep.subr.bf16.mxu0 0
        %4185 = vmatpush1.bf16.msra.mxu0 0
        %4186 = vmatprep.subr.bf16.mxu0 0
        %4187 = vmatpush1.bf16.msra.mxu0 0
        %4188 = vmatprep.subr.bf16.mxu0 0
        %4189 = vmatpush1.bf16.msra.mxu0 0
        %4190 = vmatprep.subr.bf16.mxu0 0
        %4191 = vmatpush1.bf16.msra.mxu0 0
        %4192 = vmatprep.subr.bf16.mxu0 0
        %4193 = vmatpush1.bf16.msra.mxu0 0
        %4194 = vmatprep.subr.bf16.mxu0 0
        %4195 = vmatpush1.bf16.msra.mxu0 0
        %4196 = vmatprep.subr.bf16.mxu0 0
        %4197 = vmatpush1.bf16.msra.mxu0 0
        %4198 = vmatprep.subr.bf16.mxu0 0
        %4199 = vmatpush1.bf16.msra.mxu0 0
        %4200 = vmatprep.mubr.bf16.mxu0 0
        %4201 = vmatmul.mubr.bf16.gmra.mrb[0].mxu0 %v3773
        %v4202 = vpop.f32.mrb[0].mxu0
        %v4203 = vadd.f32 0.0, %v4202
        %v4204 = vpop.f32.mrb[0].mxu0
        %v4205 = vpop.f32.mrb[0].mxu0
        %v4206 = vadd.f32 0.0, %v4205
        %v4207 = vpop.f32.mrb[0].mxu0
        %4208 = vmatprep.mubr.bf16.mxu0 0
        %4209 = vmatmul.mubr.bf16.gmra.mrb[0].mxu0 %v3774
        %v4210 = vpop.f32.mrb[0].mxu0
        %v4211 = vadd.f32 0.0, %v4210
        %v4212 = vpop.f32.mrb[0].mxu0
        %v4213 = vpop.f32.mrb[0].mxu0
        %v4214 = vadd.f32 0.0, %v4213
        %v4215 = vpop.f32.mrb[0].mxu0
        %4216 = vmatprep.mubr.bf16.mxu0 0
        %4217 = vmatmul.mubr.bf16.gmra.mrb[0].mxu0 %v3775
        %v4218 = vpop.f32.mrb[0].mxu0
        %v4219 = vadd.f32 0.0, %v4218
        %v4220 = vpop.f32.mrb[0].mxu0
        %v4221 = vpop.f32.mrb[0].mxu0
        %v4222 = vadd.f32 0.0, %v4221
        %v4223 = vpop.f32.mrb[0].mxu0
        %4224 = vmatprep.mubr.bf16.mxu0 0
        %4225 = vmatmul.mubr.bf16.gmra.mrb[0].mxu0 %v3776
        %v4226 = vpop.f32.mrb[0].mxu0
        %v4227 = vadd.f32 0.0, %v4226
        %v4228 = vpop.f32.mrb[0].mxu0
        %v4229 = vpop.f32.mrb[0].mxu0
        %v4230 = vadd.f32 0.0, %v4229
        %v4231 = vpop.f32.mrb[0].mxu0
        %4232 = vmatprep.mubr.bf16.mxu0 0
        %4233 = vmatmul.mubr.bf16.gmra.mrb[0].mxu0 %v3777
        %v4234 = vpop.f32.mrb[0].mxu0
        %v4235 = vadd.f32 0.0, %v4234
        %v4236 = vpop.f32.mrb[0].mxu0
        %v4237 = vpop.f32.mrb[0].mxu0
        %v4238 = vadd.f32 0.0, %v4237
        %v4239 = vpop.f32.mrb[0].mxu0
        %4240 = vmatprep.mubr.bf16.mxu0 0
        %4241 = vmatmul.mubr.bf16.gmra.mrb[0].mxu0 %v3778
        %v4242 = vpop.f32.mrb[0].mxu0
        %v4243 = vadd.f32 0.0, %v4242
        %v4244 = vpop.f32.mrb[0].mxu0
        %v4245 = vpop.f32.mrb[0].mxu0
        %v4246 = vadd.f32 0.0, %v4245
        %v4247 = vpop.f32.mrb[0].mxu0
        %4248 = vmatprep.mubr.bf16.mxu0 0
        %4249 = vmatmul.mubr.bf16.gmra.mrb[0].mxu0 %v3779
        %v4250 = vpop.f32.mrb[0].mxu0
        %v4251 = vadd.f32 0.0, %v4250
        %v4252 = vpop.f32.mrb[0].mxu0
        %v4253 = vpop.f32.mrb[0].mxu0
        %v4254 = vadd.f32 0.0, %v4253
        %v4255 = vpop.f32.mrb[0].mxu0
        %4256 = vmatprep.mubr.bf16.mxu0 0
        %4257 = vmatmul.mubr.bf16.gmra.mrb[0].mxu0 %v3780
        %v4258 = vpop.f32.mrb[0].mxu0
        %v4259 = vadd.f32 0.0, %v4258
        %v4260 = vpop.f32.mrb[0].mxu0
        %v4261 = vpop.f32.mrb[0].mxu0
        %v4262 = vadd.f32 0.0, %v4261
        %v4263 = vpop.f32.mrb[0].mxu0
        %4264 = vdwg.mxu0
        %v4265 = vpack.c.bf16 %v3843, %v3840
        %v4266 = vpack.c.bf16 %v3851, %v3848
        %v4267 = vpack.c.bf16 %v3859, %v3856
        %v4268 = vpack.c.bf16 %v3867, %v3864
        %v4269 = vpack.c.bf16 %v3875, %v3872
        %v4270 = vpack.c.bf16 %v3883, %v3880
        %v4271 = vpack.c.bf16 %v3891, %v3888
        %v4272 = vpack.c.bf16 %v3899, %v3896
        %v4273 = vpack.c.bf16 %v3964, %v3961
        %v4274 = vpack.c.bf16 %v3972, %v3969
        %v4275 = vpack.c.bf16 %v3980, %v3977
        %v4276 = vpack.c.bf16 %v3988, %v3985
        %v4277 = vpack.c.bf16 %v3996, %v3993
        %v4278 = vpack.c.bf16 %v4004, %v4001
        %v4279 = vpack.c.bf16 %v4012, %v4009
        %v4280 = vpack.c.bf16 %v4020, %v4017
        %v4281 = vpack.c.bf16 %v4085, %v4082
        %v4282 = vpack.c.bf16 %v4093, %v4090
        %v4283 = vpack.c.bf16 %v4101, %v4098
        %v4284 = vpack.c.bf16 %v4109, %v4106
        %v4285 = vpack.c.bf16 %v4117, %v4114
        %v4286 = vpack.c.bf16 %v4125, %v4122
        %v4287 = vpack.c.bf16 %v4133, %v4130
        %v4288 = vpack.c.bf16 %v4141, %v4138
        %v4289 = vpack.c.bf16 %v4206, %v4203
        %v4290 = vpack.c.bf16 %v4214, %v4211
        %v4291 = vpack.c.bf16 %v4222, %v4219
        %v4292 = vpack.c.bf16 %v4230, %v4227
        %v4293 = vpack.c.bf16 %v4238, %v4235
        %v4294 = vpack.c.bf16 %v4246, %v4243
        %v4295 = vpack.c.bf16 %v4254, %v4251
        %v4296 = vpack.c.bf16 %v4262, %v4259
        %v4297 = vld [vmem:[#allocation7] sm:$0xf]
        %v4298 = vld [vmem:[#allocation7 + $0x4] sm:$0xf]
        %v4299 = vld [vmem:[#allocation7 + $0x8] sm:$0xf]
        %v4300 = vld [vmem:[#allocation7 + $0xc] sm:$0xf]
        %v4302 = vsel %vm1228, %v4265, 0
        %v4305 = vsel %vm1228, %v4266, 0
        %v4308 = vsel %vm1228, %v4267, 0
        %v4311 = vsel %vm1228, %v4268, 0
        %v4314 = vsel %vm1228, %v4269, 0
        %v4317 = vsel %vm1228, %v4270, 0
        %v4320 = vsel %vm1228, %v4271, 0
        %v4323 = vsel %vm1228, %v4272, 0
        %vm4325 = vcmask 1043456
        %v4327 = vsel %vm4325, %v4297, 0
        %4329 = vmatprep.subr.bf16.mxu0 0
        %4330 = vmatpush1.bf16.msra.mxu0 %v4327
        %4331 = vmatprep.subr.bf16.mxu0 0
        %4332 = vmatpush1.bf16.msra.mxu0 0
        %4333 = vmatprep.subr.bf16.mxu0 0
        %4334 = vmatpush1.bf16.msra.mxu0 0
        %4335 = vmatprep.subr.bf16.mxu0 0
        %4336 = vmatpush1.bf16.msra.mxu0 0
        %4337 = vmatprep.subr.bf16.mxu0 0
        %4338 = vmatpush1.bf16.msra.mxu0 0
        %4339 = vmatprep.subr.bf16.mxu0 0
        %4340 = vmatpush1.bf16.msra.mxu0 0
        %4341 = vmatprep.subr.bf16.mxu0 0
        %4342 = vmatpush1.bf16.msra.mxu0 0
        %4343 = vmatprep.subr.bf16.mxu0 0
        %4344 = vmatpush1.bf16.msra.mxu0 0
        %4345 = vmatprep.subr.bf16.mxu0 0
        %4346 = vmatpush1.bf16.msra.mxu0 0
        %4347 = vmatprep.subr.bf16.mxu0 0
        %4348 = vmatpush1.bf16.msra.mxu0 0
        %4349 = vmatprep.subr.bf16.mxu0 0
        %4350 = vmatpush1.bf16.msra.mxu0 0
        %4351 = vmatprep.subr.bf16.mxu0 0
        %4352 = vmatpush1.bf16.msra.mxu0 0
        %4353 = vmatprep.subr.bf16.mxu0 0
        %4354 = vmatpush1.bf16.msra.mxu0 0
        %4355 = vmatprep.subr.bf16.mxu0 0
        %4356 = vmatpush1.bf16.msra.mxu0 0
        %4357 = vmatprep.subr.bf16.mxu0 0
        %4358 = vmatpush1.bf16.msra.mxu0 0
        %4359 = vmatprep.subr.bf16.mxu0 0
        %4360 = vmatpush1.bf16.msra.mxu0 0
        %4361 = vmatprep.mubr.bf16.mxu0 0
        %4362 = vmatmul.mubr.bf16.gmra.mrb[0].mxu0 %v4302
        %v4363 = vpop.f32.mrb[0].mxu0
        %v4364 = vadd.f32 0.0, %v4363
        %v4365 = vpop.f32.mrb[0].mxu0
        %v4366 = vpop.f32.mrb[0].mxu0
        %v4367 = vadd.f32 0.0, %v4366
        %v4368 = vpop.f32.mrb[0].mxu0
        %4369 = vmatprep.mubr.bf16.mxu0 0
        %4370 = vmatmul.mubr.bf16.gmra.mrb[0].mxu0 %v4305
        %v4371 = vpop.f32.mrb[0].mxu0
        %v4372 = vadd.f32 0.0, %v4371
        %v4373 = vpop.f32.mrb[0].mxu0
        %v4374 = vpop.f32.mrb[0].mxu0
        %v4375 = vadd.f32 0.0, %v4374
        %v4376 = vpop.f32.mrb[0].mxu0
        %4377 = vmatprep.mubr.bf16.mxu0 0
        %4378 = vmatmul.mubr.bf16.gmra.mrb[0].mxu0 %v4308
        %v4379 = vpop.f32.mrb[0].mxu0
        %v4380 = vadd.f32 0.0, %v4379
        %v4381 = vpop.f32.mrb[0].mxu0
        %v4382 = vpop.f32.mrb[0].mxu0
        %v4383 = vadd.f32 0.0, %v4382
        %v4384 = vpop.f32.mrb[0].mxu0
        %4385 = vmatprep.mubr.bf16.mxu0 0
        %4386 = vmatmul.mubr.bf16.gmra.mrb[0].mxu0 %v4311
        %v4387 = vpop.f32.mrb[0].mxu0
        %v4388 = vadd.f32 0.0, %v4387
        %v4389 = vpop.f32.mrb[0].mxu0
        %v4390 = vpop.f32.mrb[0].mxu0
        %v4391 = vadd.f32 0.0, %v4390
        %v4392 = vpop.f32.mrb[0].mxu0
        %4393 = vmatprep.mubr.bf16.mxu0 0
        %4394 = vmatmul.mubr.bf16.gmra.mrb[0].mxu0 %v4314
        %v4395 = vpop.f32.mrb[0].mxu0
        %v4396 = vadd.f32 0.0, %v4395
        %v4397 = vpop.f32.mrb[0].mxu0
        %v4398 = vpop.f32.mrb[0].mxu0
        %v4399 = vadd.f32 0.0, %v4398
        %v4400 = vpop.f32.mrb[0].mxu0
        %4401 = vmatprep.mubr.bf16.mxu0 0
        %4402 = vmatmul.mubr.bf16.gmra.mrb[0].mxu0 %v4317
        %v4403 = vpop.f32.mrb[0].mxu0
        %v4404 = vadd.f32 0.0, %v4403
        %v4405 = vpop.f32.mrb[0].mxu0
        %v4406 = vpop.f32.mrb[0].mxu0
        %v4407 = vadd.f32 0.0, %v4406
        %v4408 = vpop.f32.mrb[0].mxu0
        %4409 = vmatprep.mubr.bf16.mxu0 0
        %4410 = vmatmul.mubr.bf16.gmra.mrb[0].mxu0 %v4320
        %v4411 = vpop.f32.mrb[0].mxu0
        %v4412 = vadd.f32 0.0, %v4411
        %v4413 = vpop.f32.mrb[0].mxu0
        %v4414 = vpop.f32.mrb[0].mxu0
        %v4415 = vadd.f32 0.0, %v4414
        %v4416 = vpop.f32.mrb[0].mxu0
        %4417 = vmatprep.mubr.bf16.mxu0 0
        %4418 = vmatmul.mubr.bf16.gmra.mrb[0].mxu0 %v4323
        %v4419 = vpop.f32.mrb[0].mxu0
        %v4420 = vadd.f32 0.0, %v4419
        %v4421 = vpop.f32.mrb[0].mxu0
        %v4422 = vpop.f32.mrb[0].mxu0
        %v4423 = vadd.f32 0.0, %v4422
        %v4424 = vpop.f32.mrb[0].mxu0
        %4425 = vdwg.mxu0
        %v4427 = vsel %vm1228, %v4273, 0
        %v4430 = vsel %vm1228, %v4274, 0
        %v4433 = vsel %vm1228, %v4275, 0
        %v4436 = vsel %vm1228, %v4276, 0
        %v4439 = vsel %vm1228, %v4277, 0
        %v4442 = vsel %vm1228, %v4278, 0
        %v4445 = vsel %vm1228, %v4279, 0
        %v4448 = vsel %vm1228, %v4280, 0
        %v4451 = vsel %vm4325, %v4298, 0
        %4453 = vmatprep.subr.bf16.mxu0 0
        %4454 = vmatpush1.bf16.msra.mxu0 %v4451
        %4455 = vmatprep.subr.bf16.mxu0 0
        %4456 = vmatpush1.bf16.msra.mxu0 0
        %4457 = vmatprep.subr.bf16.mxu0 0
        %4458 = vmatpush1.bf16.msra.mxu0 0
        %4459 = vmatprep.subr.bf16.mxu0 0
        %4460 = vmatpush1.bf16.msra.mxu0 0
        %4461 = vmatprep.subr.bf16.mxu0 0
        %4462 = vmatpush1.bf16.msra.mxu0 0
        %4463 = vmatprep.subr.bf16.mxu0 0
        %4464 = vmatpush1.bf16.msra.mxu0 0
        %4465 = vmatprep.subr.bf16.mxu0 0
        %4466 = vmatpush1.bf16.msra.mxu0 0
        %4467 = vmatprep.subr.bf16.mxu0 0
        %4468 = vmatpush1.bf16.msra.mxu0 0
        %4469 = vmatprep.subr.bf16.mxu0 0
        %4470 = vmatpush1.bf16.msra.mxu0 0
        %4471 = vmatprep.subr.bf16.mxu0 0
        %4472 = vmatpush1.bf16.msra.mxu0 0
        %4473 = vmatprep.subr.bf16.mxu0 0
        %4474 = vmatpush1.bf16.msra.mxu0 0
        %4475 = vmatprep.subr.bf16.mxu0 0
        %4476 = vmatpush1.bf16.msra.mxu0 0
        %4477 = vmatprep.subr.bf16.mxu0 0
        %4478 = vmatpush1.bf16.msra.mxu0 0
        %4479 = vmatprep.subr.bf16.mxu0 0
        %4480 = vmatpush1.bf16.msra.mxu0 0
        %4481 = vmatprep.subr.bf16.mxu0 0
        %4482 = vmatpush1.bf16.msra.mxu0 0
        %4483 = vmatprep.subr.bf16.mxu0 0
        %4484 = vmatpush1.bf16.msra.mxu0 0
        %4485 = vmatprep.mubr.bf16.mxu0 0
        %4486 = vmatmul.mubr.bf16.gmra.mrb[0].mxu0 %v4427
        %v4487 = vpop.f32.mrb[0].mxu0
        %v4488 = vadd.f32 0.0, %v4487
        %v4489 = vpop.f32.mrb[0].mxu0
        %v4490 = vpop.f32.mrb[0].mxu0
        %v4491 = vadd.f32 0.0, %v4490
        %v4492 = vpop.f32.mrb[0].mxu0
        %4493 = vmatprep.mubr.bf16.mxu0 0
        %4494 = vmatmul.mubr.bf16.gmra.mrb[0].mxu0 %v4430
        %v4495 = vpop.f32.mrb[0].mxu0
        %v4496 = vadd.f32 0.0, %v4495
        %v4497 = vpop.f32.mrb[0].mxu0
        %v4498 = vpop.f32.mrb[0].mxu0
        %v4499 = vadd.f32 0.0, %v4498
        %v4500 = vpop.f32.mrb[0].mxu0
        %4501 = vmatprep.mubr.bf16.mxu0 0
        %4502 = vmatmul.mubr.bf16.gmra.mrb[0].mxu0 %v4433
        %v4503 = vpop.f32.mrb[0].mxu0
        %v4504 = vadd.f32 0.0, %v4503
        %v4505 = vpop.f32.mrb[0].mxu0
        %v4506 = vpop.f32.mrb[0].mxu0
        %v4507 = vadd.f32 0.0, %v4506
        %v4508 = vpop.f32.mrb[0].mxu0
        %4509 = vmatprep.mubr.bf16.mxu0 0
        %4510 = vmatmul.mubr.bf16.gmra.mrb[0].mxu0 %v4436
        %v4511 = vpop.f32.mrb[0].mxu0
        %v4512 = vadd.f32 0.0, %v4511
        %v4513 = vpop.f32.mrb[0].mxu0
        %v4514 = vpop.f32.mrb[0].mxu0
        %v4515 = vadd.f32 0.0, %v4514
        %v4516 = vpop.f32.mrb[0].mxu0
        %4517 = vmatprep.mubr.bf16.mxu0 0
        %4518 = vmatmul.mubr.bf16.gmra.mrb[0].mxu0 %v4439
        %v4519 = vpop.f32.mrb[0].mxu0
        %v4520 = vadd.f32 0.0, %v4519
        %v4521 = vpop.f32.mrb[0].mxu0
        %v4522 = vpop.f32.mrb[0].mxu0
        %v4523 = vadd.f32 0.0, %v4522
        %v4524 = vpop.f32.mrb[0].mxu0
        %4525 = vmatprep.mubr.bf16.mxu0 0
        %4526 = vmatmul.mubr.bf16.gmra.mrb[0].mxu0 %v4442
        %v4527 = vpop.f32.mrb[0].mxu0
        %v4528 = vadd.f32 0.0, %v4527
        %v4529 = vpop.f32.mrb[0].mxu0
        %v4530 = vpop.f32.mrb[0].mxu0
        %v4531 = vadd.f32 0.0, %v4530
        %v4532 = vpop.f32.mrb[0].mxu0
        %4533 = vmatprep.mubr.bf16.mxu0 0
        %4534 = vmatmul.mubr.bf16.gmra.mrb[0].mxu0 %v4445
        %v4535 = vpop.f32.mrb[0].mxu0
        %v4536 = vadd.f32 0.0, %v4535
        %v4537 = vpop.f32.mrb[0].mxu0
        %v4538 = vpop.f32.mrb[0].mxu0
        %v4539 = vadd.f32 0.0, %v4538
        %v4540 = vpop.f32.mrb[0].mxu0
        %4541 = vmatprep.mubr.bf16.mxu0 0
        %4542 = vmatmul.mubr.bf16.gmra.mrb[0].mxu0 %v4448
        %v4543 = vpop.f32.mrb[0].mxu0
        %v4544 = vadd.f32 0.0, %v4543
        %v4545 = vpop.f32.mrb[0].mxu0
        %v4546 = vpop.f32.mrb[0].mxu0
        %v4547 = vadd.f32 0.0, %v4546
        %v4548 = vpop.f32.mrb[0].mxu0
        %4549 = vdwg.mxu0
        %v4551 = vsel %vm1228, %v4281, 0
        %v4554 = vsel %vm1228, %v4282, 0
        %v4557 = vsel %vm1228, %v4283, 0
        %v4560 = vsel %vm1228, %v4284, 0
        %v4563 = vsel %vm1228, %v4285, 0
        %v4566 = vsel %vm1228, %v4286, 0
        %v4569 = vsel %vm1228, %v4287, 0
        %v4572 = vsel %vm1228, %v4288, 0
        %v4575 = vsel %vm4325, %v4299, 0
        %4577 = vmatprep.subr.bf16.mxu0 0
        %4578 = vmatpush1.bf16.msra.mxu0 %v4575
        %4579 = vmatprep.subr.bf16.mxu0 0
        %4580 = vmatpush1.bf16.msra.mxu0 0
        %4581 = vmatprep.subr.bf16.mxu0 0
        %4582 = vmatpush1.bf16.msra.mxu0 0
        %4583 = vmatprep.subr.bf16.mxu0 0
        %4584 = vmatpush1.bf16.msra.mxu0 0
        %4585 = vmatprep.subr.bf16.mxu0 0
        %4586 = vmatpush1.bf16.msra.mxu0 0
        %4587 = vmatprep.subr.bf16.mxu0 0
        %4588 = vmatpush1.bf16.msra.mxu0 0
        %4589 = vmatprep.subr.bf16.mxu0 0
        %4590 = vmatpush1.bf16.msra.mxu0 0
        %4591 = vmatprep.subr.bf16.mxu0 0
        %4592 = vmatpush1.bf16.msra.mxu0 0
        %4593 = vmatprep.subr.bf16.mxu0 0
        %4594 = vmatpush1.bf16.msra.mxu0 0
        %4595 = vmatprep.subr.bf16.mxu0 0
        %4596 = vmatpush1.bf16.msra.mxu0 0
        %4597 = vmatprep.subr.bf16.mxu0 0
        %4598 = vmatpush1.bf16.msra.mxu0 0
        %4599 = vmatprep.subr.bf16.mxu0 0
        %4600 = vmatpush1.bf16.msra.mxu0 0
        %4601 = vmatprep.subr.bf16.mxu0 0
        %4602 = vmatpush1.bf16.msra.mxu0 0
        %4603 = vmatprep.subr.bf16.mxu0 0
        %4604 = vmatpush1.bf16.msra.mxu0 0
        %4605 = vmatprep.subr.bf16.mxu0 0
        %4606 = vmatpush1.bf16.msra.mxu0 0
        %4607 = vmatprep.subr.bf16.mxu0 0
        %4608 = vmatpush1.bf16.msra.mxu0 0
        %4609 = vmatprep.mubr.bf16.mxu0 0
        %4610 = vmatmul.mubr.bf16.gmra.mrb[0].mxu0 %v4551
        %v4611 = vpop.f32.mrb[0].mxu0
        %v4612 = vadd.f32 0.0, %v4611
        %v4613 = vpop.f32.mrb[0].mxu0
        %v4614 = vpop.f32.mrb[0].mxu0
        %v4615 = vadd.f32 0.0, %v4614
        %v4616 = vpop.f32.mrb[0].mxu0
        %4617 = vmatprep.mubr.bf16.mxu0 0
        %4618 = vmatmul.mubr.bf16.gmra.mrb[0].mxu0 %v4554
        %v4619 = vpop.f32.mrb[0].mxu0
        %v4620 = vadd.f32 0.0, %v4619
        %v4621 = vpop.f32.mrb[0].mxu0
        %v4622 = vpop.f32.mrb[0].mxu0
        %v4623 = vadd.f32 0.0, %v4622
        %v4624 = vpop.f32.mrb[0].mxu0
        %4625 = vmatprep.mubr.bf16.mxu0 0
        %4626 = vmatmul.mubr.bf16.gmra.mrb[0].mxu0 %v4557
        %v4627 = vpop.f32.mrb[0].mxu0
        %v4628 = vadd.f32 0.0, %v4627
        %v4629 = vpop.f32.mrb[0].mxu0
        %v4630 = vpop.f32.mrb[0].mxu0
        %v4631 = vadd.f32 0.0, %v4630
        %v4632 = vpop.f32.mrb[0].mxu0
        %4633 = vmatprep.mubr.bf16.mxu0 0
        %4634 = vmatmul.mubr.bf16.gmra.mrb[0].mxu0 %v4560
        %v4635 = vpop.f32.mrb[0].mxu0
        %v4636 = vadd.f32 0.0, %v4635
        %v4637 = vpop.f32.mrb[0].mxu0
        %v4638 = vpop.f32.mrb[0].mxu0
        %v4639 = vadd.f32 0.0, %v4638
        %v4640 = vpop.f32.mrb[0].mxu0
        %4641 = vmatprep.mubr.bf16.mxu0 0
        %4642 = vmatmul.mubr.bf16.gmra.mrb[0].mxu0 %v4563
        %v4643 = vpop.f32.mrb[0].mxu0
        %v4644 = vadd.f32 0.0, %v4643
        %v4645 = vpop.f32.mrb[0].mxu0
        %v4646 = vpop.f32.mrb[0].mxu0
        %v4647 = vadd.f32 0.0, %v4646
        %v4648 = vpop.f32.mrb[0].mxu0
        %4649 = vmatprep.mubr.bf16.mxu0 0
        %4650 = vmatmul.mubr.bf16.gmra.mrb[0].mxu0 %v4566
        %v4651 = vpop.f32.mrb[0].mxu0
        %v4652 = vadd.f32 0.0, %v4651
        %v4653 = vpop.f32.mrb[0].mxu0
        %v4654 = vpop.f32.mrb[0].mxu0
        %v4655 = vadd.f32 0.0, %v4654
        %v4656 = vpop.f32.mrb[0].mxu0
        %4657 = vmatprep.mubr.bf16.mxu0 0
        %4658 = vmatmul.mubr.bf16.gmra.mrb[0].mxu0 %v4569
        %v4659 = vpop.f32.mrb[0].mxu0
        %v4660 = vadd.f32 0.0, %v4659
        %v4661 = vpop.f32.mrb[0].mxu0
        %v4662 = vpop.f32.mrb[0].mxu0
        %v4663 = vadd.f32 0.0, %v4662
        %v4664 = vpop.f32.mrb[0].mxu0
        %4665 = vmatprep.mubr.bf16.mxu0 0
        %4666 = vmatmul.mubr.bf16.gmra.mrb[0].mxu0 %v4572
        %v4667 = vpop.f32.mrb[0].mxu0
        %v4668 = vadd.f32 0.0, %v4667
        %v4669 = vpop.f32.mrb[0].mxu0
        %v4670 = vpop.f32.mrb[0].mxu0
        %v4671 = vadd.f32 0.0, %v4670
        %v4672 = vpop.f32.mrb[0].mxu0
        %4673 = vdwg.mxu0
        %v4675 = vsel %vm1228, %v4289, 0
        %v4678 = vsel %vm1228, %v4290, 0
        %v4681 = vsel %vm1228, %v4291, 0
        %v4684 = vsel %vm1228, %v4292, 0
        %v4687 = vsel %vm1228, %v4293, 0
        %v4690 = vsel %vm1228, %v4294, 0
        %v4693 = vsel %vm1228, %v4295, 0
        %v4696 = vsel %vm1228, %v4296, 0
        %v4699 = vsel %vm4325, %v4300, 0
        %4701 = vmatprep.subr.bf16.mxu0 0
        %4702 = vmatpush1.bf16.msra.mxu0 %v4699
        %4703 = vmatprep.subr.bf16.mxu0 0
        %4704 = vmatpush1.bf16.msra.mxu0 0
        %4705 = vmatprep.subr.bf16.mxu0 0
        %4706 = vmatpush1.bf16.msra.mxu0 0
        %4707 = vmatprep.subr.bf16.mxu0 0
        %4708 = vmatpush1.bf16.msra.mxu0 0
        %4709 = vmatprep.subr.bf16.mxu0 0
        %4710 = vmatpush1.bf16.msra.mxu0 0
        %4711 = vmatprep.subr.bf16.mxu0 0
        %4712 = vmatpush1.bf16.msra.mxu0 0
        %4713 = vmatprep.subr.bf16.mxu0 0
        %4714 = vmatpush1.bf16.msra.mxu0 0
        %4715 = vmatprep.subr.bf16.mxu0 0
        %4716 = vmatpush1.bf16.msra.mxu0 0
        %4717 = vmatprep.subr.bf16.mxu0 0
        %4718 = vmatpush1.bf16.msra.mxu0 0
        %4719 = vmatprep.subr.bf16.mxu0 0
        %4720 = vmatpush1.bf16.msra.mxu0 0
        %4721 = vmatprep.subr.bf16.mxu0 0
        %4722 = vmatpush1.bf16.msra.mxu0 0
        %4723 = vmatprep.subr.bf16.mxu0 0
        %4724 = vmatpush1.bf16.msra.mxu0 0
        %4725 = vmatprep.subr.bf16.mxu0 0
        %4726 = vmatpush1.bf16.msra.mxu0 0
        %4727 = vmatprep.subr.bf16.mxu0 0
        %4728 = vmatpush1.bf16.msra.mxu0 0
        %4729 = vmatprep.subr.bf16.mxu0 0
        %4730 = vmatpush1.bf16.msra.mxu0 0
        %4731 = vmatprep.subr.bf16.mxu0 0
        %4732 = vmatpush1.bf16.msra.mxu0 0
        %4733 = vmatprep.mubr.bf16.mxu0 0
        %4734 = vmatmul.mubr.bf16.gmra.mrb[0].mxu0 %v4675
        %v4735 = vpop.f32.mrb[0].mxu0
        %v4736 = vadd.f32 0.0, %v4735
        %v4737 = vpop.f32.mrb[0].mxu0
        %v4738 = vpop.f32.mrb[0].mxu0
        %v4739 = vadd.f32 0.0, %v4738
        %v4740 = vpop.f32.mrb[0].mxu0
        %4741 = vmatprep.mubr.bf16.mxu0 0
        %4742 = vmatmul.mubr.bf16.gmra.mrb[0].mxu0 %v4678
        %v4743 = vpop.f32.mrb[0].mxu0
        %v4744 = vadd.f32 0.0, %v4743
        %v4745 = vpop.f32.mrb[0].mxu0
        %v4746 = vpop.f32.mrb[0].mxu0
        %v4747 = vadd.f32 0.0, %v4746
        %v4748 = vpop.f32.mrb[0].mxu0
        %4749 = vmatprep.mubr.bf16.mxu0 0
        %4750 = vmatmul.mubr.bf16.gmra.mrb[0].mxu0 %v4681
        %v4751 = vpop.f32.mrb[0].mxu0
        %v4752 = vadd.f32 0.0, %v4751
        %v4753 = vpop.f32.mrb[0].mxu0
        %v4754 = vpop.f32.mrb[0].mxu0
        %v4755 = vadd.f32 0.0, %v4754
        %v4756 = vpop.f32.mrb[0].mxu0
        %4757 = vmatprep.mubr.bf16.mxu0 0
        %4758 = vmatmul.mubr.bf16.gmra.mrb[0].mxu0 %v4684
        %v4759 = vpop.f32.mrb[0].mxu0
        %v4760 = vadd.f32 0.0, %v4759
        %v4761 = vpop.f32.mrb[0].mxu0
        %v4762 = vpop.f32.mrb[0].mxu0
        %v4763 = vadd.f32 0.0, %v4762
        %v4764 = vpop.f32.mrb[0].mxu0
        %4765 = vmatprep.mubr.bf16.mxu0 0
        %4766 = vmatmul.mubr.bf16.gmra.mrb[0].mxu0 %v4687
        %v4767 = vpop.f32.mrb[0].mxu0
        %v4768 = vadd.f32 0.0, %v4767
        %v4769 = vpop.f32.mrb[0].mxu0
        %v4770 = vpop.f32.mrb[0].mxu0
        %v4771 = vadd.f32 0.0, %v4770
        %v4772 = vpop.f32.mrb[0].mxu0
        %4773 = vmatprep.mubr.bf16.mxu0 0
        %4774 = vmatmul.mubr.bf16.gmra.mrb[0].mxu0 %v4690
        %v4775 = vpop.f32.mrb[0].mxu0
        %v4776 = vadd.f32 0.0, %v4775
        %v4777 = vpop.f32.mrb[0].mxu0
        %v4778 = vpop.f32.mrb[0].mxu0
        %v4779 = vadd.f32 0.0, %v4778
        %v4780 = vpop.f32.mrb[0].mxu0
        %4781 = vmatprep.mubr.bf16.mxu0 0
        %4782 = vmatmul.mubr.bf16.gmra.mrb[0].mxu0 %v4693
        %v4783 = vpop.f32.mrb[0].mxu0
        %v4784 = vadd.f32 0.0, %v4783
        %v4785 = vpop.f32.mrb[0].mxu0
        %v4786 = vpop.f32.mrb[0].mxu0
        %v4787 = vadd.f32 0.0, %v4786
        %v4788 = vpop.f32.mrb[0].mxu0
        %4789 = vmatprep.mubr.bf16.mxu0 0
        %4790 = vmatmul.mubr.bf16.gmra.mrb[0].mxu0 %v4696
        %v4791 = vpop.f32.mrb[0].mxu0
        %v4792 = vadd.f32 0.0, %v4791
        %v4793 = vpop.f32.mrb[0].mxu0
        %v4794 = vpop.f32.mrb[0].mxu0
        %v4795 = vadd.f32 0.0, %v4794
        %v4796 = vpop.f32.mrb[0].mxu0
        %4797 = vdwg.mxu0
        %v4798 = vsel %vm439, %v4364, 0.0
        %v4799 = vsel %vm439, %v4488, 0.0
        %v4800 = vadd.f32 %v4798, %v4799
        %v4801 = vsel %vm439, %v4612, 0.0
        %v4802 = vadd.f32 %v4800, %v4801
        %v4803 = vsel %vm439, %v4736, 0.0
        %v4804 = vadd.f32 %v4802, %v4803
        %v4805 = vsel %vm439, %v4367, 0.0
        %v4806 = vsel %vm439, %v4491, 0.0
        %v4807 = vadd.f32 %v4805, %v4806
        %v4808 = vsel %vm439, %v4615, 0.0
        %v4809 = vadd.f32 %v4807, %v4808
        %v4810 = vsel %vm439, %v4739, 0.0
        %v4811 = vadd.f32 %v4809, %v4810
        %v4812 = vsel %vm439, %v4372, 0.0
        %v4813 = vsel %vm439, %v4496, 0.0
        %v4814 = vadd.f32 %v4812, %v4813
        %v4815 = vsel %vm439, %v4620, 0.0
        %v4816 = vadd.f32 %v4814, %v4815
        %v4817 = vsel %vm439, %v4744, 0.0
        %v4818 = vadd.f32 %v4816, %v4817
        %v4819 = vsel %vm439, %v4375, 0.0
        %v4820 = vsel %vm439, %v4499, 0.0
        %v4821 = vadd.f32 %v4819, %v4820
        %v4822 = vsel %vm439, %v4623, 0.0
        %v4823 = vadd.f32 %v4821, %v4822
        %v4824 = vsel %vm439, %v4747, 0.0
        %v4825 = vadd.f32 %v4823, %v4824
        %v4826 = vsel %vm439, %v4380, 0.0
        %v4827 = vsel %vm439, %v4504, 0.0
        %v4828 = vadd.f32 %v4826, %v4827
        %v4829 = vsel %vm439, %v4628, 0.0
        %v4830 = vadd.f32 %v4828, %v4829
        %v4831 = vsel %vm439, %v4752, 0.0
        %v4832 = vadd.f32 %v4830, %v4831
        %v4833 = vsel %vm439, %v4383, 0.0
        %v4834 = vsel %vm439, %v4507, 0.0
        %v4835 = vadd.f32 %v4833, %v4834
        %v4836 = vsel %vm439, %v4631, 0.0
        %v4837 = vadd.f32 %v4835, %v4836
        %v4838 = vsel %vm439, %v4755, 0.0
        %v4839 = vadd.f32 %v4837, %v4838
        %v4840 = vsel %vm439, %v4388, 0.0
        %v4841 = vsel %vm439, %v4512, 0.0
        %v4842 = vadd.f32 %v4840, %v4841
        %v4843 = vsel %vm439, %v4636, 0.0
        %v4844 = vadd.f32 %v4842, %v4843
        %v4845 = vsel %vm439, %v4760, 0.0
        %v4846 = vadd.f32 %v4844, %v4845
        %v4847 = vsel %vm439, %v4391, 0.0
        %v4848 = vsel %vm439, %v4515, 0.0
        %v4849 = vadd.f32 %v4847, %v4848
        %v4850 = vsel %vm439, %v4639, 0.0
        %v4851 = vadd.f32 %v4849, %v4850
        %v4852 = vsel %vm439, %v4763, 0.0
        %v4853 = vadd.f32 %v4851, %v4852
        %v4854 = vsel %vm439, %v4396, 0.0
        %v4855 = vsel %vm439, %v4520, 0.0
        %v4856 = vadd.f32 %v4854, %v4855
        %v4857 = vsel %vm439, %v4644, 0.0
        %v4858 = vadd.f32 %v4856, %v4857
        %v4859 = vsel %vm439, %v4768, 0.0
        %v4860 = vadd.f32 %v4858, %v4859
        %v4861 = vsel %vm439, %v4399, 0.0
        %v4862 = vsel %vm439, %v4523, 0.0
        %v4863 = vadd.f32 %v4861, %v4862
        %v4864 = vsel %vm439, %v4647, 0.0
        %v4865 = vadd.f32 %v4863, %v4864
        %v4866 = vsel %vm439, %v4771, 0.0
        %v4867 = vadd.f32 %v4865, %v4866
        %v4868 = vsel %vm439, %v4404, 0.0
        %v4869 = vsel %vm439, %v4528, 0.0
        %v4870 = vadd.f32 %v4868, %v4869
        %v4871 = vsel %vm439, %v4652, 0.0
        %v4872 = vadd.f32 %v4870, %v4871
        %v4873 = vsel %vm439, %v4776, 0.0
        %v4874 = vadd.f32 %v4872, %v4873
        %v4875 = vsel %vm439, %v4407, 0.0
        %v4876 = vsel %vm439, %v4531, 0.0
        %v4877 = vadd.f32 %v4875, %v4876
        %v4878 = vsel %vm439, %v4655, 0.0
        %v4879 = vadd.f32 %v4877, %v4878
        %v4880 = vsel %vm439, %v4779, 0.0
        %v4881 = vadd.f32 %v4879, %v4880
        %v4882 = vsel %vm439, %v4412, 0.0
        %v4883 = vsel %vm439, %v4536, 0.0
        %v4884 = vadd.f32 %v4882, %v4883
        %v4885 = vsel %vm439, %v4660, 0.0
        %v4886 = vadd.f32 %v4884, %v4885
        %v4887 = vsel %vm439, %v4784, 0.0
        %v4888 = vadd.f32 %v4886, %v4887
        %v4889 = vsel %vm439, %v4415, 0.0
        %v4890 = vsel %vm439, %v4539, 0.0
        %v4891 = vadd.f32 %v4889, %v4890
        %v4892 = vsel %vm439, %v4663, 0.0
        %v4893 = vadd.f32 %v4891, %v4892
        %v4894 = vsel %vm439, %v4787, 0.0
        %v4895 = vadd.f32 %v4893, %v4894
        %v4896 = vsel %vm439, %v4420, 0.0
        %v4897 = vsel %vm439, %v4544, 0.0
        %v4898 = vadd.f32 %v4896, %v4897
        %v4899 = vsel %vm439, %v4668, 0.0
        %v4900 = vadd.f32 %v4898, %v4899
        %v4901 = vsel %vm439, %v4792, 0.0
        %v4902 = vadd.f32 %v4900, %v4901
        %v4903 = vsel %vm439, %v4423, 0.0
        %v4904 = vsel %vm439, %v4547, 0.0
        %v4905 = vadd.f32 %v4903, %v4904
        %v4906 = vsel %vm439, %v4671, 0.0
        %v4907 = vadd.f32 %v4905, %v4906
        %v4908 = vsel %vm439, %v4795, 0.0
        %v4909 = vadd.f32 %v4907, %v4908
        %v4910 = vadd.f32 %v4804, %v423
        %v4911 = vadd.f32 %v4811, %v424
        %v4912 = vadd.f32 %v4818, %v425
        %v4913 = vadd.f32 %v4825, %v426
        %v4914 = vadd.f32 %v4832, %v427
        %v4915 = vadd.f32 %v4839, %v428
        %v4916 = vadd.f32 %v4846, %v429
        %v4917 = vadd.f32 %v4853, %v430
        %v4918 = vadd.f32 %v4860, %v431
        %v4919 = vadd.f32 %v4867, %v432
        %v4920 = vadd.f32 %v4874, %v433
        %v4921 = vadd.f32 %v4881, %v434
        %v4922 = vadd.f32 %v4888, %v435
        %v4923 = vadd.f32 %v4895, %v436
        %v4924 = vadd.f32 %v4902, %v437
        %v4925 = vadd.f32 %v4909, %v438
        %4926 = vst.msk [vmem:[%s421] sm:$0xff] %vm439, %v4910
        %4927 = vst.msk [vmem:[%s421 + $0x8] sm:$0xff] %vm439, %v4911
        %4928 = vst.msk [vmem:[%s421 + $0x10] sm:$0xff] %vm439, %v4912
        %4929 = vst.msk [vmem:[%s421 + $0x18] sm:$0xff] %vm439, %v4913
        %4930 = vst.msk [vmem:[%s421 + $0x20] sm:$0xff] %vm439, %v4914
        %4931 = vst.msk [vmem:[%s421 + $0x28] sm:$0xff] %vm439, %v4915
        %4932 = vst.msk [vmem:[%s421 + $0x30] sm:$0xff] %vm439, %v4916
        %4933 = vst.msk [vmem:[%s421 + $0x38] sm:$0xff] %vm439, %v4917
        %4934 = vst.msk [vmem:[%s421 + $0x40] sm:$0xff] %vm439, %v4918
        %4935 = vst.msk [vmem:[%s421 + $0x48] sm:$0xff] %vm439, %v4919
        %4936 = vst.msk [vmem:[%s421 + $0x50] sm:$0xff] %vm439, %v4920
        %4937 = vst.msk [vmem:[%s421 + $0x58] sm:$0xff] %vm439, %v4921
        %4938 = vst.msk [vmem:[%s421 + $0x60] sm:$0xff] %vm439, %v4922
        %4939 = vst.msk [vmem:[%s421 + $0x68] sm:$0xff] %vm439, %v4923
        %4940 = vst.msk [vmem:[%s421 + $0x70] sm:$0xff] %vm439, %v4924
        %4941 = vst.msk [vmem:[%s421 + $0x78] sm:$0xff] %vm439, %v4925
        %s4942 = sand.u32 %s210, 1
        %s4943 = scalar_lea.sflag [#allocation4], %s4942
        %s4944 = sand.u32 %s210, 1
        %s4945 = smul.addr %s4944, 128
        %s4946 = scalar_lea.vmem [#allocation16], %s4945
        // Predicated region
        $region85: #{tpu_custom_call.1} parent=51 // pred_check
          %p4947 = pneg %p220
        $region86: #{tpu_custom_call.1} parent=51 // pred_check_branch
          %4949 = sbr.rel (%p4947) target = $region88
        $region87: #{tpu_custom_call.1} parent=51 // pred_region
          %s4951 = ssub.s32 2048, 2048
          %4952 = vsyncadd %s4943, %s4951
          %s4953 = smul.addr %s29, 16
          %s4954 = smul.addr %s4953, 128
          %s4955 = scalar_lea.hbm %s8, %s4954
          %s4956 = sshll.u32 %s4946, 4
          %s4957 = int_to_ptr.vmem [resolvable:$true] %s4956
          %4962 = dma.vmem_to_hbm [thread:$0]  %s4957, 2048, %s4955, %s4943, 128, 128, 8
        $region88: #{tpu_custom_call.1} parent=51 // pred_fallthru
          _
      $region52: #{tpu_custom_call.1} parent=5 // pred_fallthru
        _
      %p4963 = scmp.le.s32.totalorder 2, %s24
      // Predicated region
      $region89: #{tpu_custom_call.1} parent=5 // pred_check
        %p4964 = pneg %p4963
      $region90: #{tpu_custom_call.1} parent=5 // pred_check_branch
        %4966 = sbr.rel (%p4964) target = $region92
      $region91: #{tpu_custom_call.1} parent=5 // pred_region
        %s4967 = ssub.s32 %s24, 2
        // Predicated region
        $region93: #{tpu_custom_call.1} parent=91 // pred_check
          %p4968 = pneg %p226
        $region94: #{tpu_custom_call.1} parent=91 // pred_check_branch
          %4970 = sbr.rel (%p4968) target = $region96
        $region95: #{tpu_custom_call.1} parent=91 // pred_region
          %s4971 = sand.u32 %s211, 1
          %s4972 = scalar_lea.sflag [#allocation4], %s4971
          %s4973 = sand.u32 %s211, 1
          %s4974 = smul.addr %s4973, 128
          %s4975 = scalar_lea.vmem [#allocation16], %s4974
          %4976 = dma.done %s4972, 2048
        $region96: #{tpu_custom_call.1} parent=91 // pred_fallthru
          _
      $region92: #{tpu_custom_call.1} parent=5 // pred_fallthru
        _
    $region6: #{tpu_custom_call.1} parent=1 // loop_footer
      %s28 = sadd.s32 1, %s24
    $region7: #{tpu_custom_call.1} parent=1 // loop_footer_branch
      %23 = sbr.rel target = $region3
    $region8: #{tpu_custom_call.1} parent=1 // loop_exit
      _
    %4977 = vsyncpa [#allocation3], 1
    %s4978 = scalar_lea.sflag [#allocation3], 1
    %4979 = vsyncpa %s4978, 1
    %4980 = vsyncpa [#allocation6], 1
    %4981 = vsyncpa [#allocation9], 1
    %4982 = vsyncpa [#allocation12], 1
    %4983 = vsyncpa [#allocation15], 1
    %4984 = vsyncpa [#allocation4], 1
    %s4985 = scalar_lea.sflag [#allocation4], 1
    %4986 = vsyncpa %s4985, 1

</llo_original>
